<compile_context>
chip_gen: v6e
topology: v6e:2x2x1
jax: 0.10.0
libtpu: 0.0.40
codegen_flags: <defaults>
</compile_context>

<pallas_src>
import functools

import jax
import jax.numpy as jnp
from jax.experimental import pallas as pl
from jax.experimental.pallas import tpu as pltpu

KSIZE = 7
PAD = KSIZE // 2
ROW0 = 8      # sublane-aligned row offset of the interior inside red_ref
COL0 = 128    # lane-aligned  col offset of the interior inside red_ref


def spatial_attention_kernel(w_ref, x_ref, o_ref,
                             psum_ref, pmax_ref, savg_ref, smax_ref, red_ref,
                             *, c_total, height, width):
    # w_ref    : SMEM (2*K*K,) conv weights  [ch0 = avg, ch1 = max]
    # x_ref    : VMEM (Bt, Cc, H*W) lane-dense input tile
    # o_ref    : VMEM (Bt, 1, H, WO) lane-dense output tile (WO = roundup(W,128))
    # psum_ref : VMEM (Bt, 1, H*W) partial channel sums  (persist across c steps)
    # pmax_ref : VMEM (Bt, 1, H*W) partial channel maxes (persist across c steps)
    # savg_ref : VMEM (1, H*W) staged flat avg map of the current image
    # smax_ref : VMEM (1, H*W) staged flat max map of the current image
    # red_ref  : VMEM (2, Hp, Wp) zero-padded 2-D maps fed to the 7x7 conv
    bt, cc_blk, hw = x_ref.shape
    wo = o_ref.shape[-1]
    c_idx = pl.program_id(1)
    n_c = pl.num_programs(1)
    inv_c = jnp.float32(1.0 / c_total)

    # ---- first channel step of this batch tile: reset partial reductions ----
    @pl.when(c_idx == 0)
    def _init():
        psum_ref[...] = jnp.zeros_like(psum_ref)
        pmax_ref[...] = jnp.full_like(pmax_ref, -jnp.inf)

    # Channel chunk sized by vreg footprint (keep a chunk around <=48 vregs).
    lane_vregs = pl.cdiv(hw, 128)
    cchunk = min(cc_blk, 8 * max(1, 48 // lane_vregs))

    # ---- accumulate this channel block, lane-dense over flattened H*W ----
    def _acc_image(i, carry):
        for c0 in range(0, cc_blk, cchunk):
            n = min(cchunk, cc_blk - c0)
            chunk = x_ref[i, c0:c0 + n, :].astype(jnp.float32)        # (n, H*W)
            psum_ref[i] = psum_ref[i] + jnp.sum(chunk, axis=0, keepdims=True)
            pmax_ref[i] = jnp.maximum(pmax_ref[i],
                                      jnp.max(chunk, axis=0, keepdims=True))
        return carry

    jax.lax.fori_loop(0, bt, _acc_image, 0, unroll=False)

    # ---- last channel step: pad, 7x7 (2->1) conv, sigmoid, store ----
    @pl.when(c_idx == n_c - 1)
    def _finalize():
        # Border of the padded scratch is the conv's "same" zero padding; the
        # interior is fully rewritten per image, the border is never written.
        red_ref[...] = jnp.zeros_like(red_ref)

        def _conv_image(i, carry):
            savg_ref[...] = psum_ref[i] * inv_c
            smax_ref[...] = pmax_ref[i]
            # Relayout the flat (H*W,) maps into the padded 2-D scratch, one
            # lane-aligned row at a time (tiny: 2*H row copies per image).
            for h in range(height):
                r = ROW0 + h
                lo = h * width
                red_ref[0, r:r + 1, COL0:COL0 + width] = savg_ref[0:1, lo:lo + width]
                red_ref[1, r:r + 1, COL0:COL0 + width] = smax_ref[0:1, lo:lo + width]
            # 7x7 cross-correlation as 2*49 shifted-window ref reads; weight
            # scalars are read from SMEM in-loop (no 98 live vreg splats).
            acc = jnp.zeros((height, wo), jnp.float32)
            for dy in range(KSIZE):
                r0 = ROW0 - PAD + dy
                for dx in range(KSIZE):
                    c0 = COL0 - PAD + dx
                    w_avg = w_ref[(0 * KSIZE + dy) * KSIZE + dx]
                    w_max = w_ref[(1 * KSIZE + dy) * KSIZE + dx]
                    acc = (acc
                           + w_avg * red_ref[0, r0:r0 + height, c0:c0 + wo]
                           + w_max * red_ref[1, r0:r0 + height, c0:c0 + wo])
            o_ref[i, 0] = jax.nn.sigmoid(acc).astype(o_ref.dtype)
            return carry

        jax.lax.fori_loop(0, bt, _conv_image, 0, unroll=False)


def _pick_tiles(batch, chans, hw, itemsize, target_bytes):
    """Pick (Bt, Cc): ~target_bytes input blocks, even batch grid, Cc % 8 == 0."""
    per_img = chans * hw * itemsize
    if per_img > target_bytes:
        # Channel-tile a single image; Cc must be a multiple of 8 ((8,128) rule)
        cc = 0
        for d in range(8, chans + 1, 8):
            if chans % d == 0 and d * hw * itemsize <= target_bytes:
                cc = d
        if cc == 0:
            cc = chans            # no valid divisor: fall back to the whole image
        return 1, cc
    divs = [d for d in range(1, batch + 1) if batch % d == 0]
    fits = [d for d in divs if d * per_img <= target_bytes] or [1]
    pref = ([d for d in fits if (batch // d) >= 4 and (batch // d) % 2 == 0]
            or [d for d in fits if (batch // d) >= 2 and (batch // d) % 2 == 0]
            or [d for d in fits if (batch // d) >= 2]
            or fits)
    return max(pref), chans


def spatial_attention(x, weight, *, target_block_bytes=4 << 20):
    """x: (B, C, H, W) float; weight: (1, 2, K, K) -> sigmoid(conv) (B, 1, H, W)."""
    B, C, H, W = x.shape
    HW = H * W
    WO = ((W + 127) // 128) * 128            # lane-dense output width
    Hp = ROW0 + H + 8                        # padded-map rows (interior at ROW0)
    Wp = COL0 + WO + 128                     # padded-map cols (interior at COL0)
    Bt, Cc = _pick_tiles(B, C, HW, x.dtype.itemsize, target_block_bytes)

    x_flat = x.reshape(B, C, HW)             # free: merges contiguous trailing dims
    w_flat = weight.reshape(-1).astype(jnp.float32)   # (2*K*K,)

    kernel = functools.partial(spatial_attention_kernel,
                               c_total=C, height=H, width=W)

    out_padded = pl.pallas_call(
        kernel,
        out_shape=jax.ShapeDtypeStruct((B, 1, H, WO), x.dtype),
        grid=(B // Bt, C // Cc),
        in_specs=[
            pl.BlockSpec(memory_space=pltpu.MemorySpace.SMEM),        # weights
            pl.BlockSpec((Bt, Cc, HW), lambda b, c: (b, c, 0)),       # raw input
        ],
        out_specs=pl.BlockSpec((Bt, 1, H, WO), lambda b, c: (b, 0, 0, 0)),
        scratch_shapes=[
            pltpu.VMEM((Bt, 1, HW), jnp.float32),   # partial channel sums
            pltpu.VMEM((Bt, 1, HW), jnp.float32),   # partial running maxes
            pltpu.VMEM((1, HW), jnp.float32),       # staged avg map (flat)
            pltpu.VMEM((1, HW), jnp.float32),       # staged max map (flat)
            pltpu.VMEM((2, Hp, Wp), jnp.float32),   # zero-padded 2-D maps
        ],
        compiler_params=pltpu.CompilerParams(
            dimension_semantics=("parallel", "arbitrary"),
            vmem_limit_bytes=32 * 1024 * 1024,
        ),
    )(w_flat, x_flat)

    return out_padded[..., :W] if WO != W else out_padded


if __name__ == "__main__":
    key = jax.random.PRNGKey(0)
    kx, kw = jax.random.split(key)

    B, C, H, W = 2, 4, 16, 16
    x = jax.random.normal(kx, (B, C, H, W), dtype=jnp.float32)
    # Deterministic synthetic conv1 weights: (out=1, in=2, 7, 7), no bias.
    weight = jax.random.normal(kw, (1, 2, KSIZE, KSIZE), dtype=jnp.float32) * 0.1

    out = jax.block_until_ready(spatial_attention(x, weight))

    # Pure-JAX reference for validation.
    avg = jnp.mean(x, axis=1, keepdims=True)
    mx = jnp.max(x, axis=1, keepdims=True)
    cat = jnp.concatenate([avg, mx], axis=1)
    ref = jax.lax.conv_general_dilated(
        cat, weight, window_strides=(1, 1),
        padding=[(PAD, PAD), (PAD, PAD)],
        dimension_numbers=("NCHW", "OIHW", "NCHW"))
    ref = jax.nn.sigmoid(ref)

    assert out.shape == (B, 1, H, W)
    assert jnp.allclose(out, ref, atol=1e-5, rtol=1e-5), "mismatch vs reference"
    print("KERNEL_OK")
</pallas_src>

<mosaic_0001>
module attributes {stable_mosaic.version = 11 : i64} {
  func.func @spatial_attention_kernel(%arg0: i32, %arg1: i32, %arg2: memref<98xf32, #tpu.memory_space<smem>>, %arg3: memref<1x4x256xf32, #tpu.memory_space<vmem>>, %arg4: memref<1x1x16x128xf32, #tpu.memory_space<vmem>>, %arg5: memref<1x1x256xf32, #tpu.memory_space<vmem>>, %arg6: memref<1x1x256xf32, #tpu.memory_space<vmem>>, %arg7: memref<1x256xf32, #tpu.memory_space<vmem>>, %arg8: memref<1x256xf32, #tpu.memory_space<vmem>>, %arg9: memref<2x32x384xf32, #tpu.memory_space<vmem>>) attributes {dimension_semantics = [#tpu.dimension_semantics<parallel>, #tpu.dimension_semantics<arbitrary>], iteration_bounds = array<i64: 2, 1>, scalar_prefetch = 0 : i64, scratch_operands = 5 : i64, tpu.core_type = #tpu.core_type<tc>, window_params = [{transform_indices = @transform_0, window_bounds = array<i64: 98>}, {transform_indices = @transform_1, window_bounds = array<i64: 1, 4, 256>}, {transform_indices = @transform_2, window_bounds = array<i64: 1, 1, 16, 128>}]} {
    %c0_i32 = arith.constant 0 : i32
    %0 = arith.cmpi eq, %arg1, %c0_i32 : i32
    %1 = arith.extui %0 : i1 to i32
    %c0_i32_0 = arith.constant 0 : i32
    %2 = arith.cmpi ne, %1, %c0_i32_0 : i32
    scf.if %2 {
      %cst_15 = arith.constant 0.000000e+00 : f32
      %29 = vector.broadcast %cst_15 : f32 to vector<1x1x256xf32>
      %c0_16 = arith.constant 0 : index
      %c0_17 = arith.constant 0 : index
      %c0_18 = arith.constant 0 : index
      %30 = vector.load %arg5[%c0_16, %c0_17, %c0_18] : memref<1x1x256xf32, #tpu.memory_space<vmem>>, vector<1x1x256xf32>
      tpu.vector_store %arg5[%c0_16, %c0_17, %c0_18], %29 {strides = array<i32>} : memref<1x1x256xf32, #tpu.memory_space<vmem>>, vector<1x1x256xf32>,
      %cst_19 = arith.constant 0xFF800000 : f32
      %31 = vector.broadcast %cst_19 : f32 to vector<1x1x256xf32>
      %c0_20 = arith.constant 0 : index
      %c0_21 = arith.constant 0 : index
      %c0_22 = arith.constant 0 : index
      %32 = vector.load %arg6[%c0_20, %c0_21, %c0_22] : memref<1x1x256xf32, #tpu.memory_space<vmem>>, vector<1x1x256xf32>
      tpu.vector_store %arg6[%c0_20, %c0_21, %c0_22], %31 {strides = array<i32>} : memref<1x1x256xf32, #tpu.memory_space<vmem>>, vector<1x1x256xf32>,
    } else {
    }
    %c0_i32_1 = arith.constant 0 : i32
    %3 = arith.index_cast %c0_i32_1 : i32 to index
    %c0 = arith.constant 0 : index
    %c0_2 = arith.constant 0 : index
    %4 = vector.load %arg3[%3, %c0, %c0_2] : memref<1x4x256xf32, #tpu.memory_space<vmem>>, vector<1x4x256xf32>
    %5 = vector.shape_cast %4 : vector<1x4x256xf32> to vector<4x256xf32>
    %6 = arith.index_cast %c0_i32_1 : i32 to index
    %c0_3 = arith.constant 0 : index
    %c0_4 = arith.constant 0 : index
    %7 = vector.load %arg5[%6, %c0_3, %c0_4] : memref<1x1x256xf32, #tpu.memory_space<vmem>>, vector<1x1x256xf32>
    %8 = vector.shape_cast %7 : vector<1x1x256xf32> to vector<1x256xf32>
    %cst = arith.constant dense<0.000000e+00> : vector<256xf32>
    %9 = vector.multi_reduction <add>, %5, %cst [0] : vector<4x256xf32> to vector<256xf32>
    %10 = vector.shape_cast %9 : vector<256xf32> to vector<1x256xf32>
    %11 = arith.addf %8, %10 : vector<1x256xf32>
    %12 = arith.index_cast %c0_i32_1 : i32 to index
    %c0_5 = arith.constant 0 : index
    %c0_6 = arith.constant 0 : index
    %13 = vector.load %arg5[%12, %c0_5, %c0_6] : memref<1x1x256xf32, #tpu.memory_space<vmem>>, vector<1x1x256xf32>
    %14 = vector.shape_cast %13 : vector<1x1x256xf32> to vector<1x256xf32>
    %15 = vector.shape_cast %11 : vector<1x256xf32> to vector<1x1x256xf32>
    tpu.vector_store %arg5[%12, %c0_5, %c0_6], %15 {strides = array<i32>} : memref<1x1x256xf32, #tpu.memory_space<vmem>>, vector<1x1x256xf32>,
    %16 = arith.index_cast %c0_i32_1 : i32 to index
    %c0_7 = arith.constant 0 : index
    %c0_8 = arith.constant 0 : index
    %17 = vector.load %arg6[%16, %c0_7, %c0_8] : memref<1x1x256xf32, #tpu.memory_space<vmem>>, vector<1x1x256xf32>
    %18 = vector.shape_cast %17 : vector<1x1x256xf32> to vector<1x256xf32>
    %cst_9 = arith.constant dense<0xFF800000> : vector<256xf32>
    %19 = vector.multi_reduction <maximumf>, %5, %cst_9 [0] : vector<4x256xf32> to vector<256xf32>
    %20 = vector.shape_cast %19 : vector<256xf32> to vector<1x256xf32>
    %21 = arith.maximumf %18, %20 : vector<1x256xf32>
    %22 = arith.index_cast %c0_i32_1 : i32 to index
    %c0_10 = arith.constant 0 : index
    %c0_11 = arith.constant 0 : index
    %23 = vector.load %arg6[%22, %c0_10, %c0_11] : memref<1x1x256xf32, #tpu.memory_space<vmem>>, vector<1x1x256xf32>
    %24 = vector.shape_cast %23 : vector<1x1x256xf32> to vector<1x256xf32>
    %25 = vector.shape_cast %21 : vector<1x256xf32> to vector<1x1x256xf32>
    tpu.vector_store %arg6[%22, %c0_10, %c0_11], %25 {strides = array<i32>} : memref<1x1x256xf32, #tpu.memory_space<vmem>>, vector<1x1x256xf32>,
    %c1_i32 = arith.constant 1 : i32
    %c0_i32_12 = arith.constant 0 : i32
    %26 = arith.cmpi eq, %arg1, %c0_i32_12 : i32
    %27 = arith.extui %26 : i1 to i32
    %cst_13 = arith.constant 2.500000e-01 : f32
    %c0_i32_14 = arith.constant 0 : i32
    %28 = arith.cmpi ne, %27, %c0_i32_14 : i32
    scf.if %28 {
      %cst_15 = arith.constant 0.000000e+00 : f32
      %29 = vector.broadcast %cst_15 : f32 to vector<2x32x384xf32>
      %c0_16 = arith.constant 0 : index
      %c0_17 = arith.constant 0 : index
      %c0_18 = arith.constant 0 : index
      %30 = vector.load %arg9[%c0_16, %c0_17, %c0_18] : memref<2x32x384xf32, #tpu.memory_space<vmem>>, vector<2x32x384xf32>
      tpu.vector_store %arg9[%c0_16, %c0_17, %c0_18], %29 {strides = array<i32>} : memref<2x32x384xf32, #tpu.memory_space<vmem>>, vector<2x32x384xf32>,
      %c0_i32_19 = arith.constant 0 : i32
      %31 = arith.index_cast %c0_i32_19 : i32 to index
      %c0_20 = arith.constant 0 : index
      %c0_21 = arith.constant 0 : index
      %32 = vector.load %arg5[%31, %c0_20, %c0_21] : memref<1x1x256xf32, #tpu.memory_space<vmem>>, vector<1x1x256xf32>
      %33 = vector.shape_cast %32 : vector<1x1x256xf32> to vector<1x256xf32>
      %34 = vector.broadcast %cst_13 : f32 to vector<1x256xf32>
      %35 = arith.mulf %33, %34 : vector<1x256xf32>
      %c0_22 = arith.constant 0 : index
      %c0_23 = arith.constant 0 : index
      %36 = vector.load %arg7[%c0_22, %c0_23] : memref<1x256xf32, #tpu.memory_space<vmem>>, vector<1x256xf32>
      tpu.vector_store %arg7[%c0_22, %c0_23], %35 {strides = array<i32>} : memref<1x256xf32, #tpu.memory_space<vmem>>, vector<1x256xf32>,
      %37 = arith.index_cast %c0_i32_19 : i32 to index
      %c0_24 = arith.constant 0 : index
      %c0_25 = arith.constant 0 : index
      %38 = vector.load %arg6[%37, %c0_24, %c0_25] : memref<1x1x256xf32, #tpu.memory_space<vmem>>, vector<1x1x256xf32>
      %39 = vector.shape_cast %38 : vector<1x1x256xf32> to vector<1x256xf32>
      %c0_26 = arith.constant 0 : index
      %c0_27 = arith.constant 0 : index
      %40 = vector.load %arg8[%c0_26, %c0_27] : memref<1x256xf32, #tpu.memory_space<vmem>>, vector<1x256xf32>
      tpu.vector_store %arg8[%c0_26, %c0_27], %39 {strides = array<i32>} : memref<1x256xf32, #tpu.memory_space<vmem>>, vector<1x256xf32>,
      %c0_28 = arith.constant 0 : index
      %c0_29 = arith.constant 0 : index
      %41 = vector.load %arg7[%c0_28, %c0_29] : memref<1x256xf32, #tpu.memory_space<vmem>>, vector<1x16xf32>
      %c0_30 = arith.constant 0 : index
      %c8 = arith.constant 8 : index
      %c128 = arith.constant 128 : index
      %42 = vector.load %arg9[%c0_30, %c8, %c128] : memref<2x32x384xf32, #tpu.memory_space<vmem>>, vector<1x1x16xf32>
      %43 = vector.shape_cast %42 : vector<1x1x16xf32> to vector<1x16xf32>
      %44 = vector.shape_cast %41 : vector<1x16xf32> to vector<1x1x16xf32>
      tpu.vector_store %arg9[%c0_30, %c8, %c128], %44 {strides = array<i32>} : memref<2x32x384xf32, #tpu.memory_space<vmem>>, vector<1x1x16xf32>,
      %c0_31 = arith.constant 0 : index
      %c0_32 = arith.constant 0 : index
      %45 = vector.load %arg8[%c0_31, %c0_32] : memref<1x256xf32, #tpu.memory_space<vmem>>, vector<1x16xf32>
      %c1 = arith.constant 1 : index
      %c8_33 = arith.constant 8 : index
      %c128_34 = arith.constant 128 : index
      %46 = vector.load %arg9[%c1, %c8_33, %c128_34] : memref<2x32x384xf32, #tpu.memory_space<vmem>>, vector<1x1x16xf32>
      %47 = vector.shape_cast %46 : vector<1x1x16xf32> to vector<1x16xf32>
      %48 = vector.shape_cast %45 : vector<1x16xf32> to vector<1x1x16xf32>
      tpu.vector_store %arg9[%c1, %c8_33, %c128_34], %48 {strides = array<i32>} : memref<2x32x384xf32, #tpu.memory_space<vmem>>, vector<1x1x16xf32>,
      %c0_35 = arith.constant 0 : index
      %c16 = arith.constant 16 : index
      %49 = vector.load %arg7[%c0_35, %c16] : memref<1x256xf32, #tpu.memory_space<vmem>>, vector<1x16xf32>
      %c0_36 = arith.constant 0 : index
      %c9 = arith.constant 9 : index
      %c128_37 = arith.constant 128 : index
      %50 = vector.load %arg9[%c0_36, %c9, %c128_37] : memref<2x32x384xf32, #tpu.memory_space<vmem>>, vector<1x1x16xf32>
      %51 = vector.shape_cast %50 : vector<1x1x16xf32> to vector<1x16xf32>
      %52 = vector.shape_cast %49 : vector<1x16xf32> to vector<1x1x16xf32>
      tpu.vector_store %arg9[%c0_36, %c9, %c128_37], %52 {strides = array<i32>} : memref<2x32x384xf32, #tpu.memory_space<vmem>>, vector<1x1x16xf32>,
      %c0_38 = arith.constant 0 : index
      %c16_39 = arith.constant 16 : index
      %53 = vector.load %arg8[%c0_38, %c16_39] : memref<1x256xf32, #tpu.memory_space<vmem>>, vector<1x16xf32>
      %c1_40 = arith.constant 1 : index
      %c9_41 = arith.constant 9 : index
      %c128_42 = arith.constant 128 : index
      %54 = vector.load %arg9[%c1_40, %c9_41, %c128_42] : memref<2x32x384xf32, #tpu.memory_space<vmem>>, vector<1x1x16xf32>
      %55 = vector.shape_cast %54 : vector<1x1x16xf32> to vector<1x16xf32>
      %56 = vector.shape_cast %53 : vector<1x16xf32> to vector<1x1x16xf32>
      tpu.vector_store %arg9[%c1_40, %c9_41, %c128_42], %56 {strides = array<i32>} : memref<2x32x384xf32, #tpu.memory_space<vmem>>, vector<1x1x16xf32>,
      %c0_43 = arith.constant 0 : index
      %c32 = arith.constant 32 : index
      %57 = vector.load %arg7[%c0_43, %c32] : memref<1x256xf32, #tpu.memory_space<vmem>>, vector<1x16xf32>
      %c0_44 = arith.constant 0 : index
      %c10 = arith.constant 10 : index
      %c128_45 = arith.constant 128 : index
      %58 = vector.load %arg9[%c0_44, %c10, %c128_45] : memref<2x32x384xf32, #tpu.memory_space<vmem>>, vector<1x1x16xf32>
      %59 = vector.shape_cast %58 : vector<1x1x16xf32> to vector<1x16xf32>
      %60 = vector.shape_cast %57 : vector<1x16xf32> to vector<1x1x16xf32>
      tpu.vector_store %arg9[%c0_44, %c10, %c128_45], %60 {strides = array<i32>} : memref<2x32x384xf32, #tpu.memory_space<vmem>>, vector<1x1x16xf32>,
      %c0_46 = arith.constant 0 : index
      %c32_47 = arith.constant 32 : index
      %61 = vector.load %arg8[%c0_46, %c32_47] : memref<1x256xf32, #tpu.memory_space<vmem>>, vector<1x16xf32>
      %c1_48 = arith.constant 1 : index
      %c10_49 = arith.constant 10 : index
      %c128_50 = arith.constant 128 : index
      %62 = vector.load %arg9[%c1_48, %c10_49, %c128_50] : memref<2x32x384xf32, #tpu.memory_space<vmem>>, vector<1x1x16xf32>
      %63 = vector.shape_cast %62 : vector<1x1x16xf32> to vector<1x16xf32>
      %64 = vector.shape_cast %61 : vector<1x16xf32> to vector<1x1x16xf32>
      tpu.vector_store %arg9[%c1_48, %c10_49, %c128_50], %64 {strides = array<i32>} : memref<2x32x384xf32, #tpu.memory_space<vmem>>, vector<1x1x16xf32>,
      %c0_51 = arith.constant 0 : index
      %c48 = arith.constant 48 : index
      %65 = vector.load %arg7[%c0_51, %c48] : memref<1x256xf32, #tpu.memory_space<vmem>>, vector<1x16xf32>
      %c0_52 = arith.constant 0 : index
      %c11 = arith.constant 11 : index
      %c128_53 = arith.constant 128 : index
      %66 = vector.load %arg9[%c0_52, %c11, %c128_53] : memref<2x32x384xf32, #tpu.memory_space<vmem>>, vector<1x1x16xf32>
      %67 = vector.shape_cast %66 : vector<1x1x16xf32> to vector<1x16xf32>
      %68 = vector.shape_cast %65 : vector<1x16xf32> to vector<1x1x16xf32>
      tpu.vector_store %arg9[%c0_52, %c11, %c128_53], %68 {strides = array<i32>} : memref<2x32x384xf32, #tpu.memory_space<vmem>>, vector<1x1x16xf32>,
      %c0_54 = arith.constant 0 : index
      %c48_55 = arith.constant 48 : index
      %69 = vector.load %arg8[%c0_54, %c48_55] : memref<1x256xf32, #tpu.memory_space<vmem>>, vector<1x16xf32>
      %c1_56 = arith.constant 1 : index
      %c11_57 = arith.constant 11 : index
      %c128_58 = arith.constant 128 : index
      %70 = vector.load %arg9[%c1_56, %c11_57, %c128_58] : memref<2x32x384xf32, #tpu.memory_space<vmem>>, vector<1x1x16xf32>
      %71 = vector.shape_cast %70 : vector<1x1x16xf32> to vector<1x16xf32>
      %72 = vector.shape_cast %69 : vector<1x16xf32> to vector<1x1x16xf32>
      tpu.vector_store %arg9[%c1_56, %c11_57, %c128_58], %72 {strides = array<i32>} : memref<2x32x384xf32, #tpu.memory_space<vmem>>, vector<1x1x16xf32>,
      %c0_59 = arith.constant 0 : index
      %c64 = arith.constant 64 : index
      %73 = vector.load %arg7[%c0_59, %c64] : memref<1x256xf32, #tpu.memory_space<vmem>>, vector<1x16xf32>
      %c0_60 = arith.constant 0 : index
      %c12 = arith.constant 12 : index
      %c128_61 = arith.constant 128 : index
      %74 = vector.load %arg9[%c0_60, %c12, %c128_61] : memref<2x32x384xf32, #tpu.memory_space<vmem>>, vector<1x1x16xf32>
      %75 = vector.shape_cast %74 : vector<1x1x16xf32> to vector<1x16xf32>
      %76 = vector.shape_cast %73 : vector<1x16xf32> to vector<1x1x16xf32>
      tpu.vector_store %arg9[%c0_60, %c12, %c128_61], %76 {strides = array<i32>} : memref<2x32x384xf32, #tpu.memory_space<vmem>>, vector<1x1x16xf32>,
      %c0_62 = arith.constant 0 : index
      %c64_63 = arith.constant 64 : index
      %77 = vector.load %arg8[%c0_62, %c64_63] : memref<1x256xf32, #tpu.memory_space<vmem>>, vector<1x16xf32>
      %c1_64 = arith.constant 1 : index
      %c12_65 = arith.constant 12 : index
      %c128_66 = arith.constant 128 : index
      %78 = vector.load %arg9[%c1_64, %c12_65, %c128_66] : memref<2x32x384xf32, #tpu.memory_space<vmem>>, vector<1x1x16xf32>
      %79 = vector.shape_cast %78 : vector<1x1x16xf32> to vector<1x16xf32>
      %80 = vector.shape_cast %77 : vector<1x16xf32> to vector<1x1x16xf32>
      tpu.vector_store %arg9[%c1_64, %c12_65, %c128_66], %80 {strides = array<i32>} : memref<2x32x384xf32, #tpu.memory_space<vmem>>, vector<1x1x16xf32>,
      %c0_67 = arith.constant 0 : index
      %c80 = arith.constant 80 : index
      %81 = vector.load %arg7[%c0_67, %c80] : memref<1x256xf32, #tpu.memory_space<vmem>>, vector<1x16xf32>
      %c0_68 = arith.constant 0 : index
      %c13 = arith.constant 13 : index
      %c128_69 = arith.constant 128 : index
      %82 = vector.load %arg9[%c0_68, %c13, %c128_69] : memref<2x32x384xf32, #tpu.memory_space<vmem>>, vector<1x1x16xf32>
      %83 = vector.shape_cast %82 : vector<1x1x16xf32> to vector<1x16xf32>
      %84 = vector.shape_cast %81 : vector<1x16xf32> to vector<1x1x16xf32>
      tpu.vector_store %arg9[%c0_68, %c13, %c128_69], %84 {strides = array<i32>} : memref<2x32x384xf32, #tpu.memory_space<vmem>>, vector<1x1x16xf32>,
      %c0_70 = arith.constant 0 : index
      %c80_71 = arith.constant 80 : index
      %85 = vector.load %arg8[%c0_70, %c80_71] : memref<1x256xf32, #tpu.memory_space<vmem>>, vector<1x16xf32>
      %c1_72 = arith.constant 1 : index
      %c13_73 = arith.constant 13 : index
      %c128_74 = arith.constant 128 : index
      %86 = vector.load %arg9[%c1_72, %c13_73, %c128_74] : memref<2x32x384xf32, #tpu.memory_space<vmem>>, vector<1x1x16xf32>
      %87 = vector.shape_cast %86 : vector<1x1x16xf32> to vector<1x16xf32>
      %88 = vector.shape_cast %85 : vector<1x16xf32> to vector<1x1x16xf32>
      tpu.vector_store %arg9[%c1_72, %c13_73, %c128_74], %88 {strides = array<i32>} : memref<2x32x384xf32, #tpu.memory_space<vmem>>, vector<1x1x16xf32>,
      %c0_75 = arith.constant 0 : index
      %c96 = arith.constant 96 : index
      %89 = vector.load %arg7[%c0_75, %c96] : memref<1x256xf32, #tpu.memory_space<vmem>>, vector<1x16xf32>
      %c0_76 = arith.constant 0 : index
      %c14 = arith.constant 14 : index
      %c128_77 = arith.constant 128 : index
      %90 = vector.load %arg9[%c0_76, %c14, %c128_77] : memref<2x32x384xf32, #tpu.memory_space<vmem>>, vector<1x1x16xf32>
      %91 = vector.shape_cast %90 : vector<1x1x16xf32> to vector<1x16xf32>
      %92 = vector.shape_cast %89 : vector<1x16xf32> to vector<1x1x16xf32>
      tpu.vector_store %arg9[%c0_76, %c14, %c128_77], %92 {strides = array<i32>} : memref<2x32x384xf32, #tpu.memory_space<vmem>>, vector<1x1x16xf32>,
      %c0_78 = arith.constant 0 : index
      %c96_79 = arith.constant 96 : index
      %93 = vector.load %arg8[%c0_78, %c96_79] : memref<1x256xf32, #tpu.memory_space<vmem>>, vector<1x16xf32>
      %c1_80 = arith.constant 1 : index
      %c14_81 = arith.constant 14 : index
      %c128_82 = arith.constant 128 : index
      %94 = vector.load %arg9[%c1_80, %c14_81, %c128_82] : memref<2x32x384xf32, #tpu.memory_space<vmem>>, vector<1x1x16xf32>
      %95 = vector.shape_cast %94 : vector<1x1x16xf32> to vector<1x16xf32>
      %96 = vector.shape_cast %93 : vector<1x16xf32> to vector<1x1x16xf32>
      tpu.vector_store %arg9[%c1_80, %c14_81, %c128_82], %96 {strides = array<i32>} : memref<2x32x384xf32, #tpu.memory_space<vmem>>, vector<1x1x16xf32>,
      %c0_83 = arith.constant 0 : index
      %c112 = arith.constant 112 : index
      %97 = vector.load %arg7[%c0_83, %c112] : memref<1x256xf32, #tpu.memory_space<vmem>>, vector<1x16xf32>
      %c0_84 = arith.constant 0 : index
      %c15 = arith.constant 15 : index
      %c128_85 = arith.constant 128 : index
      %98 = vector.load %arg9[%c0_84, %c15, %c128_85] : memref<2x32x384xf32, #tpu.memory_space<vmem>>, vector<1x1x16xf32>
      %99 = vector.shape_cast %98 : vector<1x1x16xf32> to vector<1x16xf32>
      %100 = vector.shape_cast %97 : vector<1x16xf32> to vector<1x1x16xf32>
      tpu.vector_store %arg9[%c0_84, %c15, %c128_85], %100 {strides = array<i32>} : memref<2x32x384xf32, #tpu.memory_space<vmem>>, vector<1x1x16xf32>,
      %c0_86 = arith.constant 0 : index
      %c112_87 = arith.constant 112 : index
      %101 = vector.load %arg8[%c0_86, %c112_87] : memref<1x256xf32, #tpu.memory_space<vmem>>, vector<1x16xf32>
      %c1_88 = arith.constant 1 : index
      %c15_89 = arith.constant 15 : index
      %c128_90 = arith.constant 128 : index
      %102 = vector.load %arg9[%c1_88, %c15_89, %c128_90] : memref<2x32x384xf32, #tpu.memory_space<vmem>>, vector<1x1x16xf32>
      %103 = vector.shape_cast %102 : vector<1x1x16xf32> to vector<1x16xf32>
      %104 = vector.shape_cast %101 : vector<1x16xf32> to vector<1x1x16xf32>
      tpu.vector_store %arg9[%c1_88, %c15_89, %c128_90], %104 {strides = array<i32>} : memref<2x32x384xf32, #tpu.memory_space<vmem>>, vector<1x1x16xf32>,
      %c0_91 = arith.constant 0 : index
      %c128_92 = arith.constant 128 : index
      %105 = vector.load %arg7[%c0_91, %c128_92] : memref<1x256xf32, #tpu.memory_space<vmem>>, vector<1x16xf32>
      %c0_93 = arith.constant 0 : index
      %c16_94 = arith.constant 16 : index
      %c128_95 = arith.constant 128 : index
      %106 = vector.load %arg9[%c0_93, %c16_94, %c128_95] : memref<2x32x384xf32, #tpu.memory_space<vmem>>, vector<1x1x16xf32>
      %107 = vector.shape_cast %106 : vector<1x1x16xf32> to vector<1x16xf32>
      %108 = vector.shape_cast %105 : vector<1x16xf32> to vector<1x1x16xf32>
      tpu.vector_store %arg9[%c0_93, %c16_94, %c128_95], %108 {strides = array<i32>} : memref<2x32x384xf32, #tpu.memory_space<vmem>>, vector<1x1x16xf32>,
      %c0_96 = arith.constant 0 : index
      %c128_97 = arith.constant 128 : index
      %109 = vector.load %arg8[%c0_96, %c128_97] : memref<1x256xf32, #tpu.memory_space<vmem>>, vector<1x16xf32>
      %c1_98 = arith.constant 1 : index
      %c16_99 = arith.constant 16 : index
      %c128_100 = arith.constant 128 : index
      %110 = vector.load %arg9[%c1_98, %c16_99, %c128_100] : memref<2x32x384xf32, #tpu.memory_space<vmem>>, vector<1x1x16xf32>
      %111 = vector.shape_cast %110 : vector<1x1x16xf32> to vector<1x16xf32>
      %112 = vector.shape_cast %109 : vector<1x16xf32> to vector<1x1x16xf32>
      tpu.vector_store %arg9[%c1_98, %c16_99, %c128_100], %112 {strides = array<i32>} : memref<2x32x384xf32, #tpu.memory_space<vmem>>, vector<1x1x16xf32>,
      %c0_101 = arith.constant 0 : index
      %c144 = arith.constant 144 : index
      %113 = vector.load %arg7[%c0_101, %c144] : memref<1x256xf32, #tpu.memory_space<vmem>>, vector<1x16xf32>
      %c0_102 = arith.constant 0 : index
      %c17 = arith.constant 17 : index
      %c128_103 = arith.constant 128 : index
      %114 = vector.load %arg9[%c0_102, %c17, %c128_103] : memref<2x32x384xf32, #tpu.memory_space<vmem>>, vector<1x1x16xf32>
      %115 = vector.shape_cast %114 : vector<1x1x16xf32> to vector<1x16xf32>
      %116 = vector.shape_cast %113 : vector<1x16xf32> to vector<1x1x16xf32>
      tpu.vector_store %arg9[%c0_102, %c17, %c128_103], %116 {strides = array<i32>} : memref<2x32x384xf32, #tpu.memory_space<vmem>>, vector<1x1x16xf32>,
      %c0_104 = arith.constant 0 : index
      %c144_105 = arith.constant 144 : index
      %117 = vector.load %arg8[%c0_104, %c144_105] : memref<1x256xf32, #tpu.memory_space<vmem>>, vector<1x16xf32>
      %c1_106 = arith.constant 1 : index
      %c17_107 = arith.constant 17 : index
      %c128_108 = arith.constant 128 : index
      %118 = vector.load %arg9[%c1_106, %c17_107, %c128_108] : memref<2x32x384xf32, #tpu.memory_space<vmem>>, vector<1x1x16xf32>
      %119 = vector.shape_cast %118 : vector<1x1x16xf32> to vector<1x16xf32>
      %120 = vector.shape_cast %117 : vector<1x16xf32> to vector<1x1x16xf32>
      tpu.vector_store %arg9[%c1_106, %c17_107, %c128_108], %120 {strides = array<i32>} : memref<2x32x384xf32, #tpu.memory_space<vmem>>, vector<1x1x16xf32>,
      %c0_109 = arith.constant 0 : index
      %c160 = arith.constant 160 : index
      %121 = vector.load %arg7[%c0_109, %c160] : memref<1x256xf32, #tpu.memory_space<vmem>>, vector<1x16xf32>
      %c0_110 = arith.constant 0 : index
      %c18 = arith.constant 18 : index
      %c128_111 = arith.constant 128 : index
      %122 = vector.load %arg9[%c0_110, %c18, %c128_111] : memref<2x32x384xf32, #tpu.memory_space<vmem>>, vector<1x1x16xf32>
      %123 = vector.shape_cast %122 : vector<1x1x16xf32> to vector<1x16xf32>
      %124 = vector.shape_cast %121 : vector<1x16xf32> to vector<1x1x16xf32>
      tpu.vector_store %arg9[%c0_110, %c18, %c128_111], %124 {strides = array<i32>} : memref<2x32x384xf32, #tpu.memory_space<vmem>>, vector<1x1x16xf32>,
      %c0_112 = arith.constant 0 : index
      %c160_113 = arith.constant 160 : index
      %125 = vector.load %arg8[%c0_112, %c160_113] : memref<1x256xf32, #tpu.memory_space<vmem>>, vector<1x16xf32>
      %c1_114 = arith.constant 1 : index
      %c18_115 = arith.constant 18 : index
      %c128_116 = arith.constant 128 : index
      %126 = vector.load %arg9[%c1_114, %c18_115, %c128_116] : memref<2x32x384xf32, #tpu.memory_space<vmem>>, vector<1x1x16xf32>
      %127 = vector.shape_cast %126 : vector<1x1x16xf32> to vector<1x16xf32>
      %128 = vector.shape_cast %125 : vector<1x16xf32> to vector<1x1x16xf32>
      tpu.vector_store %arg9[%c1_114, %c18_115, %c128_116], %128 {strides = array<i32>} : memref<2x32x384xf32, #tpu.memory_space<vmem>>, vector<1x1x16xf32>,
      %c0_117 = arith.constant 0 : index
      %c176 = arith.constant 176 : index
      %129 = vector.load %arg7[%c0_117, %c176] : memref<1x256xf32, #tpu.memory_space<vmem>>, vector<1x16xf32>
      %c0_118 = arith.constant 0 : index
      %c19 = arith.constant 19 : index
      %c128_119 = arith.constant 128 : index
      %130 = vector.load %arg9[%c0_118, %c19, %c128_119] : memref<2x32x384xf32, #tpu.memory_space<vmem>>, vector<1x1x16xf32>
      %131 = vector.shape_cast %130 : vector<1x1x16xf32> to vector<1x16xf32>
      %132 = vector.shape_cast %129 : vector<1x16xf32> to vector<1x1x16xf32>
      tpu.vector_store %arg9[%c0_118, %c19, %c128_119], %132 {strides = array<i32>} : memref<2x32x384xf32, #tpu.memory_space<vmem>>, vector<1x1x16xf32>,
      %c0_120 = arith.constant 0 : index
      %c176_121 = arith.constant 176 : index
      %133 = vector.load %arg8[%c0_120, %c176_121] : memref<1x256xf32, #tpu.memory_space<vmem>>, vector<1x16xf32>
      %c1_122 = arith.constant 1 : index
      %c19_123 = arith.constant 19 : index
      %c128_124 = arith.constant 128 : index
      %134 = vector.load %arg9[%c1_122, %c19_123, %c128_124] : memref<2x32x384xf32, #tpu.memory_space<vmem>>, vector<1x1x16xf32>
      %135 = vector.shape_cast %134 : vector<1x1x16xf32> to vector<1x16xf32>
      %136 = vector.shape_cast %133 : vector<1x16xf32> to vector<1x1x16xf32>
      tpu.vector_store %arg9[%c1_122, %c19_123, %c128_124], %136 {strides = array<i32>} : memref<2x32x384xf32, #tpu.memory_space<vmem>>, vector<1x1x16xf32>,
      %c0_125 = arith.constant 0 : index
      %c192 = arith.constant 192 : index
      %137 = vector.load %arg7[%c0_125, %c192] : memref<1x256xf32, #tpu.memory_space<vmem>>, vector<1x16xf32>
      %c0_126 = arith.constant 0 : index
      %c20 = arith.constant 20 : index
      %c128_127 = arith.constant 128 : index
      %138 = vector.load %arg9[%c0_126, %c20, %c128_127] : memref<2x32x384xf32, #tpu.memory_space<vmem>>, vector<1x1x16xf32>
      %139 = vector.shape_cast %138 : vector<1x1x16xf32> to vector<1x16xf32>
      %140 = vector.shape_cast %137 : vector<1x16xf32> to vector<1x1x16xf32>
      tpu.vector_store %arg9[%c0_126, %c20, %c128_127], %140 {strides = array<i32>} : memref<2x32x384xf32, #tpu.memory_space<vmem>>, vector<1x1x16xf32>,
      %c0_128 = arith.constant 0 : index
      %c192_129 = arith.constant 192 : index
      %141 = vector.load %arg8[%c0_128, %c192_129] : memref<1x256xf32, #tpu.memory_space<vmem>>, vector<1x16xf32>
      %c1_130 = arith.constant 1 : index
      %c20_131 = arith.constant 20 : index
      %c128_132 = arith.constant 128 : index
      %142 = vector.load %arg9[%c1_130, %c20_131, %c128_132] : memref<2x32x384xf32, #tpu.memory_space<vmem>>, vector<1x1x16xf32>
      %143 = vector.shape_cast %142 : vector<1x1x16xf32> to vector<1x16xf32>
      %144 = vector.shape_cast %141 : vector<1x16xf32> to vector<1x1x16xf32>
      tpu.vector_store %arg9[%c1_130, %c20_131, %c128_132], %144 {strides = array<i32>} : memref<2x32x384xf32, #tpu.memory_space<vmem>>, vector<1x1x16xf32>,
      %c0_133 = arith.constant 0 : index
      %c208 = arith.constant 208 : index
      %145 = vector.load %arg7[%c0_133, %c208] : memref<1x256xf32, #tpu.memory_space<vmem>>, vector<1x16xf32>
      %c0_134 = arith.constant 0 : index
      %c21 = arith.constant 21 : index
      %c128_135 = arith.constant 128 : index
      %146 = vector.load %arg9[%c0_134, %c21, %c128_135] : memref<2x32x384xf32, #tpu.memory_space<vmem>>, vector<1x1x16xf32>
      %147 = vector.shape_cast %146 : vector<1x1x16xf32> to vector<1x16xf32>
      %148 = vector.shape_cast %145 : vector<1x16xf32> to vector<1x1x16xf32>
      tpu.vector_store %arg9[%c0_134, %c21, %c128_135], %148 {strides = array<i32>} : memref<2x32x384xf32, #tpu.memory_space<vmem>>, vector<1x1x16xf32>,
      %c0_136 = arith.constant 0 : index
      %c208_137 = arith.constant 208 : index
      %149 = vector.load %arg8[%c0_136, %c208_137] : memref<1x256xf32, #tpu.memory_space<vmem>>, vector<1x16xf32>
      %c1_138 = arith.constant 1 : index
      %c21_139 = arith.constant 21 : index
      %c128_140 = arith.constant 128 : index
      %150 = vector.load %arg9[%c1_138, %c21_139, %c128_140] : memref<2x32x384xf32, #tpu.memory_space<vmem>>, vector<1x1x16xf32>
      %151 = vector.shape_cast %150 : vector<1x1x16xf32> to vector<1x16xf32>
      %152 = vector.shape_cast %149 : vector<1x16xf32> to vector<1x1x16xf32>
      tpu.vector_store %arg9[%c1_138, %c21_139, %c128_140], %152 {strides = array<i32>} : memref<2x32x384xf32, #tpu.memory_space<vmem>>, vector<1x1x16xf32>,
      %c0_141 = arith.constant 0 : index
      %c224 = arith.constant 224 : index
      %153 = vector.load %arg7[%c0_141, %c224] : memref<1x256xf32, #tpu.memory_space<vmem>>, vector<1x16xf32>
      %c0_142 = arith.constant 0 : index
      %c22 = arith.constant 22 : index
      %c128_143 = arith.constant 128 : index
      %154 = vector.load %arg9[%c0_142, %c22, %c128_143] : memref<2x32x384xf32, #tpu.memory_space<vmem>>, vector<1x1x16xf32>
      %155 = vector.shape_cast %154 : vector<1x1x16xf32> to vector<1x16xf32>
      %156 = vector.shape_cast %153 : vector<1x16xf32> to vector<1x1x16xf32>
      tpu.vector_store %arg9[%c0_142, %c22, %c128_143], %156 {strides = array<i32>} : memref<2x32x384xf32, #tpu.memory_space<vmem>>, vector<1x1x16xf32>,
      %c0_144 = arith.constant 0 : index
      %c224_145 = arith.constant 224 : index
      %157 = vector.load %arg8[%c0_144, %c224_145] : memref<1x256xf32, #tpu.memory_space<vmem>>, vector<1x16xf32>
      %c1_146 = arith.constant 1 : index
      %c22_147 = arith.constant 22 : index
      %c128_148 = arith.constant 128 : index
      %158 = vector.load %arg9[%c1_146, %c22_147, %c128_148] : memref<2x32x384xf32, #tpu.memory_space<vmem>>, vector<1x1x16xf32>
      %159 = vector.shape_cast %158 : vector<1x1x16xf32> to vector<1x16xf32>
      %160 = vector.shape_cast %157 : vector<1x16xf32> to vector<1x1x16xf32>
      tpu.vector_store %arg9[%c1_146, %c22_147, %c128_148], %160 {strides = array<i32>} : memref<2x32x384xf32, #tpu.memory_space<vmem>>, vector<1x1x16xf32>,
      %c0_149 = arith.constant 0 : index
      %c240 = arith.constant 240 : index
      %161 = vector.load %arg7[%c0_149, %c240] : memref<1x256xf32, #tpu.memory_space<vmem>>, vector<1x16xf32>
      %c0_150 = arith.constant 0 : index
      %c23 = arith.constant 23 : index
      %c128_151 = arith.constant 128 : index
      %162 = vector.load %arg9[%c0_150, %c23, %c128_151] : memref<2x32x384xf32, #tpu.memory_space<vmem>>, vector<1x1x16xf32>
      %163 = vector.shape_cast %162 : vector<1x1x16xf32> to vector<1x16xf32>
      %164 = vector.shape_cast %161 : vector<1x16xf32> to vector<1x1x16xf32>
      tpu.vector_store %arg9[%c0_150, %c23, %c128_151], %164 {strides = array<i32>} : memref<2x32x384xf32, #tpu.memory_space<vmem>>, vector<1x1x16xf32>,
      %c0_152 = arith.constant 0 : index
      %c240_153 = arith.constant 240 : index
      %165 = vector.load %arg8[%c0_152, %c240_153] : memref<1x256xf32, #tpu.memory_space<vmem>>, vector<1x16xf32>
      %c1_154 = arith.constant 1 : index
      %c23_155 = arith.constant 23 : index
      %c128_156 = arith.constant 128 : index
      %166 = vector.load %arg9[%c1_154, %c23_155, %c128_156] : memref<2x32x384xf32, #tpu.memory_space<vmem>>, vector<1x1x16xf32>
      %167 = vector.shape_cast %166 : vector<1x1x16xf32> to vector<1x16xf32>
      %168 = vector.shape_cast %165 : vector<1x16xf32> to vector<1x1x16xf32>
      tpu.vector_store %arg9[%c1_154, %c23_155, %c128_156], %168 {strides = array<i32>} : memref<2x32x384xf32, #tpu.memory_space<vmem>>, vector<1x1x16xf32>,
      %cst_157 = arith.constant 0.000000e+00 : f32
      %169 = vector.broadcast %cst_157 : f32 to vector<16x128xf32>
      %c0_158 = arith.constant 0 : index
      %170 = memref.load %arg2[%c0_158] : memref<98xf32, #tpu.memory_space<smem>>
      %c49 = arith.constant 49 : index
      %171 = memref.load %arg2[%c49] : memref<98xf32, #tpu.memory_space<smem>>
      %c0_159 = arith.constant 0 : index
      %c5 = arith.constant 5 : index
      %c125 = arith.constant 125 : index
      %172 = vector.load %arg9[%c0_159, %c5, %c125] : memref<2x32x384xf32, #tpu.memory_space<vmem>>, vector<1x16x128xf32>
      %173 = vector.shape_cast %172 : vector<1x16x128xf32> to vector<16x128xf32>
      %174 = vector.broadcast %170 : f32 to vector<16x128xf32>
      %175 = arith.mulf %174, %173 : vector<16x128xf32>
      %176 = arith.addf %169, %175 : vector<16x128xf32>
      %c1_160 = arith.constant 1 : index
      %c5_161 = arith.constant 5 : index
      %c125_162 = arith.constant 125 : index
      %177 = vector.load %arg9[%c1_160, %c5_161, %c125_162] : memref<2x32x384xf32, #tpu.memory_space<vmem>>, vector<1x16x128xf32>
      %178 = vector.shape_cast %177 : vector<1x16x128xf32> to vector<16x128xf32>
      %179 = vector.broadcast %171 : f32 to vector<16x128xf32>
      %180 = arith.mulf %179, %178 : vector<16x128xf32>
      %181 = arith.addf %176, %180 : vector<16x128xf32>
      %c1_163 = arith.constant 1 : index
      %182 = memref.load %arg2[%c1_163] : memref<98xf32, #tpu.memory_space<smem>>
      %c50 = arith.constant 50 : index
      %183 = memref.load %arg2[%c50] : memref<98xf32, #tpu.memory_space<smem>>
      %c0_164 = arith.constant 0 : index
      %c5_165 = arith.constant 5 : index
      %c126 = arith.constant 126 : index
      %184 = vector.load %arg9[%c0_164, %c5_165, %c126] : memref<2x32x384xf32, #tpu.memory_space<vmem>>, vector<1x16x128xf32>
      %185 = vector.shape_cast %184 : vector<1x16x128xf32> to vector<16x128xf32>
      %186 = vector.broadcast %182 : f32 to vector<16x128xf32>
      %187 = arith.mulf %186, %185 : vector<16x128xf32>
      %188 = arith.addf %181, %187 : vector<16x128xf32>
      %c1_166 = arith.constant 1 : index
      %c5_167 = arith.constant 5 : index
      %c126_168 = arith.constant 126 : index
      %189 = vector.load %arg9[%c1_166, %c5_167, %c126_168] : memref<2x32x384xf32, #tpu.memory_space<vmem>>, vector<1x16x128xf32>
      %190 = vector.shape_cast %189 : vector<1x16x128xf32> to vector<16x128xf32>
      %191 = vector.broadcast %183 : f32 to vector<16x128xf32>
      %192 = arith.mulf %191, %190 : vector<16x128xf32>
      %193 = arith.addf %188, %192 : vector<16x128xf32>
      %c2 = arith.constant 2 : index
      %194 = memref.load %arg2[%c2] : memref<98xf32, #tpu.memory_space<smem>>
      %c51 = arith.constant 51 : index
      %195 = memref.load %arg2[%c51] : memref<98xf32, #tpu.memory_space<smem>>
      %c0_169 = arith.constant 0 : index
      %c5_170 = arith.constant 5 : index
      %c127 = arith.constant 127 : index
      %196 = vector.load %arg9[%c0_169, %c5_170, %c127] : memref<2x32x384xf32, #tpu.memory_space<vmem>>, vector<1x16x128xf32>
      %197 = vector.shape_cast %196 : vector<1x16x128xf32> to vector<16x128xf32>
      %198 = vector.broadcast %194 : f32 to vector<16x128xf32>
      %199 = arith.mulf %198, %197 : vector<16x128xf32>
      %200 = arith.addf %193, %199 : vector<16x128xf32>
      %c1_171 = arith.constant 1 : index
      %c5_172 = arith.constant 5 : index
      %c127_173 = arith.constant 127 : index
      %201 = vector.load %arg9[%c1_171, %c5_172, %c127_173] : memref<2x32x384xf32, #tpu.memory_space<vmem>>, vector<1x16x128xf32>
      %202 = vector.shape_cast %201 : vector<1x16x128xf32> to vector<16x128xf32>
      %203 = vector.broadcast %195 : f32 to vector<16x128xf32>
      %204 = arith.mulf %203, %202 : vector<16x128xf32>
      %205 = arith.addf %200, %204 : vector<16x128xf32>
      %c3 = arith.constant 3 : index
      %206 = memref.load %arg2[%c3] : memref<98xf32, #tpu.memory_space<smem>>
      %c52 = arith.constant 52 : index
      %207 = memref.load %arg2[%c52] : memref<98xf32, #tpu.memory_space<smem>>
      %c0_174 = arith.constant 0 : index
      %c5_175 = arith.constant 5 : index
      %c128_176 = arith.constant 128 : index
      %208 = vector.load %arg9[%c0_174, %c5_175, %c128_176] : memref<2x32x384xf32, #tpu.memory_space<vmem>>, vector<1x16x128xf32>
      %209 = vector.shape_cast %208 : vector<1x16x128xf32> to vector<16x128xf32>
      %210 = vector.broadcast %206 : f32 to vector<16x128xf32>
      %211 = arith.mulf %210, %209 : vector<16x128xf32>
      %212 = arith.addf %205, %211 : vector<16x128xf32>
      %c1_177 = arith.constant 1 : index
      %c5_178 = arith.constant 5 : index
      %c128_179 = arith.constant 128 : index
      %213 = vector.load %arg9[%c1_177, %c5_178, %c128_179] : memref<2x32x384xf32, #tpu.memory_space<vmem>>, vector<1x16x128xf32>
      %214 = vector.shape_cast %213 : vector<1x16x128xf32> to vector<16x128xf32>
      %215 = vector.broadcast %207 : f32 to vector<16x128xf32>
      %216 = arith.mulf %215, %214 : vector<16x128xf32>
      %217 = arith.addf %212, %216 : vector<16x128xf32>
      %c4 = arith.constant 4 : index
      %218 = memref.load %arg2[%c4] : memref<98xf32, #tpu.memory_space<smem>>
      %c53 = arith.constant 53 : index
      %219 = memref.load %arg2[%c53] : memref<98xf32, #tpu.memory_space<smem>>
      %c0_180 = arith.constant 0 : index
      %c5_181 = arith.constant 5 : index
      %c129 = arith.constant 129 : index
      %220 = vector.load %arg9[%c0_180, %c5_181, %c129] : memref<2x32x384xf32, #tpu.memory_space<vmem>>, vector<1x16x128xf32>
      %221 = vector.shape_cast %220 : vector<1x16x128xf32> to vector<16x128xf32>
      %222 = vector.broadcast %218 : f32 to vector<16x128xf32>
      %223 = arith.mulf %222, %221 : vector<16x128xf32>
      %224 = arith.addf %217, %223 : vector<16x128xf32>
      %c1_182 = arith.constant 1 : index
      %c5_183 = arith.constant 5 : index
      %c129_184 = arith.constant 129 : index
      %225 = vector.load %arg9[%c1_182, %c5_183, %c129_184] : memref<2x32x384xf32, #tpu.memory_space<vmem>>, vector<1x16x128xf32>
      %226 = vector.shape_cast %225 : vector<1x16x128xf32> to vector<16x128xf32>
      %227 = vector.broadcast %219 : f32 to vector<16x128xf32>
      %228 = arith.mulf %227, %226 : vector<16x128xf32>
      %229 = arith.addf %224, %228 : vector<16x128xf32>
      %c5_185 = arith.constant 5 : index
      %230 = memref.load %arg2[%c5_185] : memref<98xf32, #tpu.memory_space<smem>>
      %c54 = arith.constant 54 : index
      %231 = memref.load %arg2[%c54] : memref<98xf32, #tpu.memory_space<smem>>
      %c0_186 = arith.constant 0 : index
      %c5_187 = arith.constant 5 : index
      %c130 = arith.constant 130 : index
      %232 = vector.load %arg9[%c0_186, %c5_187, %c130] : memref<2x32x384xf32, #tpu.memory_space<vmem>>, vector<1x16x128xf32>
      %233 = vector.shape_cast %232 : vector<1x16x128xf32> to vector<16x128xf32>
      %234 = vector.broadcast %230 : f32 to vector<16x128xf32>
      %235 = arith.mulf %234, %233 : vector<16x128xf32>
      %236 = arith.addf %229, %235 : vector<16x128xf32>
      %c1_188 = arith.constant 1 : index
      %c5_189 = arith.constant 5 : index
      %c130_190 = arith.constant 130 : index
      %237 = vector.load %arg9[%c1_188, %c5_189, %c130_190] : memref<2x32x384xf32, #tpu.memory_space<vmem>>, vector<1x16x128xf32>
      %238 = vector.shape_cast %237 : vector<1x16x128xf32> to vector<16x128xf32>
      %239 = vector.broadcast %231 : f32 to vector<16x128xf32>
      %240 = arith.mulf %239, %238 : vector<16x128xf32>
      %241 = arith.addf %236, %240 : vector<16x128xf32>
      %c6 = arith.constant 6 : index
      %242 = memref.load %arg2[%c6] : memref<98xf32, #tpu.memory_space<smem>>
      %c55 = arith.constant 55 : index
      %243 = memref.load %arg2[%c55] : memref<98xf32, #tpu.memory_space<smem>>
      %c0_191 = arith.constant 0 : index
      %c5_192 = arith.constant 5 : index
      %c131 = arith.constant 131 : index
      %244 = vector.load %arg9[%c0_191, %c5_192, %c131] : memref<2x32x384xf32, #tpu.memory_space<vmem>>, vector<1x16x128xf32>
      %245 = vector.shape_cast %244 : vector<1x16x128xf32> to vector<16x128xf32>
      %246 = vector.broadcast %242 : f32 to vector<16x128xf32>
      %247 = arith.mulf %246, %245 : vector<16x128xf32>
      %248 = arith.addf %241, %247 : vector<16x128xf32>
      %c1_193 = arith.constant 1 : index
      %c5_194 = arith.constant 5 : index
      %c131_195 = arith.constant 131 : index
      %249 = vector.load %arg9[%c1_193, %c5_194, %c131_195] : memref<2x32x384xf32, #tpu.memory_space<vmem>>, vector<1x16x128xf32>
      %250 = vector.shape_cast %249 : vector<1x16x128xf32> to vector<16x128xf32>
      %251 = vector.broadcast %243 : f32 to vector<16x128xf32>
      %252 = arith.mulf %251, %250 : vector<16x128xf32>
      %253 = arith.addf %248, %252 : vector<16x128xf32>
      %c7 = arith.constant 7 : index
      %254 = memref.load %arg2[%c7] : memref<98xf32, #tpu.memory_space<smem>>
      %c56 = arith.constant 56 : index
      %255 = memref.load %arg2[%c56] : memref<98xf32, #tpu.memory_space<smem>>
      %c0_196 = arith.constant 0 : index
      %c6_197 = arith.constant 6 : index
      %c125_198 = arith.constant 125 : index
      %256 = vector.load %arg9[%c0_196, %c6_197, %c125_198] : memref<2x32x384xf32, #tpu.memory_space<vmem>>, vector<1x16x128xf32>
      %257 = vector.shape_cast %256 : vector<1x16x128xf32> to vector<16x128xf32>
      %258 = vector.broadcast %254 : f32 to vector<16x128xf32>
      %259 = arith.mulf %258, %257 : vector<16x128xf32>
      %260 = arith.addf %253, %259 : vector<16x128xf32>
      %c1_199 = arith.constant 1 : index
      %c6_200 = arith.constant 6 : index
      %c125_201 = arith.constant 125 : index
      %261 = vector.load %arg9[%c1_199, %c6_200, %c125_201] : memref<2x32x384xf32, #tpu.memory_space<vmem>>, vector<1x16x128xf32>
      %262 = vector.shape_cast %261 : vector<1x16x128xf32> to vector<16x128xf32>
      %263 = vector.broadcast %255 : f32 to vector<16x128xf32>
      %264 = arith.mulf %263, %262 : vector<16x128xf32>
      %265 = arith.addf %260, %264 : vector<16x128xf32>
      %c8_202 = arith.constant 8 : index
      %266 = memref.load %arg2[%c8_202] : memref<98xf32, #tpu.memory_space<smem>>
      %c57 = arith.constant 57 : index
      %267 = memref.load %arg2[%c57] : memref<98xf32, #tpu.memory_space<smem>>
      %c0_203 = arith.constant 0 : index
      %c6_204 = arith.constant 6 : index
      %c126_205 = arith.constant 126 : index
      %268 = vector.load %arg9[%c0_203, %c6_204, %c126_205] : memref<2x32x384xf32, #tpu.memory_space<vmem>>, vector<1x16x128xf32>
      %269 = vector.shape_cast %268 : vector<1x16x128xf32> to vector<16x128xf32>
      %270 = vector.broadcast %266 : f32 to vector<16x128xf32>
      %271 = arith.mulf %270, %269 : vector<16x128xf32>
      %272 = arith.addf %265, %271 : vector<16x128xf32>
      %c1_206 = arith.constant 1 : index
      %c6_207 = arith.constant 6 : index
      %c126_208 = arith.constant 126 : index
      %273 = vector.load %arg9[%c1_206, %c6_207, %c126_208] : memref<2x32x384xf32, #tpu.memory_space<vmem>>, vector<1x16x128xf32>
      %274 = vector.shape_cast %273 : vector<1x16x128xf32> to vector<16x128xf32>
      %275 = vector.broadcast %267 : f32 to vector<16x128xf32>
      %276 = arith.mulf %275, %274 : vector<16x128xf32>
      %277 = arith.addf %272, %276 : vector<16x128xf32>
      %c9_209 = arith.constant 9 : index
      %278 = memref.load %arg2[%c9_209] : memref<98xf32, #tpu.memory_space<smem>>
      %c58 = arith.constant 58 : index
      %279 = memref.load %arg2[%c58] : memref<98xf32, #tpu.memory_space<smem>>
      %c0_210 = arith.constant 0 : index
      %c6_211 = arith.constant 6 : index
      %c127_212 = arith.constant 127 : index
      %280 = vector.load %arg9[%c0_210, %c6_211, %c127_212] : memref<2x32x384xf32, #tpu.memory_space<vmem>>, vector<1x16x128xf32>
      %281 = vector.shape_cast %280 : vector<1x16x128xf32> to vector<16x128xf32>
      %282 = vector.broadcast %278 : f32 to vector<16x128xf32>
      %283 = arith.mulf %282, %281 : vector<16x128xf32>
      %284 = arith.addf %277, %283 : vector<16x128xf32>
      %c1_213 = arith.constant 1 : index
      %c6_214 = arith.constant 6 : index
      %c127_215 = arith.constant 127 : index
      %285 = vector.load %arg9[%c1_213, %c6_214, %c127_215] : memref<2x32x384xf32, #tpu.memory_space<vmem>>, vector<1x16x128xf32>
      %286 = vector.shape_cast %285 : vector<1x16x128xf32> to vector<16x128xf32>
      %287 = vector.broadcast %279 : f32 to vector<16x128xf32>
      %288 = arith.mulf %287, %286 : vector<16x128xf32>
      %289 = arith.addf %284, %288 : vector<16x128xf32>
      %c10_216 = arith.constant 10 : index
      %290 = memref.load %arg2[%c10_216] : memref<98xf32, #tpu.memory_space<smem>>
      %c59 = arith.constant 59 : index
      %291 = memref.load %arg2[%c59] : memref<98xf32, #tpu.memory_space<smem>>
      %c0_217 = arith.constant 0 : index
      %c6_218 = arith.constant 6 : index
      %c128_219 = arith.constant 128 : index
      %292 = vector.load %arg9[%c0_217, %c6_218, %c128_219] : memref<2x32x384xf32, #tpu.memory_space<vmem>>, vector<1x16x128xf32>
      %293 = vector.shape_cast %292 : vector<1x16x128xf32> to vector<16x128xf32>
      %294 = vector.broadcast %290 : f32 to vector<16x128xf32>
      %295 = arith.mulf %294, %293 : vector<16x128xf32>
      %296 = arith.addf %289, %295 : vector<16x128xf32>
      %c1_220 = arith.constant 1 : index
      %c6_221 = arith.constant 6 : index
      %c128_222 = arith.constant 128 : index
      %297 = vector.load %arg9[%c1_220, %c6_221, %c128_222] : memref<2x32x384xf32, #tpu.memory_space<vmem>>, vector<1x16x128xf32>
      %298 = vector.shape_cast %297 : vector<1x16x128xf32> to vector<16x128xf32>
      %299 = vector.broadcast %291 : f32 to vector<16x128xf32>
      %300 = arith.mulf %299, %298 : vector<16x128xf32>
      %301 = arith.addf %296, %300 : vector<16x128xf32>
      %c11_223 = arith.constant 11 : index
      %302 = memref.load %arg2[%c11_223] : memref<98xf32, #tpu.memory_space<smem>>
      %c60 = arith.constant 60 : index
      %303 = memref.load %arg2[%c60] : memref<98xf32, #tpu.memory_space<smem>>
      %c0_224 = arith.constant 0 : index
      %c6_225 = arith.constant 6 : index
      %c129_226 = arith.constant 129 : index
      %304 = vector.load %arg9[%c0_224, %c6_225, %c129_226] : memref<2x32x384xf32, #tpu.memory_space<vmem>>, vector<1x16x128xf32>
      %305 = vector.shape_cast %304 : vector<1x16x128xf32> to vector<16x128xf32>
      %306 = vector.broadcast %302 : f32 to vector<16x128xf32>
      %307 = arith.mulf %306, %305 : vector<16x128xf32>
      %308 = arith.addf %301, %307 : vector<16x128xf32>
      %c1_227 = arith.constant 1 : index
      %c6_228 = arith.constant 6 : index
      %c129_229 = arith.constant 129 : index
      %309 = vector.load %arg9[%c1_227, %c6_228, %c129_229] : memref<2x32x384xf32, #tpu.memory_space<vmem>>, vector<1x16x128xf32>
      %310 = vector.shape_cast %309 : vector<1x16x128xf32> to vector<16x128xf32>
      %311 = vector.broadcast %303 : f32 to vector<16x128xf32>
      %312 = arith.mulf %311, %310 : vector<16x128xf32>
      %313 = arith.addf %308, %312 : vector<16x128xf32>
      %c12_230 = arith.constant 12 : index
      %314 = memref.load %arg2[%c12_230] : memref<98xf32, #tpu.memory_space<smem>>
      %c61 = arith.constant 61 : index
      %315 = memref.load %arg2[%c61] : memref<98xf32, #tpu.memory_space<smem>>
      %c0_231 = arith.constant 0 : index
      %c6_232 = arith.constant 6 : index
      %c130_233 = arith.constant 130 : index
      %316 = vector.load %arg9[%c0_231, %c6_232, %c130_233] : memref<2x32x384xf32, #tpu.memory_space<vmem>>, vector<1x16x128xf32>
      %317 = vector.shape_cast %316 : vector<1x16x128xf32> to vector<16x128xf32>
      %318 = vector.broadcast %314 : f32 to vector<16x128xf32>
      %319 = arith.mulf %318, %317 : vector<16x128xf32>
      %320 = arith.addf %313, %319 : vector<16x128xf32>
      %c1_234 = arith.constant 1 : index
      %c6_235 = arith.constant 6 : index
      %c130_236 = arith.constant 130 : index
      %321 = vector.load %arg9[%c1_234, %c6_235, %c130_236] : memref<2x32x384xf32, #tpu.memory_space<vmem>>, vector<1x16x128xf32>
      %322 = vector.shape_cast %321 : vector<1x16x128xf32> to vector<16x128xf32>
      %323 = vector.broadcast %315 : f32 to vector<16x128xf32>
      %324 = arith.mulf %323, %322 : vector<16x128xf32>
      %325 = arith.addf %320, %324 : vector<16x128xf32>
      %c13_237 = arith.constant 13 : index
      %326 = memref.load %arg2[%c13_237] : memref<98xf32, #tpu.memory_space<smem>>
      %c62 = arith.constant 62 : index
      %327 = memref.load %arg2[%c62] : memref<98xf32, #tpu.memory_space<smem>>
      %c0_238 = arith.constant 0 : index
      %c6_239 = arith.constant 6 : index
      %c131_240 = arith.constant 131 : index
      %328 = vector.load %arg9[%c0_238, %c6_239, %c131_240] : memref<2x32x384xf32, #tpu.memory_space<vmem>>, vector<1x16x128xf32>
      %329 = vector.shape_cast %328 : vector<1x16x128xf32> to vector<16x128xf32>
      %330 = vector.broadcast %326 : f32 to vector<16x128xf32>
      %331 = arith.mulf %330, %329 : vector<16x128xf32>
      %332 = arith.addf %325, %331 : vector<16x128xf32>
      %c1_241 = arith.constant 1 : index
      %c6_242 = arith.constant 6 : index
      %c131_243 = arith.constant 131 : index
      %333 = vector.load %arg9[%c1_241, %c6_242, %c131_243] : memref<2x32x384xf32, #tpu.memory_space<vmem>>, vector<1x16x128xf32>
      %334 = vector.shape_cast %333 : vector<1x16x128xf32> to vector<16x128xf32>
      %335 = vector.broadcast %327 : f32 to vector<16x128xf32>
      %336 = arith.mulf %335, %334 : vector<16x128xf32>
      %337 = arith.addf %332, %336 : vector<16x128xf32>
      %c14_244 = arith.constant 14 : index
      %338 = memref.load %arg2[%c14_244] : memref<98xf32, #tpu.memory_space<smem>>
      %c63 = arith.constant 63 : index
      %339 = memref.load %arg2[%c63] : memref<98xf32, #tpu.memory_space<smem>>
      %c0_245 = arith.constant 0 : index
      %c7_246 = arith.constant 7 : index
      %c125_247 = arith.constant 125 : index
      %340 = vector.load %arg9[%c0_245, %c7_246, %c125_247] : memref<2x32x384xf32, #tpu.memory_space<vmem>>, vector<1x16x128xf32>
      %341 = vector.shape_cast %340 : vector<1x16x128xf32> to vector<16x128xf32>
      %342 = vector.broadcast %338 : f32 to vector<16x128xf32>
      %343 = arith.mulf %342, %341 : vector<16x128xf32>
      %344 = arith.addf %337, %343 : vector<16x128xf32>
      %c1_248 = arith.constant 1 : index
      %c7_249 = arith.constant 7 : index
      %c125_250 = arith.constant 125 : index
      %345 = vector.load %arg9[%c1_248, %c7_249, %c125_250] : memref<2x32x384xf32, #tpu.memory_space<vmem>>, vector<1x16x128xf32>
      %346 = vector.shape_cast %345 : vector<1x16x128xf32> to vector<16x128xf32>
      %347 = vector.broadcast %339 : f32 to vector<16x128xf32>
      %348 = arith.mulf %347, %346 : vector<16x128xf32>
      %349 = arith.addf %344, %348 : vector<16x128xf32>
      %c15_251 = arith.constant 15 : index
      %350 = memref.load %arg2[%c15_251] : memref<98xf32, #tpu.memory_space<smem>>
      %c64_252 = arith.constant 64 : index
      %351 = memref.load %arg2[%c64_252] : memref<98xf32, #tpu.memory_space<smem>>
      %c0_253 = arith.constant 0 : index
      %c7_254 = arith.constant 7 : index
      %c126_255 = arith.constant 126 : index
      %352 = vector.load %arg9[%c0_253, %c7_254, %c126_255] : memref<2x32x384xf32, #tpu.memory_space<vmem>>, vector<1x16x128xf32>
      %353 = vector.shape_cast %352 : vector<1x16x128xf32> to vector<16x128xf32>
      %354 = vector.broadcast %350 : f32 to vector<16x128xf32>
      %355 = arith.mulf %354, %353 : vector<16x128xf32>
      %356 = arith.addf %349, %355 : vector<16x128xf32>
      %c1_256 = arith.constant 1 : index
      %c7_257 = arith.constant 7 : index
      %c126_258 = arith.constant 126 : index
      %357 = vector.load %arg9[%c1_256, %c7_257, %c126_258] : memref<2x32x384xf32, #tpu.memory_space<vmem>>, vector<1x16x128xf32>
      %358 = vector.shape_cast %357 : vector<1x16x128xf32> to vector<16x128xf32>
      %359 = vector.broadcast %351 : f32 to vector<16x128xf32>
      %360 = arith.mulf %359, %358 : vector<16x128xf32>
      %361 = arith.addf %356, %360 : vector<16x128xf32>
      %c16_259 = arith.constant 16 : index
      %362 = memref.load %arg2[%c16_259] : memref<98xf32, #tpu.memory_space<smem>>
      %c65 = arith.constant 65 : index
      %363 = memref.load %arg2[%c65] : memref<98xf32, #tpu.memory_space<smem>>
      %c0_260 = arith.constant 0 : index
      %c7_261 = arith.constant 7 : index
      %c127_262 = arith.constant 127 : index
      %364 = vector.load %arg9[%c0_260, %c7_261, %c127_262] : memref<2x32x384xf32, #tpu.memory_space<vmem>>, vector<1x16x128xf32>
      %365 = vector.shape_cast %364 : vector<1x16x128xf32> to vector<16x128xf32>
      %366 = vector.broadcast %362 : f32 to vector<16x128xf32>
      %367 = arith.mulf %366, %365 : vector<16x128xf32>
      %368 = arith.addf %361, %367 : vector<16x128xf32>
      %c1_263 = arith.constant 1 : index
      %c7_264 = arith.constant 7 : index
      %c127_265 = arith.constant 127 : index
      %369 = vector.load %arg9[%c1_263, %c7_264, %c127_265] : memref<2x32x384xf32, #tpu.memory_space<vmem>>, vector<1x16x128xf32>
      %370 = vector.shape_cast %369 : vector<1x16x128xf32> to vector<16x128xf32>
      %371 = vector.broadcast %363 : f32 to vector<16x128xf32>
      %372 = arith.mulf %371, %370 : vector<16x128xf32>
      %373 = arith.addf %368, %372 : vector<16x128xf32>
      %c17_266 = arith.constant 17 : index
      %374 = memref.load %arg2[%c17_266] : memref<98xf32, #tpu.memory_space<smem>>
      %c66 = arith.constant 66 : index
      %375 = memref.load %arg2[%c66] : memref<98xf32, #tpu.memory_space<smem>>
      %c0_267 = arith.constant 0 : index
      %c7_268 = arith.constant 7 : index
      %c128_269 = arith.constant 128 : index
      %376 = vector.load %arg9[%c0_267, %c7_268, %c128_269] : memref<2x32x384xf32, #tpu.memory_space<vmem>>, vector<1x16x128xf32>
      %377 = vector.shape_cast %376 : vector<1x16x128xf32> to vector<16x128xf32>
      %378 = vector.broadcast %374 : f32 to vector<16x128xf32>
      %379 = arith.mulf %378, %377 : vector<16x128xf32>
      %380 = arith.addf %373, %379 : vector<16x128xf32>
      %c1_270 = arith.constant 1 : index
      %c7_271 = arith.constant 7 : index
      %c128_272 = arith.constant 128 : index
      %381 = vector.load %arg9[%c1_270, %c7_271, %c128_272] : memref<2x32x384xf32, #tpu.memory_space<vmem>>, vector<1x16x128xf32>
      %382 = vector.shape_cast %381 : vector<1x16x128xf32> to vector<16x128xf32>
      %383 = vector.broadcast %375 : f32 to vector<16x128xf32>
      %384 = arith.mulf %383, %382 : vector<16x128xf32>
      %385 = arith.addf %380, %384 : vector<16x128xf32>
      %c18_273 = arith.constant 18 : index
      %386 = memref.load %arg2[%c18_273] : memref<98xf32, #tpu.memory_space<smem>>
      %c67 = arith.constant 67 : index
      %387 = memref.load %arg2[%c67] : memref<98xf32, #tpu.memory_space<smem>>
      %c0_274 = arith.constant 0 : index
      %c7_275 = arith.constant 7 : index
      %c129_276 = arith.constant 129 : index
      %388 = vector.load %arg9[%c0_274, %c7_275, %c129_276] : memref<2x32x384xf32, #tpu.memory_space<vmem>>, vector<1x16x128xf32>
      %389 = vector.shape_cast %388 : vector<1x16x128xf32> to vector<16x128xf32>
      %390 = vector.broadcast %386 : f32 to vector<16x128xf32>
      %391 = arith.mulf %390, %389 : vector<16x128xf32>
      %392 = arith.addf %385, %391 : vector<16x128xf32>
      %c1_277 = arith.constant 1 : index
      %c7_278 = arith.constant 7 : index
      %c129_279 = arith.constant 129 : index
      %393 = vector.load %arg9[%c1_277, %c7_278, %c129_279] : memref<2x32x384xf32, #tpu.memory_space<vmem>>, vector<1x16x128xf32>
      %394 = vector.shape_cast %393 : vector<1x16x128xf32> to vector<16x128xf32>
      %395 = vector.broadcast %387 : f32 to vector<16x128xf32>
      %396 = arith.mulf %395, %394 : vector<16x128xf32>
      %397 = arith.addf %392, %396 : vector<16x128xf32>
      %c19_280 = arith.constant 19 : index
      %398 = memref.load %arg2[%c19_280] : memref<98xf32, #tpu.memory_space<smem>>
      %c68 = arith.constant 68 : index
      %399 = memref.load %arg2[%c68] : memref<98xf32, #tpu.memory_space<smem>>
      %c0_281 = arith.constant 0 : index
      %c7_282 = arith.constant 7 : index
      %c130_283 = arith.constant 130 : index
      %400 = vector.load %arg9[%c0_281, %c7_282, %c130_283] : memref<2x32x384xf32, #tpu.memory_space<vmem>>, vector<1x16x128xf32>
      %401 = vector.shape_cast %400 : vector<1x16x128xf32> to vector<16x128xf32>
      %402 = vector.broadcast %398 : f32 to vector<16x128xf32>
      %403 = arith.mulf %402, %401 : vector<16x128xf32>
      %404 = arith.addf %397, %403 : vector<16x128xf32>
      %c1_284 = arith.constant 1 : index
      %c7_285 = arith.constant 7 : index
      %c130_286 = arith.constant 130 : index
      %405 = vector.load %arg9[%c1_284, %c7_285, %c130_286] : memref<2x32x384xf32, #tpu.memory_space<vmem>>, vector<1x16x128xf32>
      %406 = vector.shape_cast %405 : vector<1x16x128xf32> to vector<16x128xf32>
      %407 = vector.broadcast %399 : f32 to vector<16x128xf32>
      %408 = arith.mulf %407, %406 : vector<16x128xf32>
      %409 = arith.addf %404, %408 : vector<16x128xf32>
      %c20_287 = arith.constant 20 : index
      %410 = memref.load %arg2[%c20_287] : memref<98xf32, #tpu.memory_space<smem>>
      %c69 = arith.constant 69 : index
      %411 = memref.load %arg2[%c69] : memref<98xf32, #tpu.memory_space<smem>>
      %c0_288 = arith.constant 0 : index
      %c7_289 = arith.constant 7 : index
      %c131_290 = arith.constant 131 : index
      %412 = vector.load %arg9[%c0_288, %c7_289, %c131_290] : memref<2x32x384xf32, #tpu.memory_space<vmem>>, vector<1x16x128xf32>
      %413 = vector.shape_cast %412 : vector<1x16x128xf32> to vector<16x128xf32>
      %414 = vector.broadcast %410 : f32 to vector<16x128xf32>
      %415 = arith.mulf %414, %413 : vector<16x128xf32>
      %416 = arith.addf %409, %415 : vector<16x128xf32>
      %c1_291 = arith.constant 1 : index
      %c7_292 = arith.constant 7 : index
      %c131_293 = arith.constant 131 : index
      %417 = vector.load %arg9[%c1_291, %c7_292, %c131_293] : memref<2x32x384xf32, #tpu.memory_space<vmem>>, vector<1x16x128xf32>
      %418 = vector.shape_cast %417 : vector<1x16x128xf32> to vector<16x128xf32>
      %419 = vector.broadcast %411 : f32 to vector<16x128xf32>
      %420 = arith.mulf %419, %418 : vector<16x128xf32>
      %421 = arith.addf %416, %420 : vector<16x128xf32>
      %c21_294 = arith.constant 21 : index
      %422 = memref.load %arg2[%c21_294] : memref<98xf32, #tpu.memory_space<smem>>
      %c70 = arith.constant 70 : index
      %423 = memref.load %arg2[%c70] : memref<98xf32, #tpu.memory_space<smem>>
      %c0_295 = arith.constant 0 : index
      %c8_296 = arith.constant 8 : index
      %c125_297 = arith.constant 125 : index
      %424 = vector.load %arg9[%c0_295, %c8_296, %c125_297] : memref<2x32x384xf32, #tpu.memory_space<vmem>>, vector<1x16x128xf32>
      %425 = vector.shape_cast %424 : vector<1x16x128xf32> to vector<16x128xf32>
      %426 = vector.broadcast %422 : f32 to vector<16x128xf32>
      %427 = arith.mulf %426, %425 : vector<16x128xf32>
      %428 = arith.addf %421, %427 : vector<16x128xf32>
      %c1_298 = arith.constant 1 : index
      %c8_299 = arith.constant 8 : index
      %c125_300 = arith.constant 125 : index
      %429 = vector.load %arg9[%c1_298, %c8_299, %c125_300] : memref<2x32x384xf32, #tpu.memory_space<vmem>>, vector<1x16x128xf32>
      %430 = vector.shape_cast %429 : vector<1x16x128xf32> to vector<16x128xf32>
      %431 = vector.broadcast %423 : f32 to vector<16x128xf32>
      %432 = arith.mulf %431, %430 : vector<16x128xf32>
      %433 = arith.addf %428, %432 : vector<16x128xf32>
      %c22_301 = arith.constant 22 : index
      %434 = memref.load %arg2[%c22_301] : memref<98xf32, #tpu.memory_space<smem>>
      %c71 = arith.constant 71 : index
      %435 = memref.load %arg2[%c71] : memref<98xf32, #tpu.memory_space<smem>>
      %c0_302 = arith.constant 0 : index
      %c8_303 = arith.constant 8 : index
      %c126_304 = arith.constant 126 : index
      %436 = vector.load %arg9[%c0_302, %c8_303, %c126_304] : memref<2x32x384xf32, #tpu.memory_space<vmem>>, vector<1x16x128xf32>
      %437 = vector.shape_cast %436 : vector<1x16x128xf32> to vector<16x128xf32>
      %438 = vector.broadcast %434 : f32 to vector<16x128xf32>
      %439 = arith.mulf %438, %437 : vector<16x128xf32>
      %440 = arith.addf %433, %439 : vector<16x128xf32>
      %c1_305 = arith.constant 1 : index
      %c8_306 = arith.constant 8 : index
      %c126_307 = arith.constant 126 : index
      %441 = vector.load %arg9[%c1_305, %c8_306, %c126_307] : memref<2x32x384xf32, #tpu.memory_space<vmem>>, vector<1x16x128xf32>
      %442 = vector.shape_cast %441 : vector<1x16x128xf32> to vector<16x128xf32>
      %443 = vector.broadcast %435 : f32 to vector<16x128xf32>
      %444 = arith.mulf %443, %442 : vector<16x128xf32>
      %445 = arith.addf %440, %444 : vector<16x128xf32>
      %c23_308 = arith.constant 23 : index
      %446 = memref.load %arg2[%c23_308] : memref<98xf32, #tpu.memory_space<smem>>
      %c72 = arith.constant 72 : index
      %447 = memref.load %arg2[%c72] : memref<98xf32, #tpu.memory_space<smem>>
      %c0_309 = arith.constant 0 : index
      %c8_310 = arith.constant 8 : index
      %c127_311 = arith.constant 127 : index
      %448 = vector.load %arg9[%c0_309, %c8_310, %c127_311] : memref<2x32x384xf32, #tpu.memory_space<vmem>>, vector<1x16x128xf32>
      %449 = vector.shape_cast %448 : vector<1x16x128xf32> to vector<16x128xf32>
      %450 = vector.broadcast %446 : f32 to vector<16x128xf32>
      %451 = arith.mulf %450, %449 : vector<16x128xf32>
      %452 = arith.addf %445, %451 : vector<16x128xf32>
      %c1_312 = arith.constant 1 : index
      %c8_313 = arith.constant 8 : index
      %c127_314 = arith.constant 127 : index
      %453 = vector.load %arg9[%c1_312, %c8_313, %c127_314] : memref<2x32x384xf32, #tpu.memory_space<vmem>>, vector<1x16x128xf32>
      %454 = vector.shape_cast %453 : vector<1x16x128xf32> to vector<16x128xf32>
      %455 = vector.broadcast %447 : f32 to vector<16x128xf32>
      %456 = arith.mulf %455, %454 : vector<16x128xf32>
      %457 = arith.addf %452, %456 : vector<16x128xf32>
      %c24 = arith.constant 24 : index
      %458 = memref.load %arg2[%c24] : memref<98xf32, #tpu.memory_space<smem>>
      %c73 = arith.constant 73 : index
      %459 = memref.load %arg2[%c73] : memref<98xf32, #tpu.memory_space<smem>>
      %c0_315 = arith.constant 0 : index
      %c8_316 = arith.constant 8 : index
      %c128_317 = arith.constant 128 : index
      %460 = vector.load %arg9[%c0_315, %c8_316, %c128_317] : memref<2x32x384xf32, #tpu.memory_space<vmem>>, vector<1x16x128xf32>
      %461 = vector.shape_cast %460 : vector<1x16x128xf32> to vector<16x128xf32>
      %462 = vector.broadcast %458 : f32 to vector<16x128xf32>
      %463 = arith.mulf %462, %461 : vector<16x128xf32>
      %464 = arith.addf %457, %463 : vector<16x128xf32>
      %c1_318 = arith.constant 1 : index
      %c8_319 = arith.constant 8 : index
      %c128_320 = arith.constant 128 : index
      %465 = vector.load %arg9[%c1_318, %c8_319, %c128_320] : memref<2x32x384xf32, #tpu.memory_space<vmem>>, vector<1x16x128xf32>
      %466 = vector.shape_cast %465 : vector<1x16x128xf32> to vector<16x128xf32>
      %467 = vector.broadcast %459 : f32 to vector<16x128xf32>
      %468 = arith.mulf %467, %466 : vector<16x128xf32>
      %469 = arith.addf %464, %468 : vector<16x128xf32>
      %c25 = arith.constant 25 : index
      %470 = memref.load %arg2[%c25] : memref<98xf32, #tpu.memory_space<smem>>
      %c74 = arith.constant 74 : index
      %471 = memref.load %arg2[%c74] : memref<98xf32, #tpu.memory_space<smem>>
      %c0_321 = arith.constant 0 : index
      %c8_322 = arith.constant 8 : index
      %c129_323 = arith.constant 129 : index
      %472 = vector.load %arg9[%c0_321, %c8_322, %c129_323] : memref<2x32x384xf32, #tpu.memory_space<vmem>>, vector<1x16x128xf32>
      %473 = vector.shape_cast %472 : vector<1x16x128xf32> to vector<16x128xf32>
      %474 = vector.broadcast %470 : f32 to vector<16x128xf32>
      %475 = arith.mulf %474, %473 : vector<16x128xf32>
      %476 = arith.addf %469, %475 : vector<16x128xf32>
      %c1_324 = arith.constant 1 : index
      %c8_325 = arith.constant 8 : index
      %c129_326 = arith.constant 129 : index
      %477 = vector.load %arg9[%c1_324, %c8_325, %c129_326] : memref<2x32x384xf32, #tpu.memory_space<vmem>>, vector<1x16x128xf32>
      %478 = vector.shape_cast %477 : vector<1x16x128xf32> to vector<16x128xf32>
      %479 = vector.broadcast %471 : f32 to vector<16x128xf32>
      %480 = arith.mulf %479, %478 : vector<16x128xf32>
      %481 = arith.addf %476, %480 : vector<16x128xf32>
      %c26 = arith.constant 26 : index
      %482 = memref.load %arg2[%c26] : memref<98xf32, #tpu.memory_space<smem>>
      %c75 = arith.constant 75 : index
      %483 = memref.load %arg2[%c75] : memref<98xf32, #tpu.memory_space<smem>>
      %c0_327 = arith.constant 0 : index
      %c8_328 = arith.constant 8 : index
      %c130_329 = arith.constant 130 : index
      %484 = vector.load %arg9[%c0_327, %c8_328, %c130_329] : memref<2x32x384xf32, #tpu.memory_space<vmem>>, vector<1x16x128xf32>
      %485 = vector.shape_cast %484 : vector<1x16x128xf32> to vector<16x128xf32>
      %486 = vector.broadcast %482 : f32 to vector<16x128xf32>
      %487 = arith.mulf %486, %485 : vector<16x128xf32>
      %488 = arith.addf %481, %487 : vector<16x128xf32>
      %c1_330 = arith.constant 1 : index
      %c8_331 = arith.constant 8 : index
      %c130_332 = arith.constant 130 : index
      %489 = vector.load %arg9[%c1_330, %c8_331, %c130_332] : memref<2x32x384xf32, #tpu.memory_space<vmem>>, vector<1x16x128xf32>
      %490 = vector.shape_cast %489 : vector<1x16x128xf32> to vector<16x128xf32>
      %491 = vector.broadcast %483 : f32 to vector<16x128xf32>
      %492 = arith.mulf %491, %490 : vector<16x128xf32>
      %493 = arith.addf %488, %492 : vector<16x128xf32>
      %c27 = arith.constant 27 : index
      %494 = memref.load %arg2[%c27] : memref<98xf32, #tpu.memory_space<smem>>
      %c76 = arith.constant 76 : index
      %495 = memref.load %arg2[%c76] : memref<98xf32, #tpu.memory_space<smem>>
      %c0_333 = arith.constant 0 : index
      %c8_334 = arith.constant 8 : index
      %c131_335 = arith.constant 131 : index
      %496 = vector.load %arg9[%c0_333, %c8_334, %c131_335] : memref<2x32x384xf32, #tpu.memory_space<vmem>>, vector<1x16x128xf32>
      %497 = vector.shape_cast %496 : vector<1x16x128xf32> to vector<16x128xf32>
      %498 = vector.broadcast %494 : f32 to vector<16x128xf32>
      %499 = arith.mulf %498, %497 : vector<16x128xf32>
      %500 = arith.addf %493, %499 : vector<16x128xf32>
      %c1_336 = arith.constant 1 : index
      %c8_337 = arith.constant 8 : index
      %c131_338 = arith.constant 131 : index
      %501 = vector.load %arg9[%c1_336, %c8_337, %c131_338] : memref<2x32x384xf32, #tpu.memory_space<vmem>>, vector<1x16x128xf32>
      %502 = vector.shape_cast %501 : vector<1x16x128xf32> to vector<16x128xf32>
      %503 = vector.broadcast %495 : f32 to vector<16x128xf32>
      %504 = arith.mulf %503, %502 : vector<16x128xf32>
      %505 = arith.addf %500, %504 : vector<16x128xf32>
      %c28 = arith.constant 28 : index
      %506 = memref.load %arg2[%c28] : memref<98xf32, #tpu.memory_space<smem>>
      %c77 = arith.constant 77 : index
      %507 = memref.load %arg2[%c77] : memref<98xf32, #tpu.memory_space<smem>>
      %c0_339 = arith.constant 0 : index
      %c9_340 = arith.constant 9 : index
      %c125_341 = arith.constant 125 : index
      %508 = vector.load %arg9[%c0_339, %c9_340, %c125_341] : memref<2x32x384xf32, #tpu.memory_space<vmem>>, vector<1x16x128xf32>
      %509 = vector.shape_cast %508 : vector<1x16x128xf32> to vector<16x128xf32>
      %510 = vector.broadcast %506 : f32 to vector<16x128xf32>
      %511 = arith.mulf %510, %509 : vector<16x128xf32>
      %512 = arith.addf %505, %511 : vector<16x128xf32>
      %c1_342 = arith.constant 1 : index
      %c9_343 = arith.constant 9 : index
      %c125_344 = arith.constant 125 : index
      %513 = vector.load %arg9[%c1_342, %c9_343, %c125_344] : memref<2x32x384xf32, #tpu.memory_space<vmem>>, vector<1x16x128xf32>
      %514 = vector.shape_cast %513 : vector<1x16x128xf32> to vector<16x128xf32>
      %515 = vector.broadcast %507 : f32 to vector<16x128xf32>
      %516 = arith.mulf %515, %514 : vector<16x128xf32>
      %517 = arith.addf %512, %516 : vector<16x128xf32>
      %c29 = arith.constant 29 : index
      %518 = memref.load %arg2[%c29] : memref<98xf32, #tpu.memory_space<smem>>
      %c78 = arith.constant 78 : index
      %519 = memref.load %arg2[%c78] : memref<98xf32, #tpu.memory_space<smem>>
      %c0_345 = arith.constant 0 : index
      %c9_346 = arith.constant 9 : index
      %c126_347 = arith.constant 126 : index
      %520 = vector.load %arg9[%c0_345, %c9_346, %c126_347] : memref<2x32x384xf32, #tpu.memory_space<vmem>>, vector<1x16x128xf32>
      %521 = vector.shape_cast %520 : vector<1x16x128xf32> to vector<16x128xf32>
      %522 = vector.broadcast %518 : f32 to vector<16x128xf32>
      %523 = arith.mulf %522, %521 : vector<16x128xf32>
      %524 = arith.addf %517, %523 : vector<16x128xf32>
      %c1_348 = arith.constant 1 : index
      %c9_349 = arith.constant 9 : index
      %c126_350 = arith.constant 126 : index
      %525 = vector.load %arg9[%c1_348, %c9_349, %c126_350] : memref<2x32x384xf32, #tpu.memory_space<vmem>>, vector<1x16x128xf32>
      %526 = vector.shape_cast %525 : vector<1x16x128xf32> to vector<16x128xf32>
      %527 = vector.broadcast %519 : f32 to vector<16x128xf32>
      %528 = arith.mulf %527, %526 : vector<16x128xf32>
      %529 = arith.addf %524, %528 : vector<16x128xf32>
      %c30 = arith.constant 30 : index
      %530 = memref.load %arg2[%c30] : memref<98xf32, #tpu.memory_space<smem>>
      %c79 = arith.constant 79 : index
      %531 = memref.load %arg2[%c79] : memref<98xf32, #tpu.memory_space<smem>>
      %c0_351 = arith.constant 0 : index
      %c9_352 = arith.constant 9 : index
      %c127_353 = arith.constant 127 : index
      %532 = vector.load %arg9[%c0_351, %c9_352, %c127_353] : memref<2x32x384xf32, #tpu.memory_space<vmem>>, vector<1x16x128xf32>
      %533 = vector.shape_cast %532 : vector<1x16x128xf32> to vector<16x128xf32>
      %534 = vector.broadcast %530 : f32 to vector<16x128xf32>
      %535 = arith.mulf %534, %533 : vector<16x128xf32>
      %536 = arith.addf %529, %535 : vector<16x128xf32>
      %c1_354 = arith.constant 1 : index
      %c9_355 = arith.constant 9 : index
      %c127_356 = arith.constant 127 : index
      %537 = vector.load %arg9[%c1_354, %c9_355, %c127_356] : memref<2x32x384xf32, #tpu.memory_space<vmem>>, vector<1x16x128xf32>
      %538 = vector.shape_cast %537 : vector<1x16x128xf32> to vector<16x128xf32>
      %539 = vector.broadcast %531 : f32 to vector<16x128xf32>
      %540 = arith.mulf %539, %538 : vector<16x128xf32>
      %541 = arith.addf %536, %540 : vector<16x128xf32>
      %c31 = arith.constant 31 : index
      %542 = memref.load %arg2[%c31] : memref<98xf32, #tpu.memory_space<smem>>
      %c80_357 = arith.constant 80 : index
      %543 = memref.load %arg2[%c80_357] : memref<98xf32, #tpu.memory_space<smem>>
      %c0_358 = arith.constant 0 : index
      %c9_359 = arith.constant 9 : index
      %c128_360 = arith.constant 128 : index
      %544 = vector.load %arg9[%c0_358, %c9_359, %c128_360] : memref<2x32x384xf32, #tpu.memory_space<vmem>>, vector<1x16x128xf32>
      %545 = vector.shape_cast %544 : vector<1x16x128xf32> to vector<16x128xf32>
      %546 = vector.broadcast %542 : f32 to vector<16x128xf32>
      %547 = arith.mulf %546, %545 : vector<16x128xf32>
      %548 = arith.addf %541, %547 : vector<16x128xf32>
      %c1_361 = arith.constant 1 : index
      %c9_362 = arith.constant 9 : index
      %c128_363 = arith.constant 128 : index
      %549 = vector.load %arg9[%c1_361, %c9_362, %c128_363] : memref<2x32x384xf32, #tpu.memory_space<vmem>>, vector<1x16x128xf32>
      %550 = vector.shape_cast %549 : vector<1x16x128xf32> to vector<16x128xf32>
      %551 = vector.broadcast %543 : f32 to vector<16x128xf32>
      %552 = arith.mulf %551, %550 : vector<16x128xf32>
      %553 = arith.addf %548, %552 : vector<16x128xf32>
      %c32_364 = arith.constant 32 : index
      %554 = memref.load %arg2[%c32_364] : memref<98xf32, #tpu.memory_space<smem>>
      %c81 = arith.constant 81 : index
      %555 = memref.load %arg2[%c81] : memref<98xf32, #tpu.memory_space<smem>>
      %c0_365 = arith.constant 0 : index
      %c9_366 = arith.constant 9 : index
      %c129_367 = arith.constant 129 : index
      %556 = vector.load %arg9[%c0_365, %c9_366, %c129_367] : memref<2x32x384xf32, #tpu.memory_space<vmem>>, vector<1x16x128xf32>
      %557 = vector.shape_cast %556 : vector<1x16x128xf32> to vector<16x128xf32>
      %558 = vector.broadcast %554 : f32 to vector<16x128xf32>
      %559 = arith.mulf %558, %557 : vector<16x128xf32>
      %560 = arith.addf %553, %559 : vector<16x128xf32>
      %c1_368 = arith.constant 1 : index
      %c9_369 = arith.constant 9 : index
      %c129_370 = arith.constant 129 : index
      %561 = vector.load %arg9[%c1_368, %c9_369, %c129_370] : memref<2x32x384xf32, #tpu.memory_space<vmem>>, vector<1x16x128xf32>
      %562 = vector.shape_cast %561 : vector<1x16x128xf32> to vector<16x128xf32>
      %563 = vector.broadcast %555 : f32 to vector<16x128xf32>
      %564 = arith.mulf %563, %562 : vector<16x128xf32>
      %565 = arith.addf %560, %564 : vector<16x128xf32>
      %c33 = arith.constant 33 : index
      %566 = memref.load %arg2[%c33] : memref<98xf32, #tpu.memory_space<smem>>
      %c82 = arith.constant 82 : index
      %567 = memref.load %arg2[%c82] : memref<98xf32, #tpu.memory_space<smem>>
      %c0_371 = arith.constant 0 : index
      %c9_372 = arith.constant 9 : index
      %c130_373 = arith.constant 130 : index
      %568 = vector.load %arg9[%c0_371, %c9_372, %c130_373] : memref<2x32x384xf32, #tpu.memory_space<vmem>>, vector<1x16x128xf32>
      %569 = vector.shape_cast %568 : vector<1x16x128xf32> to vector<16x128xf32>
      %570 = vector.broadcast %566 : f32 to vector<16x128xf32>
      %571 = arith.mulf %570, %569 : vector<16x128xf32>
      %572 = arith.addf %565, %571 : vector<16x128xf32>
      %c1_374 = arith.constant 1 : index
      %c9_375 = arith.constant 9 : index
      %c130_376 = arith.constant 130 : index
      %573 = vector.load %arg9[%c1_374, %c9_375, %c130_376] : memref<2x32x384xf32, #tpu.memory_space<vmem>>, vector<1x16x128xf32>
      %574 = vector.shape_cast %573 : vector<1x16x128xf32> to vector<16x128xf32>
      %575 = vector.broadcast %567 : f32 to vector<16x128xf32>
      %576 = arith.mulf %575, %574 : vector<16x128xf32>
      %577 = arith.addf %572, %576 : vector<16x128xf32>
      %c34 = arith.constant 34 : index
      %578 = memref.load %arg2[%c34] : memref<98xf32, #tpu.memory_space<smem>>
      %c83 = arith.constant 83 : index
      %579 = memref.load %arg2[%c83] : memref<98xf32, #tpu.memory_space<smem>>
      %c0_377 = arith.constant 0 : index
      %c9_378 = arith.constant 9 : index
      %c131_379 = arith.constant 131 : index
      %580 = vector.load %arg9[%c0_377, %c9_378, %c131_379] : memref<2x32x384xf32, #tpu.memory_space<vmem>>, vector<1x16x128xf32>
      %581 = vector.shape_cast %580 : vector<1x16x128xf32> to vector<16x128xf32>
      %582 = vector.broadcast %578 : f32 to vector<16x128xf32>
      %583 = arith.mulf %582, %581 : vector<16x128xf32>
      %584 = arith.addf %577, %583 : vector<16x128xf32>
      %c1_380 = arith.constant 1 : index
      %c9_381 = arith.constant 9 : index
      %c131_382 = arith.constant 131 : index
      %585 = vector.load %arg9[%c1_380, %c9_381, %c131_382] : memref<2x32x384xf32, #tpu.memory_space<vmem>>, vector<1x16x128xf32>
      %586 = vector.shape_cast %585 : vector<1x16x128xf32> to vector<16x128xf32>
      %587 = vector.broadcast %579 : f32 to vector<16x128xf32>
      %588 = arith.mulf %587, %586 : vector<16x128xf32>
      %589 = arith.addf %584, %588 : vector<16x128xf32>
      %c35 = arith.constant 35 : index
      %590 = memref.load %arg2[%c35] : memref<98xf32, #tpu.memory_space<smem>>
      %c84 = arith.constant 84 : index
      %591 = memref.load %arg2[%c84] : memref<98xf32, #tpu.memory_space<smem>>
      %c0_383 = arith.constant 0 : index
      %c10_384 = arith.constant 10 : index
      %c125_385 = arith.constant 125 : index
      %592 = vector.load %arg9[%c0_383, %c10_384, %c125_385] : memref<2x32x384xf32, #tpu.memory_space<vmem>>, vector<1x16x128xf32>
      %593 = vector.shape_cast %592 : vector<1x16x128xf32> to vector<16x128xf32>
      %594 = vector.broadcast %590 : f32 to vector<16x128xf32>
      %595 = arith.mulf %594, %593 : vector<16x128xf32>
      %596 = arith.addf %589, %595 : vector<16x128xf32>
      %c1_386 = arith.constant 1 : index
      %c10_387 = arith.constant 10 : index
      %c125_388 = arith.constant 125 : index
      %597 = vector.load %arg9[%c1_386, %c10_387, %c125_388] : memref<2x32x384xf32, #tpu.memory_space<vmem>>, vector<1x16x128xf32>
      %598 = vector.shape_cast %597 : vector<1x16x128xf32> to vector<16x128xf32>
      %599 = vector.broadcast %591 : f32 to vector<16x128xf32>
      %600 = arith.mulf %599, %598 : vector<16x128xf32>
      %601 = arith.addf %596, %600 : vector<16x128xf32>
      %c36 = arith.constant 36 : index
      %602 = memref.load %arg2[%c36] : memref<98xf32, #tpu.memory_space<smem>>
      %c85 = arith.constant 85 : index
      %603 = memref.load %arg2[%c85] : memref<98xf32, #tpu.memory_space<smem>>
      %c0_389 = arith.constant 0 : index
      %c10_390 = arith.constant 10 : index
      %c126_391 = arith.constant 126 : index
      %604 = vector.load %arg9[%c0_389, %c10_390, %c126_391] : memref<2x32x384xf32, #tpu.memory_space<vmem>>, vector<1x16x128xf32>
      %605 = vector.shape_cast %604 : vector<1x16x128xf32> to vector<16x128xf32>
      %606 = vector.broadcast %602 : f32 to vector<16x128xf32>
      %607 = arith.mulf %606, %605 : vector<16x128xf32>
      %608 = arith.addf %601, %607 : vector<16x128xf32>
      %c1_392 = arith.constant 1 : index
      %c10_393 = arith.constant 10 : index
      %c126_394 = arith.constant 126 : index
      %609 = vector.load %arg9[%c1_392, %c10_393, %c126_394] : memref<2x32x384xf32, #tpu.memory_space<vmem>>, vector<1x16x128xf32>
      %610 = vector.shape_cast %609 : vector<1x16x128xf32> to vector<16x128xf32>
      %611 = vector.broadcast %603 : f32 to vector<16x128xf32>
      %612 = arith.mulf %611, %610 : vector<16x128xf32>
      %613 = arith.addf %608, %612 : vector<16x128xf32>
      %c37 = arith.constant 37 : index
      %614 = memref.load %arg2[%c37] : memref<98xf32, #tpu.memory_space<smem>>
      %c86 = arith.constant 86 : index
      %615 = memref.load %arg2[%c86] : memref<98xf32, #tpu.memory_space<smem>>
      %c0_395 = arith.constant 0 : index
      %c10_396 = arith.constant 10 : index
      %c127_397 = arith.constant 127 : index
      %616 = vector.load %arg9[%c0_395, %c10_396, %c127_397] : memref<2x32x384xf32, #tpu.memory_space<vmem>>, vector<1x16x128xf32>
      %617 = vector.shape_cast %616 : vector<1x16x128xf32> to vector<16x128xf32>
      %618 = vector.broadcast %614 : f32 to vector<16x128xf32>
      %619 = arith.mulf %618, %617 : vector<16x128xf32>
      %620 = arith.addf %613, %619 : vector<16x128xf32>
      %c1_398 = arith.constant 1 : index
      %c10_399 = arith.constant 10 : index
      %c127_400 = arith.constant 127 : index
      %621 = vector.load %arg9[%c1_398, %c10_399, %c127_400] : memref<2x32x384xf32, #tpu.memory_space<vmem>>, vector<1x16x128xf32>
      %622 = vector.shape_cast %621 : vector<1x16x128xf32> to vector<16x128xf32>
      %623 = vector.broadcast %615 : f32 to vector<16x128xf32>
      %624 = arith.mulf %623, %622 : vector<16x128xf32>
      %625 = arith.addf %620, %624 : vector<16x128xf32>
      %c38 = arith.constant 38 : index
      %626 = memref.load %arg2[%c38] : memref<98xf32, #tpu.memory_space<smem>>
      %c87 = arith.constant 87 : index
      %627 = memref.load %arg2[%c87] : memref<98xf32, #tpu.memory_space<smem>>
      %c0_401 = arith.constant 0 : index
      %c10_402 = arith.constant 10 : index
      %c128_403 = arith.constant 128 : index
      %628 = vector.load %arg9[%c0_401, %c10_402, %c128_403] : memref<2x32x384xf32, #tpu.memory_space<vmem>>, vector<1x16x128xf32>
      %629 = vector.shape_cast %628 : vector<1x16x128xf32> to vector<16x128xf32>
      %630 = vector.broadcast %626 : f32 to vector<16x128xf32>
      %631 = arith.mulf %630, %629 : vector<16x128xf32>
      %632 = arith.addf %625, %631 : vector<16x128xf32>
      %c1_404 = arith.constant 1 : index
      %c10_405 = arith.constant 10 : index
      %c128_406 = arith.constant 128 : index
      %633 = vector.load %arg9[%c1_404, %c10_405, %c128_406] : memref<2x32x384xf32, #tpu.memory_space<vmem>>, vector<1x16x128xf32>
      %634 = vector.shape_cast %633 : vector<1x16x128xf32> to vector<16x128xf32>
      %635 = vector.broadcast %627 : f32 to vector<16x128xf32>
      %636 = arith.mulf %635, %634 : vector<16x128xf32>
      %637 = arith.addf %632, %636 : vector<16x128xf32>
      %c39 = arith.constant 39 : index
      %638 = memref.load %arg2[%c39] : memref<98xf32, #tpu.memory_space<smem>>
      %c88 = arith.constant 88 : index
      %639 = memref.load %arg2[%c88] : memref<98xf32, #tpu.memory_space<smem>>
      %c0_407 = arith.constant 0 : index
      %c10_408 = arith.constant 10 : index
      %c129_409 = arith.constant 129 : index
      %640 = vector.load %arg9[%c0_407, %c10_408, %c129_409] : memref<2x32x384xf32, #tpu.memory_space<vmem>>, vector<1x16x128xf32>
      %641 = vector.shape_cast %640 : vector<1x16x128xf32> to vector<16x128xf32>
      %642 = vector.broadcast %638 : f32 to vector<16x128xf32>
      %643 = arith.mulf %642, %641 : vector<16x128xf32>
      %644 = arith.addf %637, %643 : vector<16x128xf32>
      %c1_410 = arith.constant 1 : index
      %c10_411 = arith.constant 10 : index
      %c129_412 = arith.constant 129 : index
      %645 = vector.load %arg9[%c1_410, %c10_411, %c129_412] : memref<2x32x384xf32, #tpu.memory_space<vmem>>, vector<1x16x128xf32>
      %646 = vector.shape_cast %645 : vector<1x16x128xf32> to vector<16x128xf32>
      %647 = vector.broadcast %639 : f32 to vector<16x128xf32>
      %648 = arith.mulf %647, %646 : vector<16x128xf32>
      %649 = arith.addf %644, %648 : vector<16x128xf32>
      %c40 = arith.constant 40 : index
      %650 = memref.load %arg2[%c40] : memref<98xf32, #tpu.memory_space<smem>>
      %c89 = arith.constant 89 : index
      %651 = memref.load %arg2[%c89] : memref<98xf32, #tpu.memory_space<smem>>
      %c0_413 = arith.constant 0 : index
      %c10_414 = arith.constant 10 : index
      %c130_415 = arith.constant 130 : index
      %652 = vector.load %arg9[%c0_413, %c10_414, %c130_415] : memref<2x32x384xf32, #tpu.memory_space<vmem>>, vector<1x16x128xf32>
      %653 = vector.shape_cast %652 : vector<1x16x128xf32> to vector<16x128xf32>
      %654 = vector.broadcast %650 : f32 to vector<16x128xf32>
      %655 = arith.mulf %654, %653 : vector<16x128xf32>
      %656 = arith.addf %649, %655 : vector<16x128xf32>
      %c1_416 = arith.constant 1 : index
      %c10_417 = arith.constant 10 : index
      %c130_418 = arith.constant 130 : index
      %657 = vector.load %arg9[%c1_416, %c10_417, %c130_418] : memref<2x32x384xf32, #tpu.memory_space<vmem>>, vector<1x16x128xf32>
      %658 = vector.shape_cast %657 : vector<1x16x128xf32> to vector<16x128xf32>
      %659 = vector.broadcast %651 : f32 to vector<16x128xf32>
      %660 = arith.mulf %659, %658 : vector<16x128xf32>
      %661 = arith.addf %656, %660 : vector<16x128xf32>
      %c41 = arith.constant 41 : index
      %662 = memref.load %arg2[%c41] : memref<98xf32, #tpu.memory_space<smem>>
      %c90 = arith.constant 90 : index
      %663 = memref.load %arg2[%c90] : memref<98xf32, #tpu.memory_space<smem>>
      %c0_419 = arith.constant 0 : index
      %c10_420 = arith.constant 10 : index
      %c131_421 = arith.constant 131 : index
      %664 = vector.load %arg9[%c0_419, %c10_420, %c131_421] : memref<2x32x384xf32, #tpu.memory_space<vmem>>, vector<1x16x128xf32>
      %665 = vector.shape_cast %664 : vector<1x16x128xf32> to vector<16x128xf32>
      %666 = vector.broadcast %662 : f32 to vector<16x128xf32>
      %667 = arith.mulf %666, %665 : vector<16x128xf32>
      %668 = arith.addf %661, %667 : vector<16x128xf32>
      %c1_422 = arith.constant 1 : index
      %c10_423 = arith.constant 10 : index
      %c131_424 = arith.constant 131 : index
      %669 = vector.load %arg9[%c1_422, %c10_423, %c131_424] : memref<2x32x384xf32, #tpu.memory_space<vmem>>, vector<1x16x128xf32>
      %670 = vector.shape_cast %669 : vector<1x16x128xf32> to vector<16x128xf32>
      %671 = vector.broadcast %663 : f32 to vector<16x128xf32>
      %672 = arith.mulf %671, %670 : vector<16x128xf32>
      %673 = arith.addf %668, %672 : vector<16x128xf32>
      %c42 = arith.constant 42 : index
      %674 = memref.load %arg2[%c42] : memref<98xf32, #tpu.memory_space<smem>>
      %c91 = arith.constant 91 : index
      %675 = memref.load %arg2[%c91] : memref<98xf32, #tpu.memory_space<smem>>
      %c0_425 = arith.constant 0 : index
      %c11_426 = arith.constant 11 : index
      %c125_427 = arith.constant 125 : index
      %676 = vector.load %arg9[%c0_425, %c11_426, %c125_427] : memref<2x32x384xf32, #tpu.memory_space<vmem>>, vector<1x16x128xf32>
      %677 = vector.shape_cast %676 : vector<1x16x128xf32> to vector<16x128xf32>
      %678 = vector.broadcast %674 : f32 to vector<16x128xf32>
      %679 = arith.mulf %678, %677 : vector<16x128xf32>
      %680 = arith.addf %673, %679 : vector<16x128xf32>
      %c1_428 = arith.constant 1 : index
      %c11_429 = arith.constant 11 : index
      %c125_430 = arith.constant 125 : index
      %681 = vector.load %arg9[%c1_428, %c11_429, %c125_430] : memref<2x32x384xf32, #tpu.memory_space<vmem>>, vector<1x16x128xf32>
      %682 = vector.shape_cast %681 : vector<1x16x128xf32> to vector<16x128xf32>
      %683 = vector.broadcast %675 : f32 to vector<16x128xf32>
      %684 = arith.mulf %683, %682 : vector<16x128xf32>
      %685 = arith.addf %680, %684 : vector<16x128xf32>
      %c43 = arith.constant 43 : index
      %686 = memref.load %arg2[%c43] : memref<98xf32, #tpu.memory_space<smem>>
      %c92 = arith.constant 92 : index
      %687 = memref.load %arg2[%c92] : memref<98xf32, #tpu.memory_space<smem>>
      %c0_431 = arith.constant 0 : index
      %c11_432 = arith.constant 11 : index
      %c126_433 = arith.constant 126 : index
      %688 = vector.load %arg9[%c0_431, %c11_432, %c126_433] : memref<2x32x384xf32, #tpu.memory_space<vmem>>, vector<1x16x128xf32>
      %689 = vector.shape_cast %688 : vector<1x16x128xf32> to vector<16x128xf32>
      %690 = vector.broadcast %686 : f32 to vector<16x128xf32>
      %691 = arith.mulf %690, %689 : vector<16x128xf32>
      %692 = arith.addf %685, %691 : vector<16x128xf32>
      %c1_434 = arith.constant 1 : index
      %c11_435 = arith.constant 11 : index
      %c126_436 = arith.constant 126 : index
      %693 = vector.load %arg9[%c1_434, %c11_435, %c126_436] : memref<2x32x384xf32, #tpu.memory_space<vmem>>, vector<1x16x128xf32>
      %694 = vector.shape_cast %693 : vector<1x16x128xf32> to vector<16x128xf32>
      %695 = vector.broadcast %687 : f32 to vector<16x128xf32>
      %696 = arith.mulf %695, %694 : vector<16x128xf32>
      %697 = arith.addf %692, %696 : vector<16x128xf32>
      %c44 = arith.constant 44 : index
      %698 = memref.load %arg2[%c44] : memref<98xf32, #tpu.memory_space<smem>>
      %c93 = arith.constant 93 : index
      %699 = memref.load %arg2[%c93] : memref<98xf32, #tpu.memory_space<smem>>
      %c0_437 = arith.constant 0 : index
      %c11_438 = arith.constant 11 : index
      %c127_439 = arith.constant 127 : index
      %700 = vector.load %arg9[%c0_437, %c11_438, %c127_439] : memref<2x32x384xf32, #tpu.memory_space<vmem>>, vector<1x16x128xf32>
      %701 = vector.shape_cast %700 : vector<1x16x128xf32> to vector<16x128xf32>
      %702 = vector.broadcast %698 : f32 to vector<16x128xf32>
      %703 = arith.mulf %702, %701 : vector<16x128xf32>
      %704 = arith.addf %697, %703 : vector<16x128xf32>
      %c1_440 = arith.constant 1 : index
      %c11_441 = arith.constant 11 : index
      %c127_442 = arith.constant 127 : index
      %705 = vector.load %arg9[%c1_440, %c11_441, %c127_442] : memref<2x32x384xf32, #tpu.memory_space<vmem>>, vector<1x16x128xf32>
      %706 = vector.shape_cast %705 : vector<1x16x128xf32> to vector<16x128xf32>
      %707 = vector.broadcast %699 : f32 to vector<16x128xf32>
      %708 = arith.mulf %707, %706 : vector<16x128xf32>
      %709 = arith.addf %704, %708 : vector<16x128xf32>
      %c45 = arith.constant 45 : index
      %710 = memref.load %arg2[%c45] : memref<98xf32, #tpu.memory_space<smem>>
      %c94 = arith.constant 94 : index
      %711 = memref.load %arg2[%c94] : memref<98xf32, #tpu.memory_space<smem>>
      %c0_443 = arith.constant 0 : index
      %c11_444 = arith.constant 11 : index
      %c128_445 = arith.constant 128 : index
      %712 = vector.load %arg9[%c0_443, %c11_444, %c128_445] : memref<2x32x384xf32, #tpu.memory_space<vmem>>, vector<1x16x128xf32>
      %713 = vector.shape_cast %712 : vector<1x16x128xf32> to vector<16x128xf32>
      %714 = vector.broadcast %710 : f32 to vector<16x128xf32>
      %715 = arith.mulf %714, %713 : vector<16x128xf32>
      %716 = arith.addf %709, %715 : vector<16x128xf32>
      %c1_446 = arith.constant 1 : index
      %c11_447 = arith.constant 11 : index
      %c128_448 = arith.constant 128 : index
      %717 = vector.load %arg9[%c1_446, %c11_447, %c128_448] : memref<2x32x384xf32, #tpu.memory_space<vmem>>, vector<1x16x128xf32>
      %718 = vector.shape_cast %717 : vector<1x16x128xf32> to vector<16x128xf32>
      %719 = vector.broadcast %711 : f32 to vector<16x128xf32>
      %720 = arith.mulf %719, %718 : vector<16x128xf32>
      %721 = arith.addf %716, %720 : vector<16x128xf32>
      %c46 = arith.constant 46 : index
      %722 = memref.load %arg2[%c46] : memref<98xf32, #tpu.memory_space<smem>>
      %c95 = arith.constant 95 : index
      %723 = memref.load %arg2[%c95] : memref<98xf32, #tpu.memory_space<smem>>
      %c0_449 = arith.constant 0 : index
      %c11_450 = arith.constant 11 : index
      %c129_451 = arith.constant 129 : index
      %724 = vector.load %arg9[%c0_449, %c11_450, %c129_451] : memref<2x32x384xf32, #tpu.memory_space<vmem>>, vector<1x16x128xf32>
      %725 = vector.shape_cast %724 : vector<1x16x128xf32> to vector<16x128xf32>
      %726 = vector.broadcast %722 : f32 to vector<16x128xf32>
      %727 = arith.mulf %726, %725 : vector<16x128xf32>
      %728 = arith.addf %721, %727 : vector<16x128xf32>
      %c1_452 = arith.constant 1 : index
      %c11_453 = arith.constant 11 : index
      %c129_454 = arith.constant 129 : index
      %729 = vector.load %arg9[%c1_452, %c11_453, %c129_454] : memref<2x32x384xf32, #tpu.memory_space<vmem>>, vector<1x16x128xf32>
      %730 = vector.shape_cast %729 : vector<1x16x128xf32> to vector<16x128xf32>
      %731 = vector.broadcast %723 : f32 to vector<16x128xf32>
      %732 = arith.mulf %731, %730 : vector<16x128xf32>
      %733 = arith.addf %728, %732 : vector<16x128xf32>
      %c47 = arith.constant 47 : index
      %734 = memref.load %arg2[%c47] : memref<98xf32, #tpu.memory_space<smem>>
      %c96_455 = arith.constant 96 : index
      %735 = memref.load %arg2[%c96_455] : memref<98xf32, #tpu.memory_space<smem>>
      %c0_456 = arith.constant 0 : index
      %c11_457 = arith.constant 11 : index
      %c130_458 = arith.constant 130 : index
      %736 = vector.load %arg9[%c0_456, %c11_457, %c130_458] : memref<2x32x384xf32, #tpu.memory_space<vmem>>, vector<1x16x128xf32>
      %737 = vector.shape_cast %736 : vector<1x16x128xf32> to vector<16x128xf32>
      %738 = vector.broadcast %734 : f32 to vector<16x128xf32>
      %739 = arith.mulf %738, %737 : vector<16x128xf32>
      %740 = arith.addf %733, %739 : vector<16x128xf32>
      %c1_459 = arith.constant 1 : index
      %c11_460 = arith.constant 11 : index
      %c130_461 = arith.constant 130 : index
      %741 = vector.load %arg9[%c1_459, %c11_460, %c130_461] : memref<2x32x384xf32, #tpu.memory_space<vmem>>, vector<1x16x128xf32>
      %742 = vector.shape_cast %741 : vector<1x16x128xf32> to vector<16x128xf32>
      %743 = vector.broadcast %735 : f32 to vector<16x128xf32>
      %744 = arith.mulf %743, %742 : vector<16x128xf32>
      %745 = arith.addf %740, %744 : vector<16x128xf32>
      %c48_462 = arith.constant 48 : index
      %746 = memref.load %arg2[%c48_462] : memref<98xf32, #tpu.memory_space<smem>>
      %c97 = arith.constant 97 : index
      %747 = memref.load %arg2[%c97] : memref<98xf32, #tpu.memory_space<smem>>
      %c0_463 = arith.constant 0 : index
      %c11_464 = arith.constant 11 : index
      %c131_465 = arith.constant 131 : index
      %748 = vector.load %arg9[%c0_463, %c11_464, %c131_465] : memref<2x32x384xf32, #tpu.memory_space<vmem>>, vector<1x16x128xf32>
      %749 = vector.shape_cast %748 : vector<1x16x128xf32> to vector<16x128xf32>
      %750 = vector.broadcast %746 : f32 to vector<16x128xf32>
      %751 = arith.mulf %750, %749 : vector<16x128xf32>
      %752 = arith.addf %745, %751 : vector<16x128xf32>
      %c1_466 = arith.constant 1 : index
      %c11_467 = arith.constant 11 : index
      %c131_468 = arith.constant 131 : index
      %753 = vector.load %arg9[%c1_466, %c11_467, %c131_468] : memref<2x32x384xf32, #tpu.memory_space<vmem>>, vector<1x16x128xf32>
      %754 = vector.shape_cast %753 : vector<1x16x128xf32> to vector<16x128xf32>
      %755 = vector.broadcast %747 : f32 to vector<16x128xf32>
      %756 = arith.mulf %755, %754 : vector<16x128xf32>
      %757 = arith.addf %752, %756 : vector<16x128xf32>
      %758 = arith.negf %757 : vector<16x128xf32>
      %759 = math.exp %758 : vector<16x128xf32>
      %cst_469 = arith.constant 1.000000e+00 : f32
      %760 = vector.broadcast %cst_469 : f32 to vector<16x128xf32>
      %761 = arith.addf %760, %759 : vector<16x128xf32>
      %762 = arith.divf %760, %761 : vector<16x128xf32>
      %763 = arith.index_cast %c0_i32_19 : i32 to index
      %c0_470 = arith.constant 0 : index
      %c0_471 = arith.constant 0 : index
      %c0_472 = arith.constant 0 : index
      %764 = vector.load %arg4[%763, %c0_470, %c0_471, %c0_472] : memref<1x1x16x128xf32, #tpu.memory_space<vmem>>, vector<1x1x16x128xf32>
      %765 = vector.shape_cast %764 : vector<1x1x16x128xf32> to vector<16x128xf32>
      %766 = vector.shape_cast %762 : vector<16x128xf32> to vector<1x1x16x128xf32>
      tpu.vector_store %arg4[%763, %c0_470, %c0_471, %c0_472], %766 {strides = array<i32>} : memref<1x1x16x128xf32, #tpu.memory_space<vmem>>, vector<1x1x16x128xf32>,
      %c1_i32_473 = arith.constant 1 : i32
    } else {
    }
    return
  }
  func.func @transform_0(%arg0: i32, %arg1: i32) -> i32 {
    %c0_i32 = arith.constant 0 : i32
    %c0_i32_0 = arith.constant 0 : i32
    return %c0_i32 : i32
  }
  func.func @transform_1(%arg0: i32, %arg1: i32) -> (i32, i32, i32) {
    %c0_i32 = arith.constant 0 : i32
    %c0_i32_0 = arith.constant 0 : i32
    return %arg0, %arg1, %c0_i32 : i32, i32, i32
  }
  func.func @transform_2(%arg0: i32, %arg1: i32) -> (i32, i32, i32, i32) {
    %c0_i32 = arith.constant 0 : i32
    %c0_i32_0 = arith.constant 0 : i32
    %c0_i32_1 = arith.constant 0 : i32
    %c0_i32_2 = arith.constant 0 : i32
    return %arg0, %c0_i32, %c0_i32_0, %c0_i32_1 : i32, i32, i32, i32
  }
}

</mosaic_0001>

<llo_original>
// kernel: tpu_custom_call.1
$region0: #{tpu_custom_call.1}
  #allocation0 [shape = 'u32[]', space=smem, size = 0x4, offset = 0x4, fixed_abs, tag = 'smem constant byte address 0x4 - core index']
  #allocation1 [shape = 'u32[144,128]{1,0:T(1,128)}', space=vmem, size = 0x12000, scoped, tag = 'internal scratch']
  #allocation2 [shape = 'f32[1,1,256]{2,1,0:T(1,128)}', space=vmem, size = 0x400, scoped, tag = 'scratch operand']
  #allocation3 [shape = 'f32[1,1,256]{2,1,0:T(1,128)}', space=vmem, size = 0x400, scoped, tag = 'scratch operand']
  #allocation4 [shape = 'f32[1,256]{1,0:T(1,128)}', space=vmem, size = 0x400, scoped, tag = 'scratch operand']
  #allocation5 [shape = 'f32[1,256]{1,0:T(1,128)}', space=vmem, size = 0x400, scoped, tag = 'scratch operand']
  #allocation6 [shape = 'f32[2,32,384]{2,1,0:T(8,128)}', space=vmem, size = 0x18000, scoped, tag = 'scratch operand']
  %s0 = inlined_call_operand.hbm [shape: f32[98], index: 0, kind: input, shape index: {}]
  %s1 = inlined_call_operand.hbm [shape: f32[2,4,256], index: 1, kind: input, shape index: {}]
  %s2 = inlined_call_operand.hbm [shape: f32[2,1,16,128], index: 2, kind: output, shape index: {}]
  %s3 = sld [smem:[#allocation0]]
  $region57: #{tpu_custom_call.1} parent=0
    _
  %s5 = ssub.s32 1, %s3
  %s6 = scalar_select 0, %s5, %s3
  $region1: #{tpu_custom_call.1} parent=0
    #allocation7 [shape = 'u8[512]{0}', space=smem, size = 0x200, scoped, tag = 'input window, operand 0, single buffered']
    #allocation8 [shape = 's32[2]{0}', space=sflag, size = 0x8, scoped, tag = 'scoped memory for tpu_custom_call.1']
    #allocation9 [shape = 's32[2]{0}', space=sflag, size = 0x8, scoped, tag = 'scoped memory for tpu_custom_call.1']
    #allocation10 [shape = 's32[2]{0}', space=sflag, size = 0x8, scoped, tag = 'scoped memory for tpu_custom_call.1']
    #allocation11 [shape = 'u8[8192]{0}', space=vmem, size = 0x2000, scoped, tag = 'input window, operand 1']
    #allocation12 [shape = 'u8[16384]{0}', space=vmem, size = 0x4000, scoped, tag = 'output window, operand 0']
    %7 = vsyncpa [#allocation10], 0
    %8 = vsyncpa [#allocation8], 0
    %s9 = scalar_lea.sflag [#allocation8], 1
    %10 = vsyncpa %s9, 0
    %11 = vsyncpa [#allocation9], 0
    %s12 = scalar_lea.sflag [#allocation9], 1
    %13 = vsyncpa %s12, 0
    loop: start=0, step=1, limit=4
    $region2: #{tpu_custom_call.1} parent=1 // loop_pre_header
      _
    $region3: #{tpu_custom_call.1} parent=1 // loop_header
      %s15 = sphi 0, %s19
      %p16 = scmp.ge.s32.totalorder %s15, 4
      %s22 = sphi 0, %s34
      %s23 = sphi 0, %s30
      %s24 = sphi 0, %s22
      %s25 = sphi 0, %s23
      %s26 = sphi 0, %s24
      %s27 = sphi 0, %s25
      %s35 = sphi 0, %s35
      %s37 = sphi 0, %s35
      %s38 = sphi 0, %s37
      %s52 = sphi 0, %s38
      %s60 = sphi 0, %s62
      %s63 = sphi 0, %s60
      %s64 = sphi 0, %s63
      %s80 = sphi 0, %s64
      %s86 = sphi 0, %s88
      %s89 = sphi 0, %s86
      %s90 = sphi 0, %s89
      %s106 = sphi 0, %s90
    $region4: #{tpu_custom_call.1} parent=1 // loop_header_branch
      %18 = sbr.rel (%p16) target = $region8
    $region5: #{tpu_custom_call.1} parent=1 // loop_body
      %s20 = ssub.s32 %s15, 1
      %s21 = ssub.s32 %s15, 2
      %s28 = sadd.s32 1, %s23
      %p29 = scmp.ge.s32.totalorder %s28, 1
      %s30 = scalar_select %p29, 0, %s28
      %s31 = sadd.s32 1, %s22
      %s32 = scalar_select %p29, %s31, %s22
      %p33 = scmp.ge.s32.totalorder %s32, 2
      %s34 = scalar_select %p33, 0, %s32
      %s36 = sadd.s32 %s35, 1
      %p39 = scmp.eq.s32.totalorder %s15, 1
      %p40 = scmp.ne.s32.totalorder %s35, %s37
      %p41 = scmp.eq.s32.totalorder %s15, 0
      %p42 = por %p40, %p41
      %p43 = scmp.ne.s32.totalorder %s35, %s37
      %p44 = scmp.eq.s32.totalorder %s20, 1
      %p45 = por %p43, %p44
      %p46 = scmp.ne.s32.totalorder %s37, %s38
      %p47 = scmp.eq.s32.totalorder %s20, 0
      %p48 = por %p46, %p47
      %p49 = scmp.ne.s32.totalorder %s37, %s38
      %p50 = scmp.eq.s32.totalorder %s21, 1
      %p51 = por %p49, %p50
      %p53 = scmp.ne.s32.totalorder %s38, %s52
      %p54 = scmp.eq.s32.totalorder %s21, 0
      %p55 = por %p53, %p54
      %s56 = ssub.s32 %s22, %s34
      %s57 = ssub.s32 %s23, %s30
      %s58 = sor.u32 %s56, %s57
      %p59 = scmp.eq.s32.totalorder %s58, 0
      %s61 = sadd.s32 %s60, 1
      %s62 = scalar_select %p59, %s60, %s61
      %p65 = pneg %p59
      %p66 = scmp.eq.s32.totalorder %s15, 1
      %p67 = por %p65, %p66
      %p68 = scmp.ne.s32.totalorder %s60, %s63
      %p69 = scmp.eq.s32.totalorder %s15, 0
      %p70 = por %p68, %p69
      %p71 = scmp.ne.s32.totalorder %s60, %s63
      %p72 = scmp.eq.s32.totalorder %s20, 1
      %p73 = por %p71, %p72
      %p74 = scmp.ne.s32.totalorder %s63, %s64
      %p75 = scmp.eq.s32.totalorder %s20, 0
      %p76 = por %p74, %p75
      %p77 = scmp.ne.s32.totalorder %s63, %s64
      %p78 = scmp.eq.s32.totalorder %s21, 1
      %p79 = por %p77, %p78
      %p81 = scmp.ne.s32.totalorder %s64, %s80
      %p82 = scmp.eq.s32.totalorder %s21, 0
      %p83 = por %p81, %p82
      %s84 = ssub.s32 %s22, %s34
      %p85 = scmp.eq.s32.totalorder %s84, 0
      %s87 = sadd.s32 %s86, 1
      %s88 = scalar_select %p85, %s86, %s87
      %p91 = pneg %p85
      %p92 = scmp.eq.s32.totalorder %s15, 1
      %p93 = por %p91, %p92
      %p94 = scmp.ne.s32.totalorder %s86, %s89
      %p95 = scmp.eq.s32.totalorder %s15, 0
      %p96 = por %p94, %p95
      %p97 = scmp.ne.s32.totalorder %s86, %s89
      %p98 = scmp.eq.s32.totalorder %s20, 1
      %p99 = por %p97, %p98
      %p100 = scmp.ne.s32.totalorder %s89, %s90
      %p101 = scmp.eq.s32.totalorder %s20, 0
      %p102 = por %p100, %p101
      %p103 = scmp.ne.s32.totalorder %s89, %s90
      %p104 = scmp.eq.s32.totalorder %s21, 1
      %p105 = por %p103, %p104
      %p107 = scmp.ne.s32.totalorder %s90, %s106
      %p108 = scmp.eq.s32.totalorder %s21, 0
      %p109 = por %p107, %p108
      %p110 = scmp.le.s32.totalorder 1, %s15
      %p111 = scmp.lt.s32.totalorder %s15, 3
      %p112 = pnand %p110, %p111
      %p113 = pneg %p112
      // Predicated region
      $region9: #{tpu_custom_call.1} parent=5 // pred_check
        _
      $region10: #{tpu_custom_call.1} parent=5 // pred_check_branch
        %115 = sbr.rel (%p112) target = $region12
      $region11: #{tpu_custom_call.1} parent=5 // pred_region
        %s116 = ssub.s32 %s15, 1
        // Predicated region
        $region13: #{tpu_custom_call.1} parent=11 // pred_check
          %p117 = pneg %p48
        $region14: #{tpu_custom_call.1} parent=11 // pred_check_branch
          %119 = sbr.rel (%p117) target = $region16
        $region15: #{tpu_custom_call.1} parent=11 // pred_region
          %s121 = ssub.s32 16, 16
          %122 = vsyncadd [#allocation10], %s121
          %125 = dma.hbm_to_smem %s0, 16, [#allocation7], [#allocation10]
        $region16: #{tpu_custom_call.1} parent=11 // pred_fallthru
          _
      $region12: #{tpu_custom_call.1} parent=5 // pred_fallthru
        _
      %p126 = scmp.lt.s32.totalorder %s15, 2
      // Predicated region
      $region17: #{tpu_custom_call.1} parent=5 // pred_check
        %p127 = pneg %p126
      $region18: #{tpu_custom_call.1} parent=5 // pred_check_branch
        %129 = sbr.rel (%p127) target = $region20
      $region19: #{tpu_custom_call.1} parent=5 // pred_region
        // Predicated region
        $region21: #{tpu_custom_call.1} parent=19 // pred_check
          %p130 = pneg %p70
        $region22: #{tpu_custom_call.1} parent=19 // pred_check_branch
          %132 = sbr.rel (%p130) target = $region24
        $region23: #{tpu_custom_call.1} parent=19 // pred_region
          %s133 = sand.u32 %s60, 1
          %s134 = scalar_lea.sflag [#allocation8], %s133
          %s135 = sand.u32 %s60, 1
          %s136 = smul.addr %s135, 8
          %s137 = scalar_lea.vmem [#allocation11], %s136
          %s139 = ssub.s32 128, 128
          %140 = vsyncadd %s134, %s139
          %s141 = smul.addr %s23, 2
          %s142 = smul.addr %s22, 2
          %s143 = sadd.s32 %s141, %s142
          %s144 = smul.addr %s143, 64
          %s145 = scalar_lea.hbm %s1, %s144
          %s147 = sshll.u32 %s137, 4
          %s148 = int_to_ptr.vmem [resolvable:$true] %s147
          %150 = dma.hbm_to_vmem [thread:$0]  %s145, 128, %s148, %s134
        $region24: #{tpu_custom_call.1} parent=19 // pred_fallthru
          _
      $region20: #{tpu_custom_call.1} parent=5 // pred_fallthru
        _
      %p151 = scmp.le.s32.totalorder 1, %s15
      %p152 = scmp.lt.s32.totalorder %s15, 3
      %p153 = pnand %p151, %p152
      %p154 = pneg %p153
      // Predicated region
      $region25: #{tpu_custom_call.1} parent=5 // pred_check
        _
      $region26: #{tpu_custom_call.1} parent=5 // pred_check_branch
        %156 = sbr.rel (%p153) target = $region28
      $region27: #{tpu_custom_call.1} parent=5 // pred_region
        %s157 = ssub.s32 %s15, 1
        // Predicated region
        $region29: #{tpu_custom_call.1} parent=27 // pred_check
          %p158 = pneg %p48
        $region30: #{tpu_custom_call.1} parent=27 // pred_check_branch
          %160 = sbr.rel (%p158) target = $region32
        $region31: #{tpu_custom_call.1} parent=27 // pred_region
          %161 = dma.done [#allocation10], 16
        $region32: #{tpu_custom_call.1} parent=27 // pred_fallthru
          _
        %s162 = sand.u32 %s63, 1
        %s163 = scalar_lea.sflag [#allocation8], %s162
        %s164 = sand.u32 %s63, 1
        %s165 = smul.addr %s164, 8
        %s166 = scalar_lea.vmem [#allocation11], %s165
        // Predicated region
        $region33: #{tpu_custom_call.1} parent=27 // pred_check
          %p167 = pneg %p76
        $region34: #{tpu_custom_call.1} parent=27 // pred_check_branch
          %169 = sbr.rel (%p167) target = $region36
        $region35: #{tpu_custom_call.1} parent=27 // pred_region
          %170 = dma.done %s163, 128
        $region36: #{tpu_custom_call.1} parent=27 // pred_fallthru
          _
        %171 = sfence
        %p172 = pneg %p48
        %p173 = pneg %p45
        %s174 = sand.u32 %s63, 1
        %s175 = scalar_lea.sflag [#allocation8], %s174
        %s176 = sand.u32 %s63, 1
        %s177 = smul.addr %s176, 8
        %s178 = scalar_lea.vmem [#allocation11], %s177
        %p179 = pneg %p76
        %p180 = pneg %p73
        %p181 = pneg %p102
        %p182 = pneg %p99
        %s183 = sand.u32 %s89, 1
        %s184 = scalar_lea.sflag [#allocation9], %s183
        %s185 = sand.u32 %s89, 1
        %s186 = smul.addr %s185, 16
        %s187 = scalar_lea.vmem [#allocation12], %s186
        %p188 = scmp.eq.s32.totalorder %s25, 0
        // Predicated region
        $region37: #{tpu_custom_call.1} parent=27 // pred_check
          %p189 = pneg %p188
        $region38: #{tpu_custom_call.1} parent=27 // pred_check_branch
          %191 = sbr.rel (%p189) target = $region40
        $region39: #{tpu_custom_call.1} parent=27 // pred_region
          %v192 = vlaneseq
          %vm193 = vcmp.ge.s32.totalorder %v192, 0
          %vm194 = vcmp.lt.s32.totalorder %v192, 256
          %vm195 = vmand %vm193, %vm194
          %196 = vst.msk [vmem:[#allocation2] sm:$0x3] %vm195, 0.0
          %197 = vst.msk [vmem:[#allocation3] sm:$0x3] %vm195, -inf
        $region40: #{tpu_custom_call.1} parent=27 // pred_fallthru
          _
        %v198 = vld [vmem:[%s166] sm:$0xff]
        %v199 = vld [vmem:[#allocation2] sm:$0x3]
        %v201 = vcombine.high %v198, %v198
        %vm203 = vcmask 1043456
        %v204 = vsel %vm203, %v198, 0.0
        %v205 = vrot.slane %v204, 4
        %v206 = vadd.f32 %v204, %v205
        %v207 = vrot.slane %v206, 2
        %v208 = vadd.f32 %v206, %v207
        %v209 = vrot.slane %v208, 1
        %v210 = vadd.f32 %v208, %v209
        %v211 = vsel %vm203, %v201, 0.0
        %v212 = vrot.slane %v211, 4
        %v213 = vadd.f32 %v211, %v212
        %v214 = vrot.slane %v213, 2
        %v215 = vadd.f32 %v213, %v214
        %v216 = vrot.slane %v215, 1
        %v217 = vadd.f32 %v215, %v216
        %v220 = vcombine.low %v210, %v217
        %v222 = vunpack.c.l.s4 1966171168
        %v223 = vunpack.c.0.s8 %v222
        %v224 = vlaneseq
        %v225 = vshrl.u32 %v224, 7
        %v226 = vsub.s32 %v223, %v225
        %v227 = vrot.slane %v220, %v226
        %v229 = vunpack.c.l.s4 1966171168
        %v230 = vunpack.c.0.s8 %v229
        %v231 = vlaneseq
        %v232 = vshrl.u32 %v231, 7
        %v233 = vsub.s32 %v230, %v232
        %v234 = vrot.slane %v227, %v233
        %v236 = vadd.f32 %v199, %v234
        %v237 = vlaneseq
        %vm238 = vcmp.ge.s32.totalorder %v237, 0
        %vm239 = vcmp.lt.s32.totalorder %v237, 256
        %vm240 = vmand %vm238, %vm239
        %241 = vst.msk [vmem:[#allocation2] sm:$0x3] %vm240, %v236
        %v242 = vld [vmem:[#allocation3] sm:$0x3]
        %v243 = vsel %vm203, %v198, -inf
        %v244 = vrot.slane %v243, 4
        %v245 = vmax.f32 %v243, %v244
        %v246 = vrot.slane %v245, 2
        %v247 = vmax.f32 %v245, %v246
        %v248 = vrot.slane %v247, 1
        %v249 = vmax.f32 %v247, %v248
        %v250 = vsel %vm203, %v201, -inf
        %v251 = vrot.slane %v250, 4
        %v252 = vmax.f32 %v250, %v251
        %v253 = vrot.slane %v252, 2
        %v254 = vmax.f32 %v252, %v253
        %v255 = vrot.slane %v254, 1
        %v256 = vmax.f32 %v254, %v255
        %v259 = vcombine.low %v249, %v256
        %v261 = vunpack.c.l.s4 1966171168
        %v262 = vunpack.c.0.s8 %v261
        %v263 = vlaneseq
        %v264 = vshrl.u32 %v263, 7
        %v265 = vsub.s32 %v262, %v264
        %v266 = vrot.slane %v259, %v265
        %v268 = vunpack.c.l.s4 1966171168
        %v269 = vunpack.c.0.s8 %v268
        %v270 = vlaneseq
        %v271 = vshrl.u32 %v270, 7
        %v272 = vsub.s32 %v269, %v271
        %v273 = vrot.slane %v266, %v272
        %v275 = vmax.f32 %v242, %v273
        %276 = vst.msk [vmem:[#allocation3] sm:$0x3] %vm240, %v275
        // Predicated region
        $region41: #{tpu_custom_call.1} parent=27 // pred_check
          %p277 = pneg %p188
        $region42: #{tpu_custom_call.1} parent=27 // pred_check_branch
          %279 = sbr.rel (%p277) target = $region44
        $region43: #{tpu_custom_call.1} parent=27 // pred_region
          %280 = vst [vmem:[#allocation6] sm:$0xff] 0.0
          %281 = vst [vmem:[#allocation6 + $0x8] sm:$0xff] 0.0
          %282 = vst [vmem:[#allocation6 + $0x10] sm:$0xff] 0.0
          %283 = vst [vmem:[#allocation6 + $0x18] sm:$0xff] 0.0
          %284 = vst [vmem:[#allocation6 + $0x20] sm:$0xff] 0.0
          %285 = vst [vmem:[#allocation6 + $0x28] sm:$0xff] 0.0
          %286 = vst [vmem:[#allocation6 + $0x30] sm:$0xff] 0.0
          %287 = vst [vmem:[#allocation6 + $0x38] sm:$0xff] 0.0
          %288 = vst [vmem:[#allocation6 + $0x40] sm:$0xff] 0.0
          %289 = vst [vmem:[#allocation6 + $0x48] sm:$0xff] 0.0
          %290 = vst [vmem:[#allocation6 + $0x50] sm:$0xff] 0.0
          %291 = vst [vmem:[#allocation6 + $0x58] sm:$0xff] 0.0
          %292 = vst [vmem:[#allocation6 + $0x60] sm:$0xff] 0.0
          %293 = vst [vmem:[#allocation6 + $0x68] sm:$0xff] 0.0
          %294 = vst [vmem:[#allocation6 + $0x70] sm:$0xff] 0.0
          %295 = vst [vmem:[#allocation6 + $0x78] sm:$0xff] 0.0
          %296 = vst [vmem:[#allocation6 + $0x80] sm:$0xff] 0.0
          %297 = vst [vmem:[#allocation6 + $0x88] sm:$0xff] 0.0
          %298 = vst [vmem:[#allocation6 + $0x90] sm:$0xff] 0.0
          %299 = vst [vmem:[#allocation6 + $0x98] sm:$0xff] 0.0
          %300 = vst [vmem:[#allocation6 + $0xa0] sm:$0xff] 0.0
          %301 = vst [vmem:[#allocation6 + $0xa8] sm:$0xff] 0.0
          %302 = vst [vmem:[#allocation6 + $0xb0] sm:$0xff] 0.0
          %303 = vst [vmem:[#allocation6 + $0xb8] sm:$0xff] 0.0
          %v304 = vld [vmem:[#allocation2] sm:$0x3]
          %v305 = vmul.f32 %v304, 0.25
          %306 = vst.msk [vmem:[#allocation4] sm:$0x3] %vm240, %v305
          %v307 = vld [vmem:[#allocation3] sm:$0x3]
          %308 = vst.msk [vmem:[#allocation5] sm:$0x3] %vm240, %v307
          %v309 = vld [vmem:[#allocation4] sm:$0x1]
          %vm310 = vcmask 122880
          %311 = vst.msk [vmem:[#allocation6 + $0x20] sm:$0x1] %vm310, %v309
          %v312 = vld [vmem:[#allocation5] sm:$0x1]
          %s313 = scalar_lea.vmem [#allocation6], 96
          %314 = vst.msk [vmem:[%s313 + $0x20] sm:$0x1] %vm310, %v312
          %v315 = vld [vmem:[#allocation4] sm:$0x1]
          %v317 = vlaneseq
          %v318 = vshrl.u32 %v317, 7
          %v319 = vsub.s32 0, %v318
          %v320 = vrot.slane %v315, %v319
          %321 = vrot.lane.b32.xlu0 %v320, 112
          %v322 = vpop.permute.xlu0 %321
          %324 = vst.msk [vmem:[#allocation6 + $0x21] sm:$0x1] %vm310, %v322
          %v325 = vld [vmem:[#allocation5] sm:$0x1]
          %v327 = vlaneseq
          %v328 = vshrl.u32 %v327, 7
          %v329 = vsub.s32 0, %v328
          %v330 = vrot.slane %v325, %v329
          %331 = vrot.lane.b32.xlu0 %v330, 112
          %v332 = vpop.permute.xlu0 %331
          %334 = vst.msk [vmem:[%s313 + $0x21] sm:$0x1] %vm310, %v332
          %v335 = vld [vmem:[#allocation4] sm:$0x1]
          %v337 = vlaneseq
          %v338 = vshrl.u32 %v337, 7
          %v339 = vsub.s32 0, %v338
          %v340 = vrot.slane %v335, %v339
          %341 = vrot.lane.b32.xlu0 %v340, 96
          %v342 = vpop.permute.xlu0 %341
          %344 = vst.msk [vmem:[#allocation6 + $0x22] sm:$0x1] %vm310, %v342
          %v345 = vld [vmem:[#allocation5] sm:$0x1]
          %v347 = vlaneseq
          %v348 = vshrl.u32 %v347, 7
          %v349 = vsub.s32 0, %v348
          %v350 = vrot.slane %v345, %v349
          %351 = vrot.lane.b32.xlu0 %v350, 96
          %v352 = vpop.permute.xlu0 %351
          %354 = vst.msk [vmem:[%s313 + $0x22] sm:$0x1] %vm310, %v352
          %v355 = vld [vmem:[#allocation4] sm:$0x1]
          %v357 = vlaneseq
          %v358 = vshrl.u32 %v357, 7
          %v359 = vsub.s32 0, %v358
          %v360 = vrot.slane %v355, %v359
          %361 = vrot.lane.b32.xlu0 %v360, 80
          %v362 = vpop.permute.xlu0 %361
          %364 = vst.msk [vmem:[#allocation6 + $0x23] sm:$0x1] %vm310, %v362
          %v365 = vld [vmem:[#allocation5] sm:$0x1]
          %v367 = vlaneseq
          %v368 = vshrl.u32 %v367, 7
          %v369 = vsub.s32 0, %v368
          %v370 = vrot.slane %v365, %v369
          %371 = vrot.lane.b32.xlu0 %v370, 80
          %v372 = vpop.permute.xlu0 %371
          %374 = vst.msk [vmem:[%s313 + $0x23] sm:$0x1] %vm310, %v372
          %v375 = vld [vmem:[#allocation4] sm:$0x1]
          %v377 = vlaneseq
          %v378 = vshrl.u32 %v377, 7
          %v379 = vsub.s32 0, %v378
          %v380 = vrot.slane %v375, %v379
          %381 = vrot.lane.b32.xlu0 %v380, 64
          %v382 = vpop.permute.xlu0 %381
          %384 = vst.msk [vmem:[#allocation6 + $0x24] sm:$0x1] %vm310, %v382
          %v385 = vld [vmem:[#allocation5] sm:$0x1]
          %v387 = vlaneseq
          %v388 = vshrl.u32 %v387, 7
          %v389 = vsub.s32 0, %v388
          %v390 = vrot.slane %v385, %v389
          %391 = vrot.lane.b32.xlu0 %v390, 64
          %v392 = vpop.permute.xlu0 %391
          %394 = vst.msk [vmem:[%s313 + $0x24] sm:$0x1] %vm310, %v392
          %v395 = vld [vmem:[#allocation4] sm:$0x1]
          %v397 = vlaneseq
          %v398 = vshrl.u32 %v397, 7
          %v399 = vsub.s32 0, %v398
          %v400 = vrot.slane %v395, %v399
          %401 = vrot.lane.b32.xlu0 %v400, 48
          %v402 = vpop.permute.xlu0 %401
          %404 = vst.msk [vmem:[#allocation6 + $0x25] sm:$0x1] %vm310, %v402
          %v405 = vld [vmem:[#allocation5] sm:$0x1]
          %v407 = vlaneseq
          %v408 = vshrl.u32 %v407, 7
          %v409 = vsub.s32 0, %v408
          %v410 = vrot.slane %v405, %v409
          %411 = vrot.lane.b32.xlu0 %v410, 48
          %v412 = vpop.permute.xlu0 %411
          %414 = vst.msk [vmem:[%s313 + $0x25] sm:$0x1] %vm310, %v412
          %v415 = vld [vmem:[#allocation4] sm:$0x1]
          %v417 = vlaneseq
          %v418 = vshrl.u32 %v417, 7
          %v419 = vsub.s32 0, %v418
          %v420 = vrot.slane %v415, %v419
          %421 = vrot.lane.b32.xlu0 %v420, 32
          %v422 = vpop.permute.xlu0 %421
          %424 = vst.msk [vmem:[#allocation6 + $0x26] sm:$0x1] %vm310, %v422
          %v425 = vld [vmem:[#allocation5] sm:$0x1]
          %v427 = vlaneseq
          %v428 = vshrl.u32 %v427, 7
          %v429 = vsub.s32 0, %v428
          %v430 = vrot.slane %v425, %v429
          %431 = vrot.lane.b32.xlu0 %v430, 32
          %v432 = vpop.permute.xlu0 %431
          %434 = vst.msk [vmem:[%s313 + $0x26] sm:$0x1] %vm310, %v432
          %v435 = vld [vmem:[#allocation4] sm:$0x1]
          %v437 = vlaneseq
          %v438 = vshrl.u32 %v437, 7
          %v439 = vsub.s32 0, %v438
          %v440 = vrot.slane %v435, %v439
          %441 = vrot.lane.b32.xlu0 %v440, 16
          %v442 = vpop.permute.xlu0 %441
          %444 = vst.msk [vmem:[#allocation6 + $0x27] sm:$0x1] %vm310, %v442
          %v445 = vld [vmem:[#allocation5] sm:$0x1]
          %v447 = vlaneseq
          %v448 = vshrl.u32 %v447, 7
          %v449 = vsub.s32 0, %v448
          %v450 = vrot.slane %v445, %v449
          %451 = vrot.lane.b32.xlu0 %v450, 16
          %v452 = vpop.permute.xlu0 %451
          %454 = vst.msk [vmem:[%s313 + $0x27] sm:$0x1] %vm310, %v452
          %v455 = vld [vmem:[#allocation4 + $0x1] sm:$0x1]
          %456 = vst.msk [vmem:[#allocation6 + $0x38] sm:$0x1] %vm310, %v455
          %v457 = vld [vmem:[#allocation5 + $0x1] sm:$0x1]
          %458 = vst.msk [vmem:[%s313 + $0x38] sm:$0x1] %vm310, %v457
          %v459 = vld [vmem:[#allocation4 + $0x1] sm:$0x1]
          %v461 = vlaneseq
          %v462 = vshrl.u32 %v461, 7
          %v463 = vsub.s32 0, %v462
          %v464 = vrot.slane %v459, %v463
          %465 = vrot.lane.b32.xlu0 %v464, 112
          %v466 = vpop.permute.xlu0 %465
          %468 = vst.msk [vmem:[#allocation6 + $0x39] sm:$0x1] %vm310, %v466
          %v469 = vld [vmem:[#allocation5 + $0x1] sm:$0x1]
          %v471 = vlaneseq
          %v472 = vshrl.u32 %v471, 7
          %v473 = vsub.s32 0, %v472
          %v474 = vrot.slane %v469, %v473
          %475 = vrot.lane.b32.xlu0 %v474, 112
          %v476 = vpop.permute.xlu0 %475
          %478 = vst.msk [vmem:[%s313 + $0x39] sm:$0x1] %vm310, %v476
          %v479 = vld [vmem:[#allocation4 + $0x1] sm:$0x1]
          %v481 = vlaneseq
          %v482 = vshrl.u32 %v481, 7
          %v483 = vsub.s32 0, %v482
          %v484 = vrot.slane %v479, %v483
          %485 = vrot.lane.b32.xlu0 %v484, 96
          %v486 = vpop.permute.xlu0 %485
          %488 = vst.msk [vmem:[#allocation6 + $0x3a] sm:$0x1] %vm310, %v486
          %v489 = vld [vmem:[#allocation5 + $0x1] sm:$0x1]
          %v491 = vlaneseq
          %v492 = vshrl.u32 %v491, 7
          %v493 = vsub.s32 0, %v492
          %v494 = vrot.slane %v489, %v493
          %495 = vrot.lane.b32.xlu0 %v494, 96
          %v496 = vpop.permute.xlu0 %495
          %498 = vst.msk [vmem:[%s313 + $0x3a] sm:$0x1] %vm310, %v496
          %v499 = vld [vmem:[#allocation4 + $0x1] sm:$0x1]
          %v501 = vlaneseq
          %v502 = vshrl.u32 %v501, 7
          %v503 = vsub.s32 0, %v502
          %v504 = vrot.slane %v499, %v503
          %505 = vrot.lane.b32.xlu0 %v504, 80
          %v506 = vpop.permute.xlu0 %505
          %508 = vst.msk [vmem:[#allocation6 + $0x3b] sm:$0x1] %vm310, %v506
          %v509 = vld [vmem:[#allocation5 + $0x1] sm:$0x1]
          %v511 = vlaneseq
          %v512 = vshrl.u32 %v511, 7
          %v513 = vsub.s32 0, %v512
          %v514 = vrot.slane %v509, %v513
          %515 = vrot.lane.b32.xlu0 %v514, 80
          %v516 = vpop.permute.xlu0 %515
          %518 = vst.msk [vmem:[%s313 + $0x3b] sm:$0x1] %vm310, %v516
          %v519 = vld [vmem:[#allocation4 + $0x1] sm:$0x1]
          %v521 = vlaneseq
          %v522 = vshrl.u32 %v521, 7
          %v523 = vsub.s32 0, %v522
          %v524 = vrot.slane %v519, %v523
          %525 = vrot.lane.b32.xlu0 %v524, 64
          %v526 = vpop.permute.xlu0 %525
          %528 = vst.msk [vmem:[#allocation6 + $0x3c] sm:$0x1] %vm310, %v526
          %v529 = vld [vmem:[#allocation5 + $0x1] sm:$0x1]
          %v531 = vlaneseq
          %v532 = vshrl.u32 %v531, 7
          %v533 = vsub.s32 0, %v532
          %v534 = vrot.slane %v529, %v533
          %535 = vrot.lane.b32.xlu0 %v534, 64
          %v536 = vpop.permute.xlu0 %535
          %538 = vst.msk [vmem:[%s313 + $0x3c] sm:$0x1] %vm310, %v536
          %v539 = vld [vmem:[#allocation4 + $0x1] sm:$0x1]
          %v541 = vlaneseq
          %v542 = vshrl.u32 %v541, 7
          %v543 = vsub.s32 0, %v542
          %v544 = vrot.slane %v539, %v543
          %545 = vrot.lane.b32.xlu0 %v544, 48
          %v546 = vpop.permute.xlu0 %545
          %548 = vst.msk [vmem:[#allocation6 + $0x3d] sm:$0x1] %vm310, %v546
          %v549 = vld [vmem:[#allocation5 + $0x1] sm:$0x1]
          %v551 = vlaneseq
          %v552 = vshrl.u32 %v551, 7
          %v553 = vsub.s32 0, %v552
          %v554 = vrot.slane %v549, %v553
          %555 = vrot.lane.b32.xlu0 %v554, 48
          %v556 = vpop.permute.xlu0 %555
          %558 = vst.msk [vmem:[%s313 + $0x3d] sm:$0x1] %vm310, %v556
          %v559 = vld [vmem:[#allocation4 + $0x1] sm:$0x1]
          %v561 = vlaneseq
          %v562 = vshrl.u32 %v561, 7
          %v563 = vsub.s32 0, %v562
          %v564 = vrot.slane %v559, %v563
          %565 = vrot.lane.b32.xlu0 %v564, 32
          %v566 = vpop.permute.xlu0 %565
          %568 = vst.msk [vmem:[#allocation6 + $0x3e] sm:$0x1] %vm310, %v566
          %v569 = vld [vmem:[#allocation5 + $0x1] sm:$0x1]
          %v571 = vlaneseq
          %v572 = vshrl.u32 %v571, 7
          %v573 = vsub.s32 0, %v572
          %v574 = vrot.slane %v569, %v573
          %575 = vrot.lane.b32.xlu0 %v574, 32
          %v576 = vpop.permute.xlu0 %575
          %578 = vst.msk [vmem:[%s313 + $0x3e] sm:$0x1] %vm310, %v576
          %v579 = vld [vmem:[#allocation4 + $0x1] sm:$0x1]
          %v581 = vlaneseq
          %v582 = vshrl.u32 %v581, 7
          %v583 = vsub.s32 0, %v582
          %v584 = vrot.slane %v579, %v583
          %585 = vrot.lane.b32.xlu0 %v584, 16
          %v586 = vpop.permute.xlu0 %585
          %588 = vst.msk [vmem:[#allocation6 + $0x3f] sm:$0x1] %vm310, %v586
          %v589 = vld [vmem:[#allocation5 + $0x1] sm:$0x1]
          %v591 = vlaneseq
          %v592 = vshrl.u32 %v591, 7
          %v593 = vsub.s32 0, %v592
          %v594 = vrot.slane %v589, %v593
          %595 = vrot.lane.b32.xlu0 %v594, 16
          %v596 = vpop.permute.xlu0 %595
          %598 = vst.msk [vmem:[%s313 + $0x3f] sm:$0x1] %vm310, %v596
          %s599 = sld [smem:[#allocation7]]
          %s600 = sld [smem:[#allocation7 + $0x31]]
          %v601 = vld [vmem:[#allocation6] sm:$0xe0]
          %v602 = vld [vmem:[#allocation6 + $0x8] sm:$0xe0]
          %v603 = vld [vmem:[#allocation6 + $0x18] sm:$0xff]
          %v604 = vld [vmem:[#allocation6 + $0x20] sm:$0xff]
          %v605 = vld [vmem:[#allocation6 + $0x30] sm:$0x1f]
          %v606 = vld [vmem:[#allocation6 + $0x38] sm:$0x1f]
          %v607 = vstv %s599
          %v608 = vmul.f32 %v607, %v601
          %v609 = vmul.f32 %v607, %v602
          %v610 = vmul.f32 %v607, %v603
          %v611 = vmul.f32 %v607, %v604
          %v612 = vmul.f32 %v607, %v605
          %v613 = vmul.f32 %v607, %v606
          %v614 = vadd.f32 %v608, 0.0
          %v615 = vadd.f32 %v609, 0.0
          %v616 = vadd.f32 %v610, 0.0
          %v617 = vadd.f32 %v611, 0.0
          %v618 = vadd.f32 %v612, 0.0
          %v619 = vadd.f32 %v613, 0.0
          %v620 = vld [vmem:[%s313] sm:$0xe0]
          %v621 = vld [vmem:[%s313 + $0x8] sm:$0xe0]
          %v622 = vld [vmem:[%s313 + $0x18] sm:$0xff]
          %v623 = vld [vmem:[%s313 + $0x20] sm:$0xff]
          %v624 = vld [vmem:[%s313 + $0x30] sm:$0x1f]
          %v625 = vld [vmem:[%s313 + $0x38] sm:$0x1f]
          %v626 = vstv %s600
          %v627 = vmul.f32 %v626, %v620
          %v628 = vmul.f32 %v626, %v621
          %v629 = vmul.f32 %v626, %v622
          %v630 = vmul.f32 %v626, %v623
          %v631 = vmul.f32 %v626, %v624
          %v632 = vmul.f32 %v626, %v625
          %v633 = vadd.f32 %v614, %v627
          %v634 = vadd.f32 %v615, %v628
          %v635 = vadd.f32 %v616, %v629
          %v636 = vadd.f32 %v617, %v630
          %v637 = vadd.f32 %v618, %v631
          %v638 = vadd.f32 %v619, %v632
          %s639 = sld [smem:[#allocation7 + $0x1]]
          %s640 = sld [smem:[#allocation7 + $0x32]]
          %v641 = vstv %s639
          %v642 = vmul.f32 %v641, %v601
          %v643 = vmul.f32 %v641, %v602
          %v644 = vmul.f32 %v641, %v603
          %v645 = vmul.f32 %v641, %v604
          %v646 = vmul.f32 %v641, %v605
          %v647 = vmul.f32 %v641, %v606
          %654 = vrot.lane.b32.xlu0 %v642, 127
          %v655 = vpop.permute.xlu0 %654
          %656 = vrot.lane.b32.xlu0 %v643, 127
          %v657 = vpop.permute.xlu0 %656
          %658 = vrot.lane.b32.xlu0 %v644, 127
          %v659 = vpop.permute.xlu0 %658
          %660 = vrot.lane.b32.xlu0 %v645, 127
          %v661 = vpop.permute.xlu0 %660
          %662 = vrot.lane.b32.xlu0 %v646, 127
          %v663 = vpop.permute.xlu0 %662
          %664 = vrot.lane.b32.xlu0 %v647, 127
          %v665 = vpop.permute.xlu0 %664
          %vm666 = vcmask 1039360
          %v667 = vsel %vm666, %v655, %v657
          %v668 = vsel %vm666, %v659, %v661
          %v669 = vsel %vm666, %v663, %v665
          %v676 = vadd.f32 %v633, %v667
          %v677 = vadd.f32 %v634, %v657
          %v678 = vadd.f32 %v635, %v668
          %v679 = vadd.f32 %v636, %v661
          %v680 = vadd.f32 %v637, %v669
          %v681 = vadd.f32 %v638, %v665
          %v682 = vstv %s640
          %v683 = vmul.f32 %v682, %v620
          %v684 = vmul.f32 %v682, %v621
          %v685 = vmul.f32 %v682, %v622
          %v686 = vmul.f32 %v682, %v623
          %v687 = vmul.f32 %v682, %v624
          %v688 = vmul.f32 %v682, %v625
          %695 = vrot.lane.b32.xlu0 %v683, 127
          %v696 = vpop.permute.xlu0 %695
          %697 = vrot.lane.b32.xlu0 %v684, 127
          %v698 = vpop.permute.xlu0 %697
          %699 = vrot.lane.b32.xlu0 %v685, 127
          %v700 = vpop.permute.xlu0 %699
          %701 = vrot.lane.b32.xlu0 %v686, 127
          %v702 = vpop.permute.xlu0 %701
          %703 = vrot.lane.b32.xlu0 %v687, 127
          %v704 = vpop.permute.xlu0 %703
          %705 = vrot.lane.b32.xlu0 %v688, 127
          %v706 = vpop.permute.xlu0 %705
          %v707 = vsel %vm666, %v696, %v698
          %v708 = vsel %vm666, %v700, %v702
          %v709 = vsel %vm666, %v704, %v706
          %v716 = vadd.f32 %v676, %v707
          %v717 = vadd.f32 %v677, %v698
          %v718 = vadd.f32 %v678, %v708
          %v719 = vadd.f32 %v679, %v702
          %v720 = vadd.f32 %v680, %v709
          %v721 = vadd.f32 %v681, %v706
          %s722 = sld [smem:[#allocation7 + $0x2]]
          %s723 = sld [smem:[#allocation7 + $0x33]]
          %v724 = vstv %s722
          %v725 = vmul.f32 %v724, %v601
          %v726 = vmul.f32 %v724, %v602
          %v727 = vmul.f32 %v724, %v603
          %v728 = vmul.f32 %v724, %v604
          %v729 = vmul.f32 %v724, %v605
          %v730 = vmul.f32 %v724, %v606
          %737 = vrot.lane.b32.xlu0 %v725, 126
          %v738 = vpop.permute.xlu0 %737
          %739 = vrot.lane.b32.xlu0 %v726, 126
          %v740 = vpop.permute.xlu0 %739
          %741 = vrot.lane.b32.xlu0 %v727, 126
          %v742 = vpop.permute.xlu0 %741
          %743 = vrot.lane.b32.xlu0 %v728, 126
          %v744 = vpop.permute.xlu0 %743
          %745 = vrot.lane.b32.xlu0 %v729, 126
          %v746 = vpop.permute.xlu0 %745
          %747 = vrot.lane.b32.xlu0 %v730, 126
          %v748 = vpop.permute.xlu0 %747
          %vm749 = vcmask 1031168
          %v750 = vsel %vm749, %v738, %v740
          %v751 = vsel %vm749, %v742, %v744
          %v752 = vsel %vm749, %v746, %v748
          %v759 = vadd.f32 %v716, %v750
          %v760 = vadd.f32 %v717, %v740
          %v761 = vadd.f32 %v718, %v751
          %v762 = vadd.f32 %v719, %v744
          %v763 = vadd.f32 %v720, %v752
          %v764 = vadd.f32 %v721, %v748
          %v765 = vstv %s723
          %v766 = vmul.f32 %v765, %v620
          %v767 = vmul.f32 %v765, %v621
          %v768 = vmul.f32 %v765, %v622
          %v769 = vmul.f32 %v765, %v623
          %v770 = vmul.f32 %v765, %v624
          %v771 = vmul.f32 %v765, %v625
          %778 = vrot.lane.b32.xlu0 %v766, 126
          %v779 = vpop.permute.xlu0 %778
          %780 = vrot.lane.b32.xlu0 %v767, 126
          %v781 = vpop.permute.xlu0 %780
          %782 = vrot.lane.b32.xlu0 %v768, 126
          %v783 = vpop.permute.xlu0 %782
          %784 = vrot.lane.b32.xlu0 %v769, 126
          %v785 = vpop.permute.xlu0 %784
          %786 = vrot.lane.b32.xlu0 %v770, 126
          %v787 = vpop.permute.xlu0 %786
          %788 = vrot.lane.b32.xlu0 %v771, 126
          %v789 = vpop.permute.xlu0 %788
          %v790 = vsel %vm749, %v779, %v781
          %v791 = vsel %vm749, %v783, %v785
          %v792 = vsel %vm749, %v787, %v789
          %v799 = vadd.f32 %v759, %v790
          %v800 = vadd.f32 %v760, %v781
          %v801 = vadd.f32 %v761, %v791
          %v802 = vadd.f32 %v762, %v785
          %v803 = vadd.f32 %v763, %v792
          %v804 = vadd.f32 %v764, %v789
          %s805 = sld [smem:[#allocation7 + $0x3]]
          %s806 = sld [smem:[#allocation7 + $0x34]]
          %v807 = vstv %s805
          %v808 = vmul.f32 %v807, %v602
          %v809 = vmul.f32 %v807, %v604
          %v810 = vmul.f32 %v807, %v606
          %814 = vrot.lane.b32.xlu0 %v808, 125
          %v815 = vpop.permute.xlu0 %814
          %816 = vrot.lane.b32.xlu0 %v809, 125
          %v817 = vpop.permute.xlu0 %816
          %818 = vrot.lane.b32.xlu0 %v810, 125
          %v819 = vpop.permute.xlu0 %818
          %v823 = vadd.f32 %v799, %v815
          %v824 = vadd.f32 %v800, %v815
          %v825 = vadd.f32 %v801, %v817
          %v826 = vadd.f32 %v802, %v817
          %v827 = vadd.f32 %v803, %v819
          %v828 = vadd.f32 %v804, %v819
          %v829 = vstv %s806
          %v830 = vmul.f32 %v829, %v621
          %v831 = vmul.f32 %v829, %v623
          %v832 = vmul.f32 %v829, %v625
          %836 = vrot.lane.b32.xlu0 %v830, 125
          %v837 = vpop.permute.xlu0 %836
          %838 = vrot.lane.b32.xlu0 %v831, 125
          %v839 = vpop.permute.xlu0 %838
          %840 = vrot.lane.b32.xlu0 %v832, 125
          %v841 = vpop.permute.xlu0 %840
          %v845 = vadd.f32 %v823, %v837
          %v846 = vadd.f32 %v824, %v837
          %v847 = vadd.f32 %v825, %v839
          %v848 = vadd.f32 %v826, %v839
          %v849 = vadd.f32 %v827, %v841
          %v850 = vadd.f32 %v828, %v841
          %s851 = sld [smem:[#allocation7 + $0x4]]
          %s852 = sld [smem:[#allocation7 + $0x35]]
          %v853 = vld [vmem:[#allocation6 + $0x8] sm:$0xe0]
          %v854 = vld [vmem:[#allocation6 + $0x10] sm:$0xe0]
          %v855 = vld [vmem:[#allocation6 + $0x20] sm:$0xff]
          %v856 = vld [vmem:[#allocation6 + $0x28] sm:$0xff]
          %v857 = vld [vmem:[#allocation6 + $0x38] sm:$0x1f]
          %v858 = vld [vmem:[#allocation6 + $0x40] sm:$0x1f]
          %v859 = vstv %s851
          %v860 = vmul.f32 %v859, %v853
          %v861 = vmul.f32 %v859, %v854
          %v862 = vmul.f32 %v859, %v855
          %v863 = vmul.f32 %v859, %v856
          %v864 = vmul.f32 %v859, %v857
          %v865 = vmul.f32 %v859, %v858
          %872 = vrot.lane.b32.xlu0 %v860, 124
          %v873 = vpop.permute.xlu0 %872
          %874 = vrot.lane.b32.xlu0 %v861, 124
          %v875 = vpop.permute.xlu0 %874
          %876 = vrot.lane.b32.xlu0 %v862, 124
          %v877 = vpop.permute.xlu0 %876
          %878 = vrot.lane.b32.xlu0 %v863, 124
          %v879 = vpop.permute.xlu0 %878
          %880 = vrot.lane.b32.xlu0 %v864, 124
          %v881 = vpop.permute.xlu0 %880
          %882 = vrot.lane.b32.xlu0 %v865, 124
          %v883 = vpop.permute.xlu0 %882
          %vm884 = vcmask 1014784
          %v885 = vsel %vm884, %v873, %v875
          %v886 = vsel %vm884, %v877, %v879
          %v887 = vsel %vm884, %v881, %v883
          %v894 = vadd.f32 %v845, %v873
          %v895 = vadd.f32 %v846, %v885
          %v896 = vadd.f32 %v847, %v877
          %v897 = vadd.f32 %v848, %v886
          %v898 = vadd.f32 %v849, %v881
          %v899 = vadd.f32 %v850, %v887
          %v900 = vld [vmem:[%s313 + $0x8] sm:$0xe0]
          %v901 = vld [vmem:[%s313 + $0x10] sm:$0xe0]
          %v902 = vld [vmem:[%s313 + $0x20] sm:$0xff]
          %v903 = vld [vmem:[%s313 + $0x28] sm:$0xff]
          %v904 = vld [vmem:[%s313 + $0x38] sm:$0x1f]
          %v905 = vld [vmem:[%s313 + $0x40] sm:$0x1f]
          %v906 = vstv %s852
          %v907 = vmul.f32 %v906, %v900
          %v908 = vmul.f32 %v906, %v901
          %v909 = vmul.f32 %v906, %v902
          %v910 = vmul.f32 %v906, %v903
          %v911 = vmul.f32 %v906, %v904
          %v912 = vmul.f32 %v906, %v905
          %919 = vrot.lane.b32.xlu0 %v907, 124
          %v920 = vpop.permute.xlu0 %919
          %921 = vrot.lane.b32.xlu0 %v908, 124
          %v922 = vpop.permute.xlu0 %921
          %923 = vrot.lane.b32.xlu0 %v909, 124
          %v924 = vpop.permute.xlu0 %923
          %925 = vrot.lane.b32.xlu0 %v910, 124
          %v926 = vpop.permute.xlu0 %925
          %927 = vrot.lane.b32.xlu0 %v911, 124
          %v928 = vpop.permute.xlu0 %927
          %929 = vrot.lane.b32.xlu0 %v912, 124
          %v930 = vpop.permute.xlu0 %929
          %v931 = vsel %vm884, %v920, %v922
          %v932 = vsel %vm884, %v924, %v926
          %v933 = vsel %vm884, %v928, %v930
          %v940 = vadd.f32 %v894, %v920
          %v941 = vadd.f32 %v895, %v931
          %v942 = vadd.f32 %v896, %v924
          %v943 = vadd.f32 %v897, %v932
          %v944 = vadd.f32 %v898, %v928
          %v945 = vadd.f32 %v899, %v933
          %s946 = sld [smem:[#allocation7 + $0x5]]
          %s947 = sld [smem:[#allocation7 + $0x36]]
          %v948 = vstv %s946
          %v949 = vmul.f32 %v948, %v853
          %v950 = vmul.f32 %v948, %v854
          %v951 = vmul.f32 %v948, %v855
          %v952 = vmul.f32 %v948, %v856
          %v953 = vmul.f32 %v948, %v857
          %v954 = vmul.f32 %v948, %v858
          %961 = vrot.lane.b32.xlu0 %v949, 123
          %v962 = vpop.permute.xlu0 %961
          %963 = vrot.lane.b32.xlu0 %v950, 123
          %v964 = vpop.permute.xlu0 %963
          %965 = vrot.lane.b32.xlu0 %v951, 123
          %v966 = vpop.permute.xlu0 %965
          %967 = vrot.lane.b32.xlu0 %v952, 123
          %v968 = vpop.permute.xlu0 %967
          %969 = vrot.lane.b32.xlu0 %v953, 123
          %v970 = vpop.permute.xlu0 %969
          %971 = vrot.lane.b32.xlu0 %v954, 123
          %v972 = vpop.permute.xlu0 %971
          %vm973 = vcmask 1006592
          %v974 = vsel %vm973, %v962, %v964
          %v975 = vsel %vm973, %v966, %v968
          %v976 = vsel %vm973, %v970, %v972
          %v983 = vadd.f32 %v940, %v962
          %v984 = vadd.f32 %v941, %v974
          %v985 = vadd.f32 %v942, %v966
          %v986 = vadd.f32 %v943, %v975
          %v987 = vadd.f32 %v944, %v970
          %v988 = vadd.f32 %v945, %v976
          %v989 = vstv %s947
          %v990 = vmul.f32 %v989, %v900
          %v991 = vmul.f32 %v989, %v901
          %v992 = vmul.f32 %v989, %v902
          %v993 = vmul.f32 %v989, %v903
          %v994 = vmul.f32 %v989, %v904
          %v995 = vmul.f32 %v989, %v905
          %1002 = vrot.lane.b32.xlu0 %v990, 123
          %v1003 = vpop.permute.xlu0 %1002
          %1004 = vrot.lane.b32.xlu0 %v991, 123
          %v1005 = vpop.permute.xlu0 %1004
          %1006 = vrot.lane.b32.xlu0 %v992, 123
          %v1007 = vpop.permute.xlu0 %1006
          %1008 = vrot.lane.b32.xlu0 %v993, 123
          %v1009 = vpop.permute.xlu0 %1008
          %1010 = vrot.lane.b32.xlu0 %v994, 123
          %v1011 = vpop.permute.xlu0 %1010
          %1012 = vrot.lane.b32.xlu0 %v995, 123
          %v1013 = vpop.permute.xlu0 %1012
          %v1014 = vsel %vm973, %v1003, %v1005
          %v1015 = vsel %vm973, %v1007, %v1009
          %v1016 = vsel %vm973, %v1011, %v1013
          %v1023 = vadd.f32 %v983, %v1003
          %v1024 = vadd.f32 %v984, %v1014
          %v1025 = vadd.f32 %v985, %v1007
          %v1026 = vadd.f32 %v986, %v1015
          %v1027 = vadd.f32 %v987, %v1011
          %v1028 = vadd.f32 %v988, %v1016
          %s1029 = sld [smem:[#allocation7 + $0x6]]
          %s1030 = sld [smem:[#allocation7 + $0x37]]
          %v1031 = vstv %s1029
          %v1032 = vmul.f32 %v1031, %v853
          %v1033 = vmul.f32 %v1031, %v854
          %v1034 = vmul.f32 %v1031, %v855
          %v1035 = vmul.f32 %v1031, %v856
          %v1036 = vmul.f32 %v1031, %v857
          %v1037 = vmul.f32 %v1031, %v858
          %1044 = vrot.lane.b32.xlu0 %v1032, 122
          %v1045 = vpop.permute.xlu0 %1044
          %1046 = vrot.lane.b32.xlu0 %v1033, 122
          %v1047 = vpop.permute.xlu0 %1046
          %1048 = vrot.lane.b32.xlu0 %v1034, 122
          %v1049 = vpop.permute.xlu0 %1048
          %1050 = vrot.lane.b32.xlu0 %v1035, 122
          %v1051 = vpop.permute.xlu0 %1050
          %1052 = vrot.lane.b32.xlu0 %v1036, 122
          %v1053 = vpop.permute.xlu0 %1052
          %1054 = vrot.lane.b32.xlu0 %v1037, 122
          %v1055 = vpop.permute.xlu0 %1054
          %vm1056 = vcmask 998400
          %v1057 = vsel %vm1056, %v1045, %v1047
          %v1058 = vsel %vm1056, %v1049, %v1051
          %v1059 = vsel %vm1056, %v1053, %v1055
          %v1066 = vadd.f32 %v1023, %v1045
          %v1067 = vadd.f32 %v1024, %v1057
          %v1068 = vadd.f32 %v1025, %v1049
          %v1069 = vadd.f32 %v1026, %v1058
          %v1070 = vadd.f32 %v1027, %v1053
          %v1071 = vadd.f32 %v1028, %v1059
          %v1072 = vstv %s1030
          %v1073 = vmul.f32 %v1072, %v900
          %v1074 = vmul.f32 %v1072, %v901
          %v1075 = vmul.f32 %v1072, %v902
          %v1076 = vmul.f32 %v1072, %v903
          %v1077 = vmul.f32 %v1072, %v904
          %v1078 = vmul.f32 %v1072, %v905
          %1085 = vrot.lane.b32.xlu0 %v1073, 122
          %v1086 = vpop.permute.xlu0 %1085
          %1087 = vrot.lane.b32.xlu0 %v1074, 122
          %v1088 = vpop.permute.xlu0 %1087
          %1089 = vrot.lane.b32.xlu0 %v1075, 122
          %v1090 = vpop.permute.xlu0 %1089
          %1091 = vrot.lane.b32.xlu0 %v1076, 122
          %v1092 = vpop.permute.xlu0 %1091
          %1093 = vrot.lane.b32.xlu0 %v1077, 122
          %v1094 = vpop.permute.xlu0 %1093
          %1095 = vrot.lane.b32.xlu0 %v1078, 122
          %v1096 = vpop.permute.xlu0 %1095
          %v1097 = vsel %vm1056, %v1086, %v1088
          %v1098 = vsel %vm1056, %v1090, %v1092
          %v1099 = vsel %vm1056, %v1094, %v1096
          %v1106 = vadd.f32 %v1066, %v1086
          %v1107 = vadd.f32 %v1067, %v1097
          %v1108 = vadd.f32 %v1068, %v1090
          %v1109 = vadd.f32 %v1069, %v1098
          %v1110 = vadd.f32 %v1070, %v1094
          %v1111 = vadd.f32 %v1071, %v1099
          %s1112 = sld [smem:[#allocation7 + $0x7]]
          %s1113 = sld [smem:[#allocation7 + $0x38]]
          %v1114 = vld [vmem:[#allocation6] sm:$0xc0]
          %v1115 = vld [vmem:[#allocation6 + $0x8] sm:$0xc0]
          %v1116 = vld [vmem:[#allocation6 + $0x30] sm:$0x3f]
          %v1117 = vld [vmem:[#allocation6 + $0x38] sm:$0x3f]
          %v1118 = vstv %s1112
          %v1119 = vmul.f32 %v1118, %v1114
          %v1120 = vmul.f32 %v1118, %v1115
          %v1121 = vmul.f32 %v1118, %v603
          %v1122 = vmul.f32 %v1118, %v604
          %v1123 = vmul.f32 %v1118, %v1116
          %v1124 = vmul.f32 %v1118, %v1117
          %vm1131 = vcmask 1046528
          %v1132 = vrot.slane %v1119, 1
          %v1133 = vrot.slane %v1121, 1
          %v1134 = vsel %vm1131, %v1132, %v1133
          %v1135 = vrot.slane %v1120, 1
          %v1136 = vrot.slane %v1122, 1
          %v1137 = vsel %vm1131, %v1135, %v1136
          %v1138 = vrot.slane %v1123, 1
          %v1139 = vsel %vm1131, %v1133, %v1138
          %v1140 = vrot.slane %v1124, 1
          %v1141 = vsel %vm1131, %v1136, %v1140
          %v1148 = vadd.f32 %v1106, %v1134
          %v1149 = vadd.f32 %v1107, %v1137
          %v1150 = vadd.f32 %v1108, %v1139
          %v1151 = vadd.f32 %v1109, %v1141
          %v1152 = vadd.f32 %v1110, %v1138
          %v1153 = vadd.f32 %v1111, %v1140
          %v1154 = vld [vmem:[%s313] sm:$0xc0]
          %v1155 = vld [vmem:[%s313 + $0x8] sm:$0xc0]
          %v1156 = vld [vmem:[%s313 + $0x30] sm:$0x3f]
          %v1157 = vld [vmem:[%s313 + $0x38] sm:$0x3f]
          %v1158 = vstv %s1113
          %v1159 = vmul.f32 %v1158, %v1154
          %v1160 = vmul.f32 %v1158, %v1155
          %v1161 = vmul.f32 %v1158, %v622
          %v1162 = vmul.f32 %v1158, %v623
          %v1163 = vmul.f32 %v1158, %v1156
          %v1164 = vmul.f32 %v1158, %v1157
          %v1171 = vrot.slane %v1159, 1
          %v1172 = vrot.slane %v1161, 1
          %v1173 = vsel %vm1131, %v1171, %v1172
          %v1174 = vrot.slane %v1160, 1
          %v1175 = vrot.slane %v1162, 1
          %v1176 = vsel %vm1131, %v1174, %v1175
          %v1177 = vrot.slane %v1163, 1
          %v1178 = vsel %vm1131, %v1172, %v1177
          %v1179 = vrot.slane %v1164, 1
          %v1180 = vsel %vm1131, %v1175, %v1179
          %v1187 = vadd.f32 %v1148, %v1173
          %v1188 = vadd.f32 %v1149, %v1176
          %v1189 = vadd.f32 %v1150, %v1178
          %v1190 = vadd.f32 %v1151, %v1180
          %v1191 = vadd.f32 %v1152, %v1177
          %v1192 = vadd.f32 %v1153, %v1179
          %s1193 = sld [smem:[#allocation7 + $0x8]]
          %s1194 = sld [smem:[#allocation7 + $0x39]]
          %v1195 = vstv %s1193
          %v1196 = vmul.f32 %v1195, %v1114
          %v1197 = vmul.f32 %v1195, %v1115
          %v1198 = vmul.f32 %v1195, %v603
          %v1199 = vmul.f32 %v1195, %v604
          %v1200 = vmul.f32 %v1195, %v1116
          %v1201 = vmul.f32 %v1195, %v1117
          %v1208 = vrot.slane %v1196, 1
          %v1209 = vrot.slane %v1198, 1
          %v1210 = vsel %vm1131, %v1208, %v1209
          %v1211 = vrot.slane %v1197, 1
          %v1212 = vrot.slane %v1199, 1
          %v1213 = vsel %vm1131, %v1211, %v1212
          %v1214 = vrot.slane %v1200, 1
          %v1215 = vsel %vm1131, %v1209, %v1214
          %v1216 = vrot.slane %v1201, 1
          %v1217 = vsel %vm1131, %v1212, %v1216
          %1218 = vrot.lane.b32.xlu0 %v1210, 127
          %v1219 = vpop.permute.xlu0 %1218
          %1220 = vrot.lane.b32.xlu0 %v1213, 127
          %v1221 = vpop.permute.xlu0 %1220
          %1222 = vrot.lane.b32.xlu0 %v1215, 127
          %v1223 = vpop.permute.xlu0 %1222
          %1224 = vrot.lane.b32.xlu0 %v1217, 127
          %v1225 = vpop.permute.xlu0 %1224
          %1226 = vrot.lane.b32.xlu0 %v1214, 127
          %v1227 = vpop.permute.xlu0 %1226
          %1228 = vrot.lane.b32.xlu0 %v1216, 127
          %v1229 = vpop.permute.xlu0 %1228
          %v1230 = vsel %vm666, %v1219, %v1221
          %v1231 = vsel %vm666, %v1223, %v1225
          %v1232 = vsel %vm666, %v1227, %v1229
          %v1239 = vadd.f32 %v1187, %v1230
          %v1240 = vadd.f32 %v1188, %v1221
          %v1241 = vadd.f32 %v1189, %v1231
          %v1242 = vadd.f32 %v1190, %v1225
          %v1243 = vadd.f32 %v1191, %v1232
          %v1244 = vadd.f32 %v1192, %v1229
          %v1245 = vstv %s1194
          %v1246 = vmul.f32 %v1245, %v1154
          %v1247 = vmul.f32 %v1245, %v1155
          %v1248 = vmul.f32 %v1245, %v622
          %v1249 = vmul.f32 %v1245, %v623
          %v1250 = vmul.f32 %v1245, %v1156
          %v1251 = vmul.f32 %v1245, %v1157
          %v1258 = vrot.slane %v1246, 1
          %v1259 = vrot.slane %v1248, 1
          %v1260 = vsel %vm1131, %v1258, %v1259
          %v1261 = vrot.slane %v1247, 1
          %v1262 = vrot.slane %v1249, 1
          %v1263 = vsel %vm1131, %v1261, %v1262
          %v1264 = vrot.slane %v1250, 1
          %v1265 = vsel %vm1131, %v1259, %v1264
          %v1266 = vrot.slane %v1251, 1
          %v1267 = vsel %vm1131, %v1262, %v1266
          %1268 = vrot.lane.b32.xlu0 %v1260, 127
          %v1269 = vpop.permute.xlu0 %1268
          %1270 = vrot.lane.b32.xlu0 %v1263, 127
          %v1271 = vpop.permute.xlu0 %1270
          %1272 = vrot.lane.b32.xlu0 %v1265, 127
          %v1273 = vpop.permute.xlu0 %1272
          %1274 = vrot.lane.b32.xlu0 %v1267, 127
          %v1275 = vpop.permute.xlu0 %1274
          %1276 = vrot.lane.b32.xlu0 %v1264, 127
          %v1277 = vpop.permute.xlu0 %1276
          %1278 = vrot.lane.b32.xlu0 %v1266, 127
          %v1279 = vpop.permute.xlu0 %1278
          %v1280 = vsel %vm666, %v1269, %v1271
          %v1281 = vsel %vm666, %v1273, %v1275
          %v1282 = vsel %vm666, %v1277, %v1279
          %v1289 = vadd.f32 %v1239, %v1280
          %v1290 = vadd.f32 %v1240, %v1271
          %v1291 = vadd.f32 %v1241, %v1281
          %v1292 = vadd.f32 %v1242, %v1275
          %v1293 = vadd.f32 %v1243, %v1282
          %v1294 = vadd.f32 %v1244, %v1279
          %s1295 = sld [smem:[#allocation7 + $0x9]]
          %s1296 = sld [smem:[#allocation7 + $0x3a]]
          %v1297 = vstv %s1295
          %v1298 = vmul.f32 %v1297, %v1114
          %v1299 = vmul.f32 %v1297, %v1115
          %v1300 = vmul.f32 %v1297, %v603
          %v1301 = vmul.f32 %v1297, %v604
          %v1302 = vmul.f32 %v1297, %v1116
          %v1303 = vmul.f32 %v1297, %v1117
          %v1310 = vrot.slane %v1298, 1
          %v1311 = vrot.slane %v1300, 1
          %v1312 = vsel %vm1131, %v1310, %v1311
          %v1313 = vrot.slane %v1299, 1
          %v1314 = vrot.slane %v1301, 1
          %v1315 = vsel %vm1131, %v1313, %v1314
          %v1316 = vrot.slane %v1302, 1
          %v1317 = vsel %vm1131, %v1311, %v1316
          %v1318 = vrot.slane %v1303, 1
          %v1319 = vsel %vm1131, %v1314, %v1318
          %1320 = vrot.lane.b32.xlu0 %v1312, 126
          %v1321 = vpop.permute.xlu0 %1320
          %1322 = vrot.lane.b32.xlu0 %v1315, 126
          %v1323 = vpop.permute.xlu0 %1322
          %1324 = vrot.lane.b32.xlu0 %v1317, 126
          %v1325 = vpop.permute.xlu0 %1324
          %1326 = vrot.lane.b32.xlu0 %v1319, 126
          %v1327 = vpop.permute.xlu0 %1326
          %1328 = vrot.lane.b32.xlu0 %v1316, 126
          %v1329 = vpop.permute.xlu0 %1328
          %1330 = vrot.lane.b32.xlu0 %v1318, 126
          %v1331 = vpop.permute.xlu0 %1330
          %v1332 = vsel %vm749, %v1321, %v1323
          %v1333 = vsel %vm749, %v1325, %v1327
          %v1334 = vsel %vm749, %v1329, %v1331
          %v1341 = vadd.f32 %v1289, %v1332
          %v1342 = vadd.f32 %v1290, %v1323
          %v1343 = vadd.f32 %v1291, %v1333
          %v1344 = vadd.f32 %v1292, %v1327
          %v1345 = vadd.f32 %v1293, %v1334
          %v1346 = vadd.f32 %v1294, %v1331
          %v1347 = vstv %s1296
          %v1348 = vmul.f32 %v1347, %v1154
          %v1349 = vmul.f32 %v1347, %v1155
          %v1350 = vmul.f32 %v1347, %v622
          %v1351 = vmul.f32 %v1347, %v623
          %v1352 = vmul.f32 %v1347, %v1156
          %v1353 = vmul.f32 %v1347, %v1157
          %v1360 = vrot.slane %v1348, 1
          %v1361 = vrot.slane %v1350, 1
          %v1362 = vsel %vm1131, %v1360, %v1361
          %v1363 = vrot.slane %v1349, 1
          %v1364 = vrot.slane %v1351, 1
          %v1365 = vsel %vm1131, %v1363, %v1364
          %v1366 = vrot.slane %v1352, 1
          %v1367 = vsel %vm1131, %v1361, %v1366
          %v1368 = vrot.slane %v1353, 1
          %v1369 = vsel %vm1131, %v1364, %v1368
          %1370 = vrot.lane.b32.xlu0 %v1362, 126
          %v1371 = vpop.permute.xlu0 %1370
          %1372 = vrot.lane.b32.xlu0 %v1365, 126
          %v1373 = vpop.permute.xlu0 %1372
          %1374 = vrot.lane.b32.xlu0 %v1367, 126
          %v1375 = vpop.permute.xlu0 %1374
          %1376 = vrot.lane.b32.xlu0 %v1369, 126
          %v1377 = vpop.permute.xlu0 %1376
          %1378 = vrot.lane.b32.xlu0 %v1366, 126
          %v1379 = vpop.permute.xlu0 %1378
          %1380 = vrot.lane.b32.xlu0 %v1368, 126
          %v1381 = vpop.permute.xlu0 %1380
          %v1382 = vsel %vm749, %v1371, %v1373
          %v1383 = vsel %vm749, %v1375, %v1377
          %v1384 = vsel %vm749, %v1379, %v1381
          %v1391 = vadd.f32 %v1341, %v1382
          %v1392 = vadd.f32 %v1342, %v1373
          %v1393 = vadd.f32 %v1343, %v1383
          %v1394 = vadd.f32 %v1344, %v1377
          %v1395 = vadd.f32 %v1345, %v1384
          %v1396 = vadd.f32 %v1346, %v1381
          %s1397 = sld [smem:[#allocation7 + $0xa]]
          %s1398 = sld [smem:[#allocation7 + $0x3b]]
          %v1399 = vstv %s1397
          %v1400 = vmul.f32 %v1399, %v1115
          %v1401 = vmul.f32 %v1399, %v604
          %v1402 = vmul.f32 %v1399, %v1117
          %v1406 = vrot.slane %v1400, 1
          %v1407 = vrot.slane %v1401, 1
          %v1408 = vsel %vm1131, %v1406, %v1407
          %v1409 = vrot.slane %v1402, 1
          %v1410 = vsel %vm1131, %v1407, %v1409
          %1411 = vrot.lane.b32.xlu0 %v1408, 125
          %v1412 = vpop.permute.xlu0 %1411
          %1413 = vrot.lane.b32.xlu0 %v1410, 125
          %v1414 = vpop.permute.xlu0 %1413
          %1415 = vrot.lane.b32.xlu0 %v1409, 125
          %v1416 = vpop.permute.xlu0 %1415
          %v1420 = vadd.f32 %v1391, %v1412
          %v1421 = vadd.f32 %v1392, %v1412
          %v1422 = vadd.f32 %v1393, %v1414
          %v1423 = vadd.f32 %v1394, %v1414
          %v1424 = vadd.f32 %v1395, %v1416
          %v1425 = vadd.f32 %v1396, %v1416
          %v1426 = vstv %s1398
          %v1427 = vmul.f32 %v1426, %v1155
          %v1428 = vmul.f32 %v1426, %v623
          %v1429 = vmul.f32 %v1426, %v1157
          %v1433 = vrot.slane %v1427, 1
          %v1434 = vrot.slane %v1428, 1
          %v1435 = vsel %vm1131, %v1433, %v1434
          %v1436 = vrot.slane %v1429, 1
          %v1437 = vsel %vm1131, %v1434, %v1436
          %1438 = vrot.lane.b32.xlu0 %v1435, 125
          %v1439 = vpop.permute.xlu0 %1438
          %1440 = vrot.lane.b32.xlu0 %v1437, 125
          %v1441 = vpop.permute.xlu0 %1440
          %1442 = vrot.lane.b32.xlu0 %v1436, 125
          %v1443 = vpop.permute.xlu0 %1442
          %v1447 = vadd.f32 %v1420, %v1439
          %v1448 = vadd.f32 %v1421, %v1439
          %v1449 = vadd.f32 %v1422, %v1441
          %v1450 = vadd.f32 %v1423, %v1441
          %v1451 = vadd.f32 %v1424, %v1443
          %v1452 = vadd.f32 %v1425, %v1443
          %s1453 = sld [smem:[#allocation7 + $0xb]]
          %s1454 = sld [smem:[#allocation7 + $0x3c]]
          %v1455 = vld [vmem:[#allocation6 + $0x8] sm:$0xc0]
          %v1456 = vld [vmem:[#allocation6 + $0x10] sm:$0xc0]
          %v1457 = vld [vmem:[#allocation6 + $0x38] sm:$0x3f]
          %v1458 = vld [vmem:[#allocation6 + $0x40] sm:$0x3f]
          %v1459 = vstv %s1453
          %v1460 = vmul.f32 %v1459, %v1455
          %v1461 = vmul.f32 %v1459, %v1456
          %v1462 = vmul.f32 %v1459, %v855
          %v1463 = vmul.f32 %v1459, %v856
          %v1464 = vmul.f32 %v1459, %v1457
          %v1465 = vmul.f32 %v1459, %v1458
          %v1472 = vrot.slane %v1460, 1
          %v1473 = vrot.slane %v1462, 1
          %v1474 = vsel %vm1131, %v1472, %v1473
          %v1475 = vrot.slane %v1461, 1
          %v1476 = vrot.slane %v1463, 1
          %v1477 = vsel %vm1131, %v1475, %v1476
          %v1478 = vrot.slane %v1464, 1
          %v1479 = vsel %vm1131, %v1473, %v1478
          %v1480 = vrot.slane %v1465, 1
          %v1481 = vsel %vm1131, %v1476, %v1480
          %1482 = vrot.lane.b32.xlu0 %v1474, 124
          %v1483 = vpop.permute.xlu0 %1482
          %1484 = vrot.lane.b32.xlu0 %v1477, 124
          %v1485 = vpop.permute.xlu0 %1484
          %1486 = vrot.lane.b32.xlu0 %v1479, 124
          %v1487 = vpop.permute.xlu0 %1486
          %1488 = vrot.lane.b32.xlu0 %v1481, 124
          %v1489 = vpop.permute.xlu0 %1488
          %1490 = vrot.lane.b32.xlu0 %v1478, 124
          %v1491 = vpop.permute.xlu0 %1490
          %1492 = vrot.lane.b32.xlu0 %v1480, 124
          %v1493 = vpop.permute.xlu0 %1492
          %v1494 = vsel %vm884, %v1483, %v1485
          %v1495 = vsel %vm884, %v1487, %v1489
          %v1496 = vsel %vm884, %v1491, %v1493
          %v1503 = vadd.f32 %v1447, %v1483
          %v1504 = vadd.f32 %v1448, %v1494
          %v1505 = vadd.f32 %v1449, %v1487
          %v1506 = vadd.f32 %v1450, %v1495
          %v1507 = vadd.f32 %v1451, %v1491
          %v1508 = vadd.f32 %v1452, %v1496
          %v1509 = vld [vmem:[%s313 + $0x8] sm:$0xc0]
          %v1510 = vld [vmem:[%s313 + $0x10] sm:$0xc0]
          %v1511 = vld [vmem:[%s313 + $0x38] sm:$0x3f]
          %v1512 = vld [vmem:[%s313 + $0x40] sm:$0x3f]
          %v1513 = vstv %s1454
          %v1514 = vmul.f32 %v1513, %v1509
          %v1515 = vmul.f32 %v1513, %v1510
          %v1516 = vmul.f32 %v1513, %v902
          %v1517 = vmul.f32 %v1513, %v903
          %v1518 = vmul.f32 %v1513, %v1511
          %v1519 = vmul.f32 %v1513, %v1512
          %v1526 = vrot.slane %v1514, 1
          %v1527 = vrot.slane %v1516, 1
          %v1528 = vsel %vm1131, %v1526, %v1527
          %v1529 = vrot.slane %v1515, 1
          %v1530 = vrot.slane %v1517, 1
          %v1531 = vsel %vm1131, %v1529, %v1530
          %v1532 = vrot.slane %v1518, 1
          %v1533 = vsel %vm1131, %v1527, %v1532
          %v1534 = vrot.slane %v1519, 1
          %v1535 = vsel %vm1131, %v1530, %v1534
          %1536 = vrot.lane.b32.xlu0 %v1528, 124
          %v1537 = vpop.permute.xlu0 %1536
          %1538 = vrot.lane.b32.xlu0 %v1531, 124
          %v1539 = vpop.permute.xlu0 %1538
          %1540 = vrot.lane.b32.xlu0 %v1533, 124
          %v1541 = vpop.permute.xlu0 %1540
          %1542 = vrot.lane.b32.xlu0 %v1535, 124
          %v1543 = vpop.permute.xlu0 %1542
          %1544 = vrot.lane.b32.xlu0 %v1532, 124
          %v1545 = vpop.permute.xlu0 %1544
          %1546 = vrot.lane.b32.xlu0 %v1534, 124
          %v1547 = vpop.permute.xlu0 %1546
          %v1548 = vsel %vm884, %v1537, %v1539
          %v1549 = vsel %vm884, %v1541, %v1543
          %v1550 = vsel %vm884, %v1545, %v1547
          %v1557 = vadd.f32 %v1503, %v1537
          %v1558 = vadd.f32 %v1504, %v1548
          %v1559 = vadd.f32 %v1505, %v1541
          %v1560 = vadd.f32 %v1506, %v1549
          %v1561 = vadd.f32 %v1507, %v1545
          %v1562 = vadd.f32 %v1508, %v1550
          %s1563 = sld [smem:[#allocation7 + $0xc]]
          %s1564 = sld [smem:[#allocation7 + $0x3d]]
          %v1565 = vstv %s1563
          %v1566 = vmul.f32 %v1565, %v1455
          %v1567 = vmul.f32 %v1565, %v1456
          %v1568 = vmul.f32 %v1565, %v855
          %v1569 = vmul.f32 %v1565, %v856
          %v1570 = vmul.f32 %v1565, %v1457
          %v1571 = vmul.f32 %v1565, %v1458
          %v1578 = vrot.slane %v1566, 1
          %v1579 = vrot.slane %v1568, 1
          %v1580 = vsel %vm1131, %v1578, %v1579
          %v1581 = vrot.slane %v1567, 1
          %v1582 = vrot.slane %v1569, 1
          %v1583 = vsel %vm1131, %v1581, %v1582
          %v1584 = vrot.slane %v1570, 1
          %v1585 = vsel %vm1131, %v1579, %v1584
          %v1586 = vrot.slane %v1571, 1
          %v1587 = vsel %vm1131, %v1582, %v1586
          %1588 = vrot.lane.b32.xlu0 %v1580, 123
          %v1589 = vpop.permute.xlu0 %1588
          %1590 = vrot.lane.b32.xlu0 %v1583, 123
          %v1591 = vpop.permute.xlu0 %1590
          %1592 = vrot.lane.b32.xlu0 %v1585, 123
          %v1593 = vpop.permute.xlu0 %1592
          %1594 = vrot.lane.b32.xlu0 %v1587, 123
          %v1595 = vpop.permute.xlu0 %1594
          %1596 = vrot.lane.b32.xlu0 %v1584, 123
          %v1597 = vpop.permute.xlu0 %1596
          %1598 = vrot.lane.b32.xlu0 %v1586, 123
          %v1599 = vpop.permute.xlu0 %1598
          %v1600 = vsel %vm973, %v1589, %v1591
          %v1601 = vsel %vm973, %v1593, %v1595
          %v1602 = vsel %vm973, %v1597, %v1599
          %v1609 = vadd.f32 %v1557, %v1589
          %v1610 = vadd.f32 %v1558, %v1600
          %v1611 = vadd.f32 %v1559, %v1593
          %v1612 = vadd.f32 %v1560, %v1601
          %v1613 = vadd.f32 %v1561, %v1597
          %v1614 = vadd.f32 %v1562, %v1602
          %v1615 = vstv %s1564
          %v1616 = vmul.f32 %v1615, %v1509
          %v1617 = vmul.f32 %v1615, %v1510
          %v1618 = vmul.f32 %v1615, %v902
          %v1619 = vmul.f32 %v1615, %v903
          %v1620 = vmul.f32 %v1615, %v1511
          %v1621 = vmul.f32 %v1615, %v1512
          %v1628 = vrot.slane %v1616, 1
          %v1629 = vrot.slane %v1618, 1
          %v1630 = vsel %vm1131, %v1628, %v1629
          %v1631 = vrot.slane %v1617, 1
          %v1632 = vrot.slane %v1619, 1
          %v1633 = vsel %vm1131, %v1631, %v1632
          %v1634 = vrot.slane %v1620, 1
          %v1635 = vsel %vm1131, %v1629, %v1634
          %v1636 = vrot.slane %v1621, 1
          %v1637 = vsel %vm1131, %v1632, %v1636
          %1638 = vrot.lane.b32.xlu0 %v1630, 123
          %v1639 = vpop.permute.xlu0 %1638
          %1640 = vrot.lane.b32.xlu0 %v1633, 123
          %v1641 = vpop.permute.xlu0 %1640
          %1642 = vrot.lane.b32.xlu0 %v1635, 123
          %v1643 = vpop.permute.xlu0 %1642
          %1644 = vrot.lane.b32.xlu0 %v1637, 123
          %v1645 = vpop.permute.xlu0 %1644
          %1646 = vrot.lane.b32.xlu0 %v1634, 123
          %v1647 = vpop.permute.xlu0 %1646
          %1648 = vrot.lane.b32.xlu0 %v1636, 123
          %v1649 = vpop.permute.xlu0 %1648
          %v1650 = vsel %vm973, %v1639, %v1641
          %v1651 = vsel %vm973, %v1643, %v1645
          %v1652 = vsel %vm973, %v1647, %v1649
          %v1659 = vadd.f32 %v1609, %v1639
          %v1660 = vadd.f32 %v1610, %v1650
          %v1661 = vadd.f32 %v1611, %v1643
          %v1662 = vadd.f32 %v1612, %v1651
          %v1663 = vadd.f32 %v1613, %v1647
          %v1664 = vadd.f32 %v1614, %v1652
          %s1665 = sld [smem:[#allocation7 + $0xd]]
          %s1666 = sld [smem:[#allocation7 + $0x3e]]
          %v1667 = vstv %s1665
          %v1668 = vmul.f32 %v1667, %v1455
          %v1669 = vmul.f32 %v1667, %v1456
          %v1670 = vmul.f32 %v1667, %v855
          %v1671 = vmul.f32 %v1667, %v856
          %v1672 = vmul.f32 %v1667, %v1457
          %v1673 = vmul.f32 %v1667, %v1458
          %v1680 = vrot.slane %v1668, 1
          %v1681 = vrot.slane %v1670, 1
          %v1682 = vsel %vm1131, %v1680, %v1681
          %v1683 = vrot.slane %v1669, 1
          %v1684 = vrot.slane %v1671, 1
          %v1685 = vsel %vm1131, %v1683, %v1684
          %v1686 = vrot.slane %v1672, 1
          %v1687 = vsel %vm1131, %v1681, %v1686
          %v1688 = vrot.slane %v1673, 1
          %v1689 = vsel %vm1131, %v1684, %v1688
          %1690 = vrot.lane.b32.xlu0 %v1682, 122
          %v1691 = vpop.permute.xlu0 %1690
          %1692 = vrot.lane.b32.xlu0 %v1685, 122
          %v1693 = vpop.permute.xlu0 %1692
          %1694 = vrot.lane.b32.xlu0 %v1687, 122
          %v1695 = vpop.permute.xlu0 %1694
          %1696 = vrot.lane.b32.xlu0 %v1689, 122
          %v1697 = vpop.permute.xlu0 %1696
          %1698 = vrot.lane.b32.xlu0 %v1686, 122
          %v1699 = vpop.permute.xlu0 %1698
          %1700 = vrot.lane.b32.xlu0 %v1688, 122
          %v1701 = vpop.permute.xlu0 %1700
          %v1702 = vsel %vm1056, %v1691, %v1693
          %v1703 = vsel %vm1056, %v1695, %v1697
          %v1704 = vsel %vm1056, %v1699, %v1701
          %v1711 = vadd.f32 %v1659, %v1691
          %v1712 = vadd.f32 %v1660, %v1702
          %v1713 = vadd.f32 %v1661, %v1695
          %v1714 = vadd.f32 %v1662, %v1703
          %v1715 = vadd.f32 %v1663, %v1699
          %v1716 = vadd.f32 %v1664, %v1704
          %v1717 = vstv %s1666
          %v1718 = vmul.f32 %v1717, %v1509
          %v1719 = vmul.f32 %v1717, %v1510
          %v1720 = vmul.f32 %v1717, %v902
          %v1721 = vmul.f32 %v1717, %v903
          %v1722 = vmul.f32 %v1717, %v1511
          %v1723 = vmul.f32 %v1717, %v1512
          %v1730 = vrot.slane %v1718, 1
          %v1731 = vrot.slane %v1720, 1
          %v1732 = vsel %vm1131, %v1730, %v1731
          %v1733 = vrot.slane %v1719, 1
          %v1734 = vrot.slane %v1721, 1
          %v1735 = vsel %vm1131, %v1733, %v1734
          %v1736 = vrot.slane %v1722, 1
          %v1737 = vsel %vm1131, %v1731, %v1736
          %v1738 = vrot.slane %v1723, 1
          %v1739 = vsel %vm1131, %v1734, %v1738
          %1740 = vrot.lane.b32.xlu0 %v1732, 122
          %v1741 = vpop.permute.xlu0 %1740
          %1742 = vrot.lane.b32.xlu0 %v1735, 122
          %v1743 = vpop.permute.xlu0 %1742
          %1744 = vrot.lane.b32.xlu0 %v1737, 122
          %v1745 = vpop.permute.xlu0 %1744
          %1746 = vrot.lane.b32.xlu0 %v1739, 122
          %v1747 = vpop.permute.xlu0 %1746
          %1748 = vrot.lane.b32.xlu0 %v1736, 122
          %v1749 = vpop.permute.xlu0 %1748
          %1750 = vrot.lane.b32.xlu0 %v1738, 122
          %v1751 = vpop.permute.xlu0 %1750
          %v1752 = vsel %vm1056, %v1741, %v1743
          %v1753 = vsel %vm1056, %v1745, %v1747
          %v1754 = vsel %vm1056, %v1749, %v1751
          %v1761 = vadd.f32 %v1711, %v1741
          %v1762 = vadd.f32 %v1712, %v1752
          %v1763 = vadd.f32 %v1713, %v1745
          %v1764 = vadd.f32 %v1714, %v1753
          %v1765 = vadd.f32 %v1715, %v1749
          %v1766 = vadd.f32 %v1716, %v1754
          %s1767 = sld [smem:[#allocation7 + $0xe]]
          %s1768 = sld [smem:[#allocation7 + $0x3f]]
          %v1769 = vld [vmem:[#allocation6] sm:$0x80]
          %v1770 = vld [vmem:[#allocation6 + $0x8] sm:$0x80]
          %v1771 = vld [vmem:[#allocation6 + $0x30] sm:$0x7f]
          %v1772 = vld [vmem:[#allocation6 + $0x38] sm:$0x7f]
          %v1773 = vstv %s1767
          %v1774 = vmul.f32 %v1773, %v1769
          %v1775 = vmul.f32 %v1773, %v1770
          %v1776 = vmul.f32 %v1773, %v603
          %v1777 = vmul.f32 %v1773, %v604
          %v1778 = vmul.f32 %v1773, %v1771
          %v1779 = vmul.f32 %v1773, %v1772
          %vm1786 = vcmask 1045504
          %v1787 = vrot.slane %v1774, 2
          %v1788 = vrot.slane %v1776, 2
          %v1789 = vsel %vm1786, %v1787, %v1788
          %v1790 = vrot.slane %v1775, 2
          %v1791 = vrot.slane %v1777, 2
          %v1792 = vsel %vm1786, %v1790, %v1791
          %v1793 = vrot.slane %v1778, 2
          %v1794 = vsel %vm1786, %v1788, %v1793
          %v1795 = vrot.slane %v1779, 2
          %v1796 = vsel %vm1786, %v1791, %v1795
          %v1803 = vadd.f32 %v1761, %v1789
          %v1804 = vadd.f32 %v1762, %v1792
          %v1805 = vadd.f32 %v1763, %v1794
          %v1806 = vadd.f32 %v1764, %v1796
          %v1807 = vadd.f32 %v1765, %v1793
          %v1808 = vadd.f32 %v1766, %v1795
          %v1809 = vld [vmem:[%s313] sm:$0x80]
          %v1810 = vld [vmem:[%s313 + $0x8] sm:$0x80]
          %v1811 = vld [vmem:[%s313 + $0x30] sm:$0x7f]
          %v1812 = vld [vmem:[%s313 + $0x38] sm:$0x7f]
          %v1813 = vstv %s1768
          %v1814 = vmul.f32 %v1813, %v1809
          %v1815 = vmul.f32 %v1813, %v1810
          %v1816 = vmul.f32 %v1813, %v622
          %v1817 = vmul.f32 %v1813, %v623
          %v1818 = vmul.f32 %v1813, %v1811
          %v1819 = vmul.f32 %v1813, %v1812
          %v1826 = vrot.slane %v1814, 2
          %v1827 = vrot.slane %v1816, 2
          %v1828 = vsel %vm1786, %v1826, %v1827
          %v1829 = vrot.slane %v1815, 2
          %v1830 = vrot.slane %v1817, 2
          %v1831 = vsel %vm1786, %v1829, %v1830
          %v1832 = vrot.slane %v1818, 2
          %v1833 = vsel %vm1786, %v1827, %v1832
          %v1834 = vrot.slane %v1819, 2
          %v1835 = vsel %vm1786, %v1830, %v1834
          %v1842 = vadd.f32 %v1803, %v1828
          %v1843 = vadd.f32 %v1804, %v1831
          %v1844 = vadd.f32 %v1805, %v1833
          %v1845 = vadd.f32 %v1806, %v1835
          %v1846 = vadd.f32 %v1807, %v1832
          %v1847 = vadd.f32 %v1808, %v1834
          %s1848 = sld [smem:[#allocation7 + $0xf]]
          %s1849 = sld [smem:[#allocation7 + $0x40]]
          %v1850 = vstv %s1848
          %v1851 = vmul.f32 %v1850, %v1769
          %v1852 = vmul.f32 %v1850, %v1770
          %v1853 = vmul.f32 %v1850, %v603
          %v1854 = vmul.f32 %v1850, %v604
          %v1855 = vmul.f32 %v1850, %v1771
          %v1856 = vmul.f32 %v1850, %v1772
          %v1863 = vrot.slane %v1851, 2
          %v1864 = vrot.slane %v1853, 2
          %v1865 = vsel %vm1786, %v1863, %v1864
          %v1866 = vrot.slane %v1852, 2
          %v1867 = vrot.slane %v1854, 2
          %v1868 = vsel %vm1786, %v1866, %v1867
          %v1869 = vrot.slane %v1855, 2
          %v1870 = vsel %vm1786, %v1864, %v1869
          %v1871 = vrot.slane %v1856, 2
          %v1872 = vsel %vm1786, %v1867, %v1871
          %1873 = vrot.lane.b32.xlu0 %v1865, 127
          %v1874 = vpop.permute.xlu0 %1873
          %1875 = vrot.lane.b32.xlu0 %v1868, 127
          %v1876 = vpop.permute.xlu0 %1875
          %1877 = vrot.lane.b32.xlu0 %v1870, 127
          %v1878 = vpop.permute.xlu0 %1877
          %1879 = vrot.lane.b32.xlu0 %v1872, 127
          %v1880 = vpop.permute.xlu0 %1879
          %1881 = vrot.lane.b32.xlu0 %v1869, 127
          %v1882 = vpop.permute.xlu0 %1881
          %1883 = vrot.lane.b32.xlu0 %v1871, 127
          %v1884 = vpop.permute.xlu0 %1883
          %v1885 = vsel %vm666, %v1874, %v1876
          %v1886 = vsel %vm666, %v1878, %v1880
          %v1887 = vsel %vm666, %v1882, %v1884
          %v1894 = vadd.f32 %v1842, %v1885
          %v1895 = vadd.f32 %v1843, %v1876
          %v1896 = vadd.f32 %v1844, %v1886
          %v1897 = vadd.f32 %v1845, %v1880
          %v1898 = vadd.f32 %v1846, %v1887
          %v1899 = vadd.f32 %v1847, %v1884
          %v1900 = vstv %s1849
          %v1901 = vmul.f32 %v1900, %v1809
          %v1902 = vmul.f32 %v1900, %v1810
          %v1903 = vmul.f32 %v1900, %v622
          %v1904 = vmul.f32 %v1900, %v623
          %v1905 = vmul.f32 %v1900, %v1811
          %v1906 = vmul.f32 %v1900, %v1812
          %v1913 = vrot.slane %v1901, 2
          %v1914 = vrot.slane %v1903, 2
          %v1915 = vsel %vm1786, %v1913, %v1914
          %v1916 = vrot.slane %v1902, 2
          %v1917 = vrot.slane %v1904, 2
          %v1918 = vsel %vm1786, %v1916, %v1917
          %v1919 = vrot.slane %v1905, 2
          %v1920 = vsel %vm1786, %v1914, %v1919
          %v1921 = vrot.slane %v1906, 2
          %v1922 = vsel %vm1786, %v1917, %v1921
          %1923 = vrot.lane.b32.xlu0 %v1915, 127
          %v1924 = vpop.permute.xlu0 %1923
          %1925 = vrot.lane.b32.xlu0 %v1918, 127
          %v1926 = vpop.permute.xlu0 %1925
          %1927 = vrot.lane.b32.xlu0 %v1920, 127
          %v1928 = vpop.permute.xlu0 %1927
          %1929 = vrot.lane.b32.xlu0 %v1922, 127
          %v1930 = vpop.permute.xlu0 %1929
          %1931 = vrot.lane.b32.xlu0 %v1919, 127
          %v1932 = vpop.permute.xlu0 %1931
          %1933 = vrot.lane.b32.xlu0 %v1921, 127
          %v1934 = vpop.permute.xlu0 %1933
          %v1935 = vsel %vm666, %v1924, %v1926
          %v1936 = vsel %vm666, %v1928, %v1930
          %v1937 = vsel %vm666, %v1932, %v1934
          %v1944 = vadd.f32 %v1894, %v1935
          %v1945 = vadd.f32 %v1895, %v1926
          %v1946 = vadd.f32 %v1896, %v1936
          %v1947 = vadd.f32 %v1897, %v1930
          %v1948 = vadd.f32 %v1898, %v1937
          %v1949 = vadd.f32 %v1899, %v1934
          %s1950 = sld [smem:[#allocation7 + $0x10]]
          %s1951 = sld [smem:[#allocation7 + $0x41]]
          %v1952 = vstv %s1950
          %v1953 = vmul.f32 %v1952, %v1769
          %v1954 = vmul.f32 %v1952, %v1770
          %v1955 = vmul.f32 %v1952, %v603
          %v1956 = vmul.f32 %v1952, %v604
          %v1957 = vmul.f32 %v1952, %v1771
          %v1958 = vmul.f32 %v1952, %v1772
          %v1965 = vrot.slane %v1953, 2
          %v1966 = vrot.slane %v1955, 2
          %v1967 = vsel %vm1786, %v1965, %v1966
          %v1968 = vrot.slane %v1954, 2
          %v1969 = vrot.slane %v1956, 2
          %v1970 = vsel %vm1786, %v1968, %v1969
          %v1971 = vrot.slane %v1957, 2
          %v1972 = vsel %vm1786, %v1966, %v1971
          %v1973 = vrot.slane %v1958, 2
          %v1974 = vsel %vm1786, %v1969, %v1973
          %1975 = vrot.lane.b32.xlu0 %v1967, 126
          %v1976 = vpop.permute.xlu0 %1975
          %1977 = vrot.lane.b32.xlu0 %v1970, 126
          %v1978 = vpop.permute.xlu0 %1977
          %1979 = vrot.lane.b32.xlu0 %v1972, 126
          %v1980 = vpop.permute.xlu0 %1979
          %1981 = vrot.lane.b32.xlu0 %v1974, 126
          %v1982 = vpop.permute.xlu0 %1981
          %1983 = vrot.lane.b32.xlu0 %v1971, 126
          %v1984 = vpop.permute.xlu0 %1983
          %1985 = vrot.lane.b32.xlu0 %v1973, 126
          %v1986 = vpop.permute.xlu0 %1985
          %v1987 = vsel %vm749, %v1976, %v1978
          %v1988 = vsel %vm749, %v1980, %v1982
          %v1989 = vsel %vm749, %v1984, %v1986
          %v1996 = vadd.f32 %v1944, %v1987
          %v1997 = vadd.f32 %v1945, %v1978
          %v1998 = vadd.f32 %v1946, %v1988
          %v1999 = vadd.f32 %v1947, %v1982
          %v2000 = vadd.f32 %v1948, %v1989
          %v2001 = vadd.f32 %v1949, %v1986
          %v2002 = vstv %s1951
          %v2003 = vmul.f32 %v2002, %v1809
          %v2004 = vmul.f32 %v2002, %v1810
          %v2005 = vmul.f32 %v2002, %v622
          %v2006 = vmul.f32 %v2002, %v623
          %v2007 = vmul.f32 %v2002, %v1811
          %v2008 = vmul.f32 %v2002, %v1812
          %v2015 = vrot.slane %v2003, 2
          %v2016 = vrot.slane %v2005, 2
          %v2017 = vsel %vm1786, %v2015, %v2016
          %v2018 = vrot.slane %v2004, 2
          %v2019 = vrot.slane %v2006, 2
          %v2020 = vsel %vm1786, %v2018, %v2019
          %v2021 = vrot.slane %v2007, 2
          %v2022 = vsel %vm1786, %v2016, %v2021
          %v2023 = vrot.slane %v2008, 2
          %v2024 = vsel %vm1786, %v2019, %v2023
          %2025 = vrot.lane.b32.xlu0 %v2017, 126
          %v2026 = vpop.permute.xlu0 %2025
          %2027 = vrot.lane.b32.xlu0 %v2020, 126
          %v2028 = vpop.permute.xlu0 %2027
          %2029 = vrot.lane.b32.xlu0 %v2022, 126
          %v2030 = vpop.permute.xlu0 %2029
          %2031 = vrot.lane.b32.xlu0 %v2024, 126
          %v2032 = vpop.permute.xlu0 %2031
          %2033 = vrot.lane.b32.xlu0 %v2021, 126
          %v2034 = vpop.permute.xlu0 %2033
          %2035 = vrot.lane.b32.xlu0 %v2023, 126
          %v2036 = vpop.permute.xlu0 %2035
          %v2037 = vsel %vm749, %v2026, %v2028
          %v2038 = vsel %vm749, %v2030, %v2032
          %v2039 = vsel %vm749, %v2034, %v2036
          %v2046 = vadd.f32 %v1996, %v2037
          %v2047 = vadd.f32 %v1997, %v2028
          %v2048 = vadd.f32 %v1998, %v2038
          %v2049 = vadd.f32 %v1999, %v2032
          %v2050 = vadd.f32 %v2000, %v2039
          %v2051 = vadd.f32 %v2001, %v2036
          %s2052 = sld [smem:[#allocation7 + $0x11]]
          %s2053 = sld [smem:[#allocation7 + $0x42]]
          %v2054 = vstv %s2052
          %v2055 = vmul.f32 %v2054, %v1770
          %v2056 = vmul.f32 %v2054, %v604
          %v2057 = vmul.f32 %v2054, %v1772
          %v2061 = vrot.slane %v2055, 2
          %v2062 = vrot.slane %v2056, 2
          %v2063 = vsel %vm1786, %v2061, %v2062
          %v2064 = vrot.slane %v2057, 2
          %v2065 = vsel %vm1786, %v2062, %v2064
          %2066 = vrot.lane.b32.xlu0 %v2063, 125
          %v2067 = vpop.permute.xlu0 %2066
          %2068 = vrot.lane.b32.xlu0 %v2065, 125
          %v2069 = vpop.permute.xlu0 %2068
          %2070 = vrot.lane.b32.xlu0 %v2064, 125
          %v2071 = vpop.permute.xlu0 %2070
          %v2075 = vadd.f32 %v2046, %v2067
          %v2076 = vadd.f32 %v2047, %v2067
          %v2077 = vadd.f32 %v2048, %v2069
          %v2078 = vadd.f32 %v2049, %v2069
          %v2079 = vadd.f32 %v2050, %v2071
          %v2080 = vadd.f32 %v2051, %v2071
          %v2081 = vstv %s2053
          %v2082 = vmul.f32 %v2081, %v1810
          %v2083 = vmul.f32 %v2081, %v623
          %v2084 = vmul.f32 %v2081, %v1812
          %v2088 = vrot.slane %v2082, 2
          %v2089 = vrot.slane %v2083, 2
          %v2090 = vsel %vm1786, %v2088, %v2089
          %v2091 = vrot.slane %v2084, 2
          %v2092 = vsel %vm1786, %v2089, %v2091
          %2093 = vrot.lane.b32.xlu0 %v2090, 125
          %v2094 = vpop.permute.xlu0 %2093
          %2095 = vrot.lane.b32.xlu0 %v2092, 125
          %v2096 = vpop.permute.xlu0 %2095
          %2097 = vrot.lane.b32.xlu0 %v2091, 125
          %v2098 = vpop.permute.xlu0 %2097
          %v2102 = vadd.f32 %v2075, %v2094
          %v2103 = vadd.f32 %v2076, %v2094
          %v2104 = vadd.f32 %v2077, %v2096
          %v2105 = vadd.f32 %v2078, %v2096
          %v2106 = vadd.f32 %v2079, %v2098
          %v2107 = vadd.f32 %v2080, %v2098
          %s2108 = sld [smem:[#allocation7 + $0x12]]
          %s2109 = sld [smem:[#allocation7 + $0x43]]
          %v2110 = vld [vmem:[#allocation6 + $0x8] sm:$0x80]
          %v2111 = vld [vmem:[#allocation6 + $0x10] sm:$0x80]
          %v2112 = vld [vmem:[#allocation6 + $0x38] sm:$0x7f]
          %v2113 = vld [vmem:[#allocation6 + $0x40] sm:$0x7f]
          %v2114 = vstv %s2108
          %v2115 = vmul.f32 %v2114, %v2110
          %v2116 = vmul.f32 %v2114, %v2111
          %v2117 = vmul.f32 %v2114, %v855
          %v2118 = vmul.f32 %v2114, %v856
          %v2119 = vmul.f32 %v2114, %v2112
          %v2120 = vmul.f32 %v2114, %v2113
          %v2127 = vrot.slane %v2115, 2
          %v2128 = vrot.slane %v2117, 2
          %v2129 = vsel %vm1786, %v2127, %v2128
          %v2130 = vrot.slane %v2116, 2
          %v2131 = vrot.slane %v2118, 2
          %v2132 = vsel %vm1786, %v2130, %v2131
          %v2133 = vrot.slane %v2119, 2
          %v2134 = vsel %vm1786, %v2128, %v2133
          %v2135 = vrot.slane %v2120, 2
          %v2136 = vsel %vm1786, %v2131, %v2135
          %2137 = vrot.lane.b32.xlu0 %v2129, 124
          %v2138 = vpop.permute.xlu0 %2137
          %2139 = vrot.lane.b32.xlu0 %v2132, 124
          %v2140 = vpop.permute.xlu0 %2139
          %2141 = vrot.lane.b32.xlu0 %v2134, 124
          %v2142 = vpop.permute.xlu0 %2141
          %2143 = vrot.lane.b32.xlu0 %v2136, 124
          %v2144 = vpop.permute.xlu0 %2143
          %2145 = vrot.lane.b32.xlu0 %v2133, 124
          %v2146 = vpop.permute.xlu0 %2145
          %2147 = vrot.lane.b32.xlu0 %v2135, 124
          %v2148 = vpop.permute.xlu0 %2147
          %v2149 = vsel %vm884, %v2138, %v2140
          %v2150 = vsel %vm884, %v2142, %v2144
          %v2151 = vsel %vm884, %v2146, %v2148
          %v2158 = vadd.f32 %v2102, %v2138
          %v2159 = vadd.f32 %v2103, %v2149
          %v2160 = vadd.f32 %v2104, %v2142
          %v2161 = vadd.f32 %v2105, %v2150
          %v2162 = vadd.f32 %v2106, %v2146
          %v2163 = vadd.f32 %v2107, %v2151
          %v2164 = vld [vmem:[%s313 + $0x8] sm:$0x80]
          %v2165 = vld [vmem:[%s313 + $0x10] sm:$0x80]
          %v2166 = vld [vmem:[%s313 + $0x38] sm:$0x7f]
          %v2167 = vld [vmem:[%s313 + $0x40] sm:$0x7f]
          %v2168 = vstv %s2109
          %v2169 = vmul.f32 %v2168, %v2164
          %v2170 = vmul.f32 %v2168, %v2165
          %v2171 = vmul.f32 %v2168, %v902
          %v2172 = vmul.f32 %v2168, %v903
          %v2173 = vmul.f32 %v2168, %v2166
          %v2174 = vmul.f32 %v2168, %v2167
          %v2181 = vrot.slane %v2169, 2
          %v2182 = vrot.slane %v2171, 2
          %v2183 = vsel %vm1786, %v2181, %v2182
          %v2184 = vrot.slane %v2170, 2
          %v2185 = vrot.slane %v2172, 2
          %v2186 = vsel %vm1786, %v2184, %v2185
          %v2187 = vrot.slane %v2173, 2
          %v2188 = vsel %vm1786, %v2182, %v2187
          %v2189 = vrot.slane %v2174, 2
          %v2190 = vsel %vm1786, %v2185, %v2189
          %2191 = vrot.lane.b32.xlu0 %v2183, 124
          %v2192 = vpop.permute.xlu0 %2191
          %2193 = vrot.lane.b32.xlu0 %v2186, 124
          %v2194 = vpop.permute.xlu0 %2193
          %2195 = vrot.lane.b32.xlu0 %v2188, 124
          %v2196 = vpop.permute.xlu0 %2195
          %2197 = vrot.lane.b32.xlu0 %v2190, 124
          %v2198 = vpop.permute.xlu0 %2197
          %2199 = vrot.lane.b32.xlu0 %v2187, 124
          %v2200 = vpop.permute.xlu0 %2199
          %2201 = vrot.lane.b32.xlu0 %v2189, 124
          %v2202 = vpop.permute.xlu0 %2201
          %v2203 = vsel %vm884, %v2192, %v2194
          %v2204 = vsel %vm884, %v2196, %v2198
          %v2205 = vsel %vm884, %v2200, %v2202
          %v2212 = vadd.f32 %v2158, %v2192
          %v2213 = vadd.f32 %v2159, %v2203
          %v2214 = vadd.f32 %v2160, %v2196
          %v2215 = vadd.f32 %v2161, %v2204
          %v2216 = vadd.f32 %v2162, %v2200
          %v2217 = vadd.f32 %v2163, %v2205
          %s2218 = sld [smem:[#allocation7 + $0x13]]
          %s2219 = sld [smem:[#allocation7 + $0x44]]
          %v2220 = vstv %s2218
          %v2221 = vmul.f32 %v2220, %v2110
          %v2222 = vmul.f32 %v2220, %v2111
          %v2223 = vmul.f32 %v2220, %v855
          %v2224 = vmul.f32 %v2220, %v856
          %v2225 = vmul.f32 %v2220, %v2112
          %v2226 = vmul.f32 %v2220, %v2113
          %v2233 = vrot.slane %v2221, 2
          %v2234 = vrot.slane %v2223, 2
          %v2235 = vsel %vm1786, %v2233, %v2234
          %v2236 = vrot.slane %v2222, 2
          %v2237 = vrot.slane %v2224, 2
          %v2238 = vsel %vm1786, %v2236, %v2237
          %v2239 = vrot.slane %v2225, 2
          %v2240 = vsel %vm1786, %v2234, %v2239
          %v2241 = vrot.slane %v2226, 2
          %v2242 = vsel %vm1786, %v2237, %v2241
          %2243 = vrot.lane.b32.xlu0 %v2235, 123
          %v2244 = vpop.permute.xlu0 %2243
          %2245 = vrot.lane.b32.xlu0 %v2238, 123
          %v2246 = vpop.permute.xlu0 %2245
          %2247 = vrot.lane.b32.xlu0 %v2240, 123
          %v2248 = vpop.permute.xlu0 %2247
          %2249 = vrot.lane.b32.xlu0 %v2242, 123
          %v2250 = vpop.permute.xlu0 %2249
          %2251 = vrot.lane.b32.xlu0 %v2239, 123
          %v2252 = vpop.permute.xlu0 %2251
          %2253 = vrot.lane.b32.xlu0 %v2241, 123
          %v2254 = vpop.permute.xlu0 %2253
          %v2255 = vsel %vm973, %v2244, %v2246
          %v2256 = vsel %vm973, %v2248, %v2250
          %v2257 = vsel %vm973, %v2252, %v2254
          %v2264 = vadd.f32 %v2212, %v2244
          %v2265 = vadd.f32 %v2213, %v2255
          %v2266 = vadd.f32 %v2214, %v2248
          %v2267 = vadd.f32 %v2215, %v2256
          %v2268 = vadd.f32 %v2216, %v2252
          %v2269 = vadd.f32 %v2217, %v2257
          %v2270 = vstv %s2219
          %v2271 = vmul.f32 %v2270, %v2164
          %v2272 = vmul.f32 %v2270, %v2165
          %v2273 = vmul.f32 %v2270, %v902
          %v2274 = vmul.f32 %v2270, %v903
          %v2275 = vmul.f32 %v2270, %v2166
          %v2276 = vmul.f32 %v2270, %v2167
          %v2283 = vrot.slane %v2271, 2
          %v2284 = vrot.slane %v2273, 2
          %v2285 = vsel %vm1786, %v2283, %v2284
          %v2286 = vrot.slane %v2272, 2
          %v2287 = vrot.slane %v2274, 2
          %v2288 = vsel %vm1786, %v2286, %v2287
          %v2289 = vrot.slane %v2275, 2
          %v2290 = vsel %vm1786, %v2284, %v2289
          %v2291 = vrot.slane %v2276, 2
          %v2292 = vsel %vm1786, %v2287, %v2291
          %2293 = vrot.lane.b32.xlu0 %v2285, 123
          %v2294 = vpop.permute.xlu0 %2293
          %2295 = vrot.lane.b32.xlu0 %v2288, 123
          %v2296 = vpop.permute.xlu0 %2295
          %2297 = vrot.lane.b32.xlu0 %v2290, 123
          %v2298 = vpop.permute.xlu0 %2297
          %2299 = vrot.lane.b32.xlu0 %v2292, 123
          %v2300 = vpop.permute.xlu0 %2299
          %2301 = vrot.lane.b32.xlu0 %v2289, 123
          %v2302 = vpop.permute.xlu0 %2301
          %2303 = vrot.lane.b32.xlu0 %v2291, 123
          %v2304 = vpop.permute.xlu0 %2303
          %v2305 = vsel %vm973, %v2294, %v2296
          %v2306 = vsel %vm973, %v2298, %v2300
          %v2307 = vsel %vm973, %v2302, %v2304
          %v2314 = vadd.f32 %v2264, %v2294
          %v2315 = vadd.f32 %v2265, %v2305
          %v2316 = vadd.f32 %v2266, %v2298
          %v2317 = vadd.f32 %v2267, %v2306
          %v2318 = vadd.f32 %v2268, %v2302
          %v2319 = vadd.f32 %v2269, %v2307
          %s2320 = sld [smem:[#allocation7 + $0x14]]
          %s2321 = sld [smem:[#allocation7 + $0x45]]
          %v2322 = vstv %s2320
          %v2323 = vmul.f32 %v2322, %v2110
          %v2324 = vmul.f32 %v2322, %v2111
          %v2325 = vmul.f32 %v2322, %v855
          %v2326 = vmul.f32 %v2322, %v856
          %v2327 = vmul.f32 %v2322, %v2112
          %v2328 = vmul.f32 %v2322, %v2113
          %v2335 = vrot.slane %v2323, 2
          %v2336 = vrot.slane %v2325, 2
          %v2337 = vsel %vm1786, %v2335, %v2336
          %v2338 = vrot.slane %v2324, 2
          %v2339 = vrot.slane %v2326, 2
          %v2340 = vsel %vm1786, %v2338, %v2339
          %v2341 = vrot.slane %v2327, 2
          %v2342 = vsel %vm1786, %v2336, %v2341
          %v2343 = vrot.slane %v2328, 2
          %v2344 = vsel %vm1786, %v2339, %v2343
          %2345 = vrot.lane.b32.xlu0 %v2337, 122
          %v2346 = vpop.permute.xlu0 %2345
          %2347 = vrot.lane.b32.xlu0 %v2340, 122
          %v2348 = vpop.permute.xlu0 %2347
          %2349 = vrot.lane.b32.xlu0 %v2342, 122
          %v2350 = vpop.permute.xlu0 %2349
          %2351 = vrot.lane.b32.xlu0 %v2344, 122
          %v2352 = vpop.permute.xlu0 %2351
          %2353 = vrot.lane.b32.xlu0 %v2341, 122
          %v2354 = vpop.permute.xlu0 %2353
          %2355 = vrot.lane.b32.xlu0 %v2343, 122
          %v2356 = vpop.permute.xlu0 %2355
          %v2357 = vsel %vm1056, %v2346, %v2348
          %v2358 = vsel %vm1056, %v2350, %v2352
          %v2359 = vsel %vm1056, %v2354, %v2356
          %v2366 = vadd.f32 %v2314, %v2346
          %v2367 = vadd.f32 %v2315, %v2357
          %v2368 = vadd.f32 %v2316, %v2350
          %v2369 = vadd.f32 %v2317, %v2358
          %v2370 = vadd.f32 %v2318, %v2354
          %v2371 = vadd.f32 %v2319, %v2359
          %v2372 = vstv %s2321
          %v2373 = vmul.f32 %v2372, %v2164
          %v2374 = vmul.f32 %v2372, %v2165
          %v2375 = vmul.f32 %v2372, %v902
          %v2376 = vmul.f32 %v2372, %v903
          %v2377 = vmul.f32 %v2372, %v2166
          %v2378 = vmul.f32 %v2372, %v2167
          %v2385 = vrot.slane %v2373, 2
          %v2386 = vrot.slane %v2375, 2
          %v2387 = vsel %vm1786, %v2385, %v2386
          %v2388 = vrot.slane %v2374, 2
          %v2389 = vrot.slane %v2376, 2
          %v2390 = vsel %vm1786, %v2388, %v2389
          %v2391 = vrot.slane %v2377, 2
          %v2392 = vsel %vm1786, %v2386, %v2391
          %v2393 = vrot.slane %v2378, 2
          %v2394 = vsel %vm1786, %v2389, %v2393
          %2395 = vrot.lane.b32.xlu0 %v2387, 122
          %v2396 = vpop.permute.xlu0 %2395
          %2397 = vrot.lane.b32.xlu0 %v2390, 122
          %v2398 = vpop.permute.xlu0 %2397
          %2399 = vrot.lane.b32.xlu0 %v2392, 122
          %v2400 = vpop.permute.xlu0 %2399
          %2401 = vrot.lane.b32.xlu0 %v2394, 122
          %v2402 = vpop.permute.xlu0 %2401
          %2403 = vrot.lane.b32.xlu0 %v2391, 122
          %v2404 = vpop.permute.xlu0 %2403
          %2405 = vrot.lane.b32.xlu0 %v2393, 122
          %v2406 = vpop.permute.xlu0 %2405
          %v2407 = vsel %vm1056, %v2396, %v2398
          %v2408 = vsel %vm1056, %v2400, %v2402
          %v2409 = vsel %vm1056, %v2404, %v2406
          %v2416 = vadd.f32 %v2366, %v2396
          %v2417 = vadd.f32 %v2367, %v2407
          %v2418 = vadd.f32 %v2368, %v2400
          %v2419 = vadd.f32 %v2369, %v2408
          %v2420 = vadd.f32 %v2370, %v2404
          %v2421 = vadd.f32 %v2371, %v2409
          %s2422 = sld [smem:[#allocation7 + $0x15]]
          %s2423 = sld [smem:[#allocation7 + $0x46]]
          %v2424 = vld [vmem:[#allocation6 + $0x30] sm:$0xff]
          %v2425 = vld [vmem:[#allocation6 + $0x38] sm:$0xff]
          %v2426 = vstv %s2422
          %v2427 = vmul.f32 %v2426, %v603
          %v2428 = vmul.f32 %v2426, %v604
          %v2429 = vmul.f32 %v2426, %v2424
          %v2430 = vmul.f32 %v2426, %v2425
          %vm2435 = vcmask 1044480
          %v2436 = vrot.slane %v2427, 3
          %v2437 = vrot.slane %v2428, 3
          %v2438 = vrot.slane %v2429, 3
          %v2439 = vsel %vm2435, %v2436, %v2438
          %v2440 = vrot.slane %v2430, 3
          %v2441 = vsel %vm2435, %v2437, %v2440
          %v2448 = vadd.f32 %v2416, %v2436
          %v2449 = vadd.f32 %v2417, %v2437
          %v2450 = vadd.f32 %v2418, %v2439
          %v2451 = vadd.f32 %v2419, %v2441
          %v2452 = vadd.f32 %v2420, %v2438
          %v2453 = vadd.f32 %v2421, %v2440
          %v2454 = vld [vmem:[%s313 + $0x30] sm:$0xff]
          %v2455 = vld [vmem:[%s313 + $0x38] sm:$0xff]
          %v2456 = vstv %s2423
          %v2457 = vmul.f32 %v2456, %v622
          %v2458 = vmul.f32 %v2456, %v623
          %v2459 = vmul.f32 %v2456, %v2454
          %v2460 = vmul.f32 %v2456, %v2455
          %v2465 = vrot.slane %v2457, 3
          %v2466 = vrot.slane %v2458, 3
          %v2467 = vrot.slane %v2459, 3
          %v2468 = vsel %vm2435, %v2465, %v2467
          %v2469 = vrot.slane %v2460, 3
          %v2470 = vsel %vm2435, %v2466, %v2469
          %v2477 = vadd.f32 %v2448, %v2465
          %v2478 = vadd.f32 %v2449, %v2466
          %v2479 = vadd.f32 %v2450, %v2468
          %v2480 = vadd.f32 %v2451, %v2470
          %v2481 = vadd.f32 %v2452, %v2467
          %v2482 = vadd.f32 %v2453, %v2469
          %s2483 = sld [smem:[#allocation7 + $0x16]]
          %s2484 = sld [smem:[#allocation7 + $0x47]]
          %v2485 = vstv %s2483
          %v2486 = vmul.f32 %v2485, %v603
          %v2487 = vmul.f32 %v2485, %v604
          %v2488 = vmul.f32 %v2485, %v2424
          %v2489 = vmul.f32 %v2485, %v2425
          %v2494 = vrot.slane %v2486, 3
          %v2495 = vrot.slane %v2487, 3
          %v2496 = vrot.slane %v2488, 3
          %v2497 = vsel %vm2435, %v2494, %v2496
          %v2498 = vrot.slane %v2489, 3
          %v2499 = vsel %vm2435, %v2495, %v2498
          %2500 = vrot.lane.b32.xlu0 %v2494, 127
          %v2501 = vpop.permute.xlu0 %2500
          %2502 = vrot.lane.b32.xlu0 %v2495, 127
          %v2503 = vpop.permute.xlu0 %2502
          %2504 = vrot.lane.b32.xlu0 %v2497, 127
          %v2505 = vpop.permute.xlu0 %2504
          %2506 = vrot.lane.b32.xlu0 %v2499, 127
          %v2507 = vpop.permute.xlu0 %2506
          %2508 = vrot.lane.b32.xlu0 %v2496, 127
          %v2509 = vpop.permute.xlu0 %2508
          %2510 = vrot.lane.b32.xlu0 %v2498, 127
          %v2511 = vpop.permute.xlu0 %2510
          %v2512 = vsel %vm666, %v2501, %v2503
          %v2513 = vsel %vm666, %v2505, %v2507
          %v2514 = vsel %vm666, %v2509, %v2511
          %v2521 = vadd.f32 %v2477, %v2512
          %v2522 = vadd.f32 %v2478, %v2503
          %v2523 = vadd.f32 %v2479, %v2513
          %v2524 = vadd.f32 %v2480, %v2507
          %v2525 = vadd.f32 %v2481, %v2514
          %v2526 = vadd.f32 %v2482, %v2511
          %v2527 = vstv %s2484
          %v2528 = vmul.f32 %v2527, %v622
          %v2529 = vmul.f32 %v2527, %v623
          %v2530 = vmul.f32 %v2527, %v2454
          %v2531 = vmul.f32 %v2527, %v2455
          %v2536 = vrot.slane %v2528, 3
          %v2537 = vrot.slane %v2529, 3
          %v2538 = vrot.slane %v2530, 3
          %v2539 = vsel %vm2435, %v2536, %v2538
          %v2540 = vrot.slane %v2531, 3
          %v2541 = vsel %vm2435, %v2537, %v2540
          %2542 = vrot.lane.b32.xlu0 %v2536, 127
          %v2543 = vpop.permute.xlu0 %2542
          %2544 = vrot.lane.b32.xlu0 %v2537, 127
          %v2545 = vpop.permute.xlu0 %2544
          %2546 = vrot.lane.b32.xlu0 %v2539, 127
          %v2547 = vpop.permute.xlu0 %2546
          %2548 = vrot.lane.b32.xlu0 %v2541, 127
          %v2549 = vpop.permute.xlu0 %2548
          %2550 = vrot.lane.b32.xlu0 %v2538, 127
          %v2551 = vpop.permute.xlu0 %2550
          %2552 = vrot.lane.b32.xlu0 %v2540, 127
          %v2553 = vpop.permute.xlu0 %2552
          %v2554 = vsel %vm666, %v2543, %v2545
          %v2555 = vsel %vm666, %v2547, %v2549
          %v2556 = vsel %vm666, %v2551, %v2553
          %v2563 = vadd.f32 %v2521, %v2554
          %v2564 = vadd.f32 %v2522, %v2545
          %v2565 = vadd.f32 %v2523, %v2555
          %v2566 = vadd.f32 %v2524, %v2549
          %v2567 = vadd.f32 %v2525, %v2556
          %v2568 = vadd.f32 %v2526, %v2553
          %s2569 = sld [smem:[#allocation7 + $0x17]]
          %s2570 = sld [smem:[#allocation7 + $0x48]]
          %v2571 = vstv %s2569
          %v2572 = vmul.f32 %v2571, %v603
          %v2573 = vmul.f32 %v2571, %v604
          %v2574 = vmul.f32 %v2571, %v2424
          %v2575 = vmul.f32 %v2571, %v2425
          %v2580 = vrot.slane %v2572, 3
          %v2581 = vrot.slane %v2573, 3
          %v2582 = vrot.slane %v2574, 3
          %v2583 = vsel %vm2435, %v2580, %v2582
          %v2584 = vrot.slane %v2575, 3
          %v2585 = vsel %vm2435, %v2581, %v2584
          %2586 = vrot.lane.b32.xlu0 %v2580, 126
          %v2587 = vpop.permute.xlu0 %2586
          %2588 = vrot.lane.b32.xlu0 %v2581, 126
          %v2589 = vpop.permute.xlu0 %2588
          %2590 = vrot.lane.b32.xlu0 %v2583, 126
          %v2591 = vpop.permute.xlu0 %2590
          %2592 = vrot.lane.b32.xlu0 %v2585, 126
          %v2593 = vpop.permute.xlu0 %2592
          %2594 = vrot.lane.b32.xlu0 %v2582, 126
          %v2595 = vpop.permute.xlu0 %2594
          %2596 = vrot.lane.b32.xlu0 %v2584, 126
          %v2597 = vpop.permute.xlu0 %2596
          %v2598 = vsel %vm749, %v2587, %v2589
          %v2599 = vsel %vm749, %v2591, %v2593
          %v2600 = vsel %vm749, %v2595, %v2597
          %v2607 = vadd.f32 %v2563, %v2598
          %v2608 = vadd.f32 %v2564, %v2589
          %v2609 = vadd.f32 %v2565, %v2599
          %v2610 = vadd.f32 %v2566, %v2593
          %v2611 = vadd.f32 %v2567, %v2600
          %v2612 = vadd.f32 %v2568, %v2597
          %v2613 = vstv %s2570
          %v2614 = vmul.f32 %v2613, %v622
          %v2615 = vmul.f32 %v2613, %v623
          %v2616 = vmul.f32 %v2613, %v2454
          %v2617 = vmul.f32 %v2613, %v2455
          %v2622 = vrot.slane %v2614, 3
          %v2623 = vrot.slane %v2615, 3
          %v2624 = vrot.slane %v2616, 3
          %v2625 = vsel %vm2435, %v2622, %v2624
          %v2626 = vrot.slane %v2617, 3
          %v2627 = vsel %vm2435, %v2623, %v2626
          %2628 = vrot.lane.b32.xlu0 %v2622, 126
          %v2629 = vpop.permute.xlu0 %2628
          %2630 = vrot.lane.b32.xlu0 %v2623, 126
          %v2631 = vpop.permute.xlu0 %2630
          %2632 = vrot.lane.b32.xlu0 %v2625, 126
          %v2633 = vpop.permute.xlu0 %2632
          %2634 = vrot.lane.b32.xlu0 %v2627, 126
          %v2635 = vpop.permute.xlu0 %2634
          %2636 = vrot.lane.b32.xlu0 %v2624, 126
          %v2637 = vpop.permute.xlu0 %2636
          %2638 = vrot.lane.b32.xlu0 %v2626, 126
          %v2639 = vpop.permute.xlu0 %2638
          %v2640 = vsel %vm749, %v2629, %v2631
          %v2641 = vsel %vm749, %v2633, %v2635
          %v2642 = vsel %vm749, %v2637, %v2639
          %v2649 = vadd.f32 %v2607, %v2640
          %v2650 = vadd.f32 %v2608, %v2631
          %v2651 = vadd.f32 %v2609, %v2641
          %v2652 = vadd.f32 %v2610, %v2635
          %v2653 = vadd.f32 %v2611, %v2642
          %v2654 = vadd.f32 %v2612, %v2639
          %s2655 = sld [smem:[#allocation7 + $0x18]]
          %s2656 = sld [smem:[#allocation7 + $0x49]]
          %v2657 = vstv %s2655
          %v2658 = vmul.f32 %v2657, %v604
          %v2659 = vmul.f32 %v2657, %v2425
          %v2662 = vrot.slane %v2658, 3
          %v2663 = vrot.slane %v2659, 3
          %v2664 = vsel %vm2435, %v2662, %v2663
          %2665 = vrot.lane.b32.xlu0 %v2662, 125
          %v2666 = vpop.permute.xlu0 %2665
          %2667 = vrot.lane.b32.xlu0 %v2664, 125
          %v2668 = vpop.permute.xlu0 %2667
          %2669 = vrot.lane.b32.xlu0 %v2663, 125
          %v2670 = vpop.permute.xlu0 %2669
          %v2674 = vadd.f32 %v2649, %v2666
          %v2675 = vadd.f32 %v2650, %v2666
          %v2676 = vadd.f32 %v2651, %v2668
          %v2677 = vadd.f32 %v2652, %v2668
          %v2678 = vadd.f32 %v2653, %v2670
          %v2679 = vadd.f32 %v2654, %v2670
          %v2680 = vstv %s2656
          %v2681 = vmul.f32 %v2680, %v623
          %v2682 = vmul.f32 %v2680, %v2455
          %v2685 = vrot.slane %v2681, 3
          %v2686 = vrot.slane %v2682, 3
          %v2687 = vsel %vm2435, %v2685, %v2686
          %2688 = vrot.lane.b32.xlu0 %v2685, 125
          %v2689 = vpop.permute.xlu0 %2688
          %2690 = vrot.lane.b32.xlu0 %v2687, 125
          %v2691 = vpop.permute.xlu0 %2690
          %2692 = vrot.lane.b32.xlu0 %v2686, 125
          %v2693 = vpop.permute.xlu0 %2692
          %v2697 = vadd.f32 %v2674, %v2689
          %v2698 = vadd.f32 %v2675, %v2689
          %v2699 = vadd.f32 %v2676, %v2691
          %v2700 = vadd.f32 %v2677, %v2691
          %v2701 = vadd.f32 %v2678, %v2693
          %v2702 = vadd.f32 %v2679, %v2693
          %s2703 = sld [smem:[#allocation7 + $0x19]]
          %s2704 = sld [smem:[#allocation7 + $0x4a]]
          %v2705 = vld [vmem:[#allocation6 + $0x38] sm:$0xff]
          %v2706 = vld [vmem:[#allocation6 + $0x40] sm:$0xff]
          %v2707 = vstv %s2703
          %v2708 = vmul.f32 %v2707, %v855
          %v2709 = vmul.f32 %v2707, %v856
          %v2710 = vmul.f32 %v2707, %v2705
          %v2711 = vmul.f32 %v2707, %v2706
          %v2716 = vrot.slane %v2708, 3
          %v2717 = vrot.slane %v2709, 3
          %v2718 = vrot.slane %v2710, 3
          %v2719 = vsel %vm2435, %v2716, %v2718
          %v2720 = vrot.slane %v2711, 3
          %v2721 = vsel %vm2435, %v2717, %v2720
          %2722 = vrot.lane.b32.xlu0 %v2716, 124
          %v2723 = vpop.permute.xlu0 %2722
          %2724 = vrot.lane.b32.xlu0 %v2717, 124
          %v2725 = vpop.permute.xlu0 %2724
          %2726 = vrot.lane.b32.xlu0 %v2719, 124
          %v2727 = vpop.permute.xlu0 %2726
          %2728 = vrot.lane.b32.xlu0 %v2721, 124
          %v2729 = vpop.permute.xlu0 %2728
          %2730 = vrot.lane.b32.xlu0 %v2718, 124
          %v2731 = vpop.permute.xlu0 %2730
          %2732 = vrot.lane.b32.xlu0 %v2720, 124
          %v2733 = vpop.permute.xlu0 %2732
          %v2734 = vsel %vm884, %v2723, %v2725
          %v2735 = vsel %vm884, %v2727, %v2729
          %v2736 = vsel %vm884, %v2731, %v2733
          %v2743 = vadd.f32 %v2697, %v2723
          %v2744 = vadd.f32 %v2698, %v2734
          %v2745 = vadd.f32 %v2699, %v2727
          %v2746 = vadd.f32 %v2700, %v2735
          %v2747 = vadd.f32 %v2701, %v2731
          %v2748 = vadd.f32 %v2702, %v2736
          %v2749 = vld [vmem:[%s313 + $0x38] sm:$0xff]
          %v2750 = vld [vmem:[%s313 + $0x40] sm:$0xff]
          %v2751 = vstv %s2704
          %v2752 = vmul.f32 %v2751, %v902
          %v2753 = vmul.f32 %v2751, %v903
          %v2754 = vmul.f32 %v2751, %v2749
          %v2755 = vmul.f32 %v2751, %v2750
          %v2760 = vrot.slane %v2752, 3
          %v2761 = vrot.slane %v2753, 3
          %v2762 = vrot.slane %v2754, 3
          %v2763 = vsel %vm2435, %v2760, %v2762
          %v2764 = vrot.slane %v2755, 3
          %v2765 = vsel %vm2435, %v2761, %v2764
          %2766 = vrot.lane.b32.xlu0 %v2760, 124
          %v2767 = vpop.permute.xlu0 %2766
          %2768 = vrot.lane.b32.xlu0 %v2761, 124
          %v2769 = vpop.permute.xlu0 %2768
          %2770 = vrot.lane.b32.xlu0 %v2763, 124
          %v2771 = vpop.permute.xlu0 %2770
          %2772 = vrot.lane.b32.xlu0 %v2765, 124
          %v2773 = vpop.permute.xlu0 %2772
          %2774 = vrot.lane.b32.xlu0 %v2762, 124
          %v2775 = vpop.permute.xlu0 %2774
          %2776 = vrot.lane.b32.xlu0 %v2764, 124
          %v2777 = vpop.permute.xlu0 %2776
          %v2778 = vsel %vm884, %v2767, %v2769
          %v2779 = vsel %vm884, %v2771, %v2773
          %v2780 = vsel %vm884, %v2775, %v2777
          %v2787 = vadd.f32 %v2743, %v2767
          %v2788 = vadd.f32 %v2744, %v2778
          %v2789 = vadd.f32 %v2745, %v2771
          %v2790 = vadd.f32 %v2746, %v2779
          %v2791 = vadd.f32 %v2747, %v2775
          %v2792 = vadd.f32 %v2748, %v2780
          %s2793 = sld [smem:[#allocation7 + $0x1a]]
          %s2794 = sld [smem:[#allocation7 + $0x4b]]
          %v2795 = vstv %s2793
          %v2796 = vmul.f32 %v2795, %v855
          %v2797 = vmul.f32 %v2795, %v856
          %v2798 = vmul.f32 %v2795, %v2705
          %v2799 = vmul.f32 %v2795, %v2706
          %v2804 = vrot.slane %v2796, 3
          %v2805 = vrot.slane %v2797, 3
          %v2806 = vrot.slane %v2798, 3
          %v2807 = vsel %vm2435, %v2804, %v2806
          %v2808 = vrot.slane %v2799, 3
          %v2809 = vsel %vm2435, %v2805, %v2808
          %2810 = vrot.lane.b32.xlu0 %v2804, 123
          %v2811 = vpop.permute.xlu0 %2810
          %2812 = vrot.lane.b32.xlu0 %v2805, 123
          %v2813 = vpop.permute.xlu0 %2812
          %2814 = vrot.lane.b32.xlu0 %v2807, 123
          %v2815 = vpop.permute.xlu0 %2814
          %2816 = vrot.lane.b32.xlu0 %v2809, 123
          %v2817 = vpop.permute.xlu0 %2816
          %2818 = vrot.lane.b32.xlu0 %v2806, 123
          %v2819 = vpop.permute.xlu0 %2818
          %2820 = vrot.lane.b32.xlu0 %v2808, 123
          %v2821 = vpop.permute.xlu0 %2820
          %v2822 = vsel %vm973, %v2811, %v2813
          %v2823 = vsel %vm973, %v2815, %v2817
          %v2824 = vsel %vm973, %v2819, %v2821
          %v2831 = vadd.f32 %v2787, %v2811
          %v2832 = vadd.f32 %v2788, %v2822
          %v2833 = vadd.f32 %v2789, %v2815
          %v2834 = vadd.f32 %v2790, %v2823
          %v2835 = vadd.f32 %v2791, %v2819
          %v2836 = vadd.f32 %v2792, %v2824
          %v2837 = vstv %s2794
          %v2838 = vmul.f32 %v2837, %v902
          %v2839 = vmul.f32 %v2837, %v903
          %v2840 = vmul.f32 %v2837, %v2749
          %v2841 = vmul.f32 %v2837, %v2750
          %v2846 = vrot.slane %v2838, 3
          %v2847 = vrot.slane %v2839, 3
          %v2848 = vrot.slane %v2840, 3
          %v2849 = vsel %vm2435, %v2846, %v2848
          %v2850 = vrot.slane %v2841, 3
          %v2851 = vsel %vm2435, %v2847, %v2850
          %2852 = vrot.lane.b32.xlu0 %v2846, 123
          %v2853 = vpop.permute.xlu0 %2852
          %2854 = vrot.lane.b32.xlu0 %v2847, 123
          %v2855 = vpop.permute.xlu0 %2854
          %2856 = vrot.lane.b32.xlu0 %v2849, 123
          %v2857 = vpop.permute.xlu0 %2856
          %2858 = vrot.lane.b32.xlu0 %v2851, 123
          %v2859 = vpop.permute.xlu0 %2858
          %2860 = vrot.lane.b32.xlu0 %v2848, 123
          %v2861 = vpop.permute.xlu0 %2860
          %2862 = vrot.lane.b32.xlu0 %v2850, 123
          %v2863 = vpop.permute.xlu0 %2862
          %v2864 = vsel %vm973, %v2853, %v2855
          %v2865 = vsel %vm973, %v2857, %v2859
          %v2866 = vsel %vm973, %v2861, %v2863
          %v2873 = vadd.f32 %v2831, %v2853
          %v2874 = vadd.f32 %v2832, %v2864
          %v2875 = vadd.f32 %v2833, %v2857
          %v2876 = vadd.f32 %v2834, %v2865
          %v2877 = vadd.f32 %v2835, %v2861
          %v2878 = vadd.f32 %v2836, %v2866
          %s2879 = sld [smem:[#allocation7 + $0x1b]]
          %s2880 = sld [smem:[#allocation7 + $0x4c]]
          %v2881 = vstv %s2879
          %v2882 = vmul.f32 %v2881, %v855
          %v2883 = vmul.f32 %v2881, %v856
          %v2884 = vmul.f32 %v2881, %v2705
          %v2885 = vmul.f32 %v2881, %v2706
          %v2890 = vrot.slane %v2882, 3
          %v2891 = vrot.slane %v2883, 3
          %v2892 = vrot.slane %v2884, 3
          %v2893 = vsel %vm2435, %v2890, %v2892
          %v2894 = vrot.slane %v2885, 3
          %v2895 = vsel %vm2435, %v2891, %v2894
          %2896 = vrot.lane.b32.xlu0 %v2890, 122
          %v2897 = vpop.permute.xlu0 %2896
          %2898 = vrot.lane.b32.xlu0 %v2891, 122
          %v2899 = vpop.permute.xlu0 %2898
          %2900 = vrot.lane.b32.xlu0 %v2893, 122
          %v2901 = vpop.permute.xlu0 %2900
          %2902 = vrot.lane.b32.xlu0 %v2895, 122
          %v2903 = vpop.permute.xlu0 %2902
          %2904 = vrot.lane.b32.xlu0 %v2892, 122
          %v2905 = vpop.permute.xlu0 %2904
          %2906 = vrot.lane.b32.xlu0 %v2894, 122
          %v2907 = vpop.permute.xlu0 %2906
          %v2908 = vsel %vm1056, %v2897, %v2899
          %v2909 = vsel %vm1056, %v2901, %v2903
          %v2910 = vsel %vm1056, %v2905, %v2907
          %v2917 = vadd.f32 %v2873, %v2897
          %v2918 = vadd.f32 %v2874, %v2908
          %v2919 = vadd.f32 %v2875, %v2901
          %v2920 = vadd.f32 %v2876, %v2909
          %v2921 = vadd.f32 %v2877, %v2905
          %v2922 = vadd.f32 %v2878, %v2910
          %v2923 = vstv %s2880
          %v2924 = vmul.f32 %v2923, %v902
          %v2925 = vmul.f32 %v2923, %v903
          %v2926 = vmul.f32 %v2923, %v2749
          %v2927 = vmul.f32 %v2923, %v2750
          %v2932 = vrot.slane %v2924, 3
          %v2933 = vrot.slane %v2925, 3
          %v2934 = vrot.slane %v2926, 3
          %v2935 = vsel %vm2435, %v2932, %v2934
          %v2936 = vrot.slane %v2927, 3
          %v2937 = vsel %vm2435, %v2933, %v2936
          %2938 = vrot.lane.b32.xlu0 %v2932, 122
          %v2939 = vpop.permute.xlu0 %2938
          %2940 = vrot.lane.b32.xlu0 %v2933, 122
          %v2941 = vpop.permute.xlu0 %2940
          %2942 = vrot.lane.b32.xlu0 %v2935, 122
          %v2943 = vpop.permute.xlu0 %2942
          %2944 = vrot.lane.b32.xlu0 %v2937, 122
          %v2945 = vpop.permute.xlu0 %2944
          %2946 = vrot.lane.b32.xlu0 %v2934, 122
          %v2947 = vpop.permute.xlu0 %2946
          %2948 = vrot.lane.b32.xlu0 %v2936, 122
          %v2949 = vpop.permute.xlu0 %2948
          %v2950 = vsel %vm1056, %v2939, %v2941
          %v2951 = vsel %vm1056, %v2943, %v2945
          %v2952 = vsel %vm1056, %v2947, %v2949
          %v2959 = vadd.f32 %v2917, %v2939
          %v2960 = vadd.f32 %v2918, %v2950
          %v2961 = vadd.f32 %v2919, %v2943
          %v2962 = vadd.f32 %v2920, %v2951
          %v2963 = vadd.f32 %v2921, %v2947
          %v2964 = vadd.f32 %v2922, %v2952
          %s2965 = sld [smem:[#allocation7 + $0x1c]]
          %s2966 = sld [smem:[#allocation7 + $0x4d]]
          %v2967 = vld [vmem:[#allocation6 + $0x18] sm:$0xfe]
          %v2968 = vld [vmem:[#allocation6 + $0x20] sm:$0xfe]
          %v2969 = vld [vmem:[#allocation6 + $0x30] sm:$0xff]
          %v2970 = vld [vmem:[#allocation6 + $0x38] sm:$0xff]
          %v2971 = vld [vmem:[#allocation6 + $0x48] sm:$0x1]
          %v2972 = vld [vmem:[#allocation6 + $0x50] sm:$0x1]
          %v2973 = vstv %s2965
          %v2974 = vmul.f32 %v2973, %v2967
          %v2975 = vmul.f32 %v2973, %v2968
          %v2976 = vmul.f32 %v2973, %v2969
          %v2977 = vmul.f32 %v2973, %v2970
          %v2978 = vmul.f32 %v2973, %v2971
          %v2979 = vmul.f32 %v2973, %v2972
          %v2986 = vrot.slane %v2974, 4
          %v2987 = vrot.slane %v2975, 4
          %v2988 = vrot.slane %v2976, 4
          %v2989 = vsel %vm203, %v2986, %v2988
          %v2990 = vrot.slane %v2977, 4
          %v2991 = vsel %vm203, %v2987, %v2990
          %v2992 = vrot.slane %v2978, 4
          %v2993 = vsel %vm203, %v2988, %v2992
          %v2994 = vrot.slane %v2979, 4
          %v2995 = vsel %vm203, %v2990, %v2994
          %v3002 = vadd.f32 %v2959, %v2986
          %v3003 = vadd.f32 %v2960, %v2987
          %v3004 = vadd.f32 %v2961, %v2989
          %v3005 = vadd.f32 %v2962, %v2991
          %v3006 = vadd.f32 %v2963, %v2993
          %v3007 = vadd.f32 %v2964, %v2995
          %v3008 = vld [vmem:[%s313 + $0x18] sm:$0xfe]
          %v3009 = vld [vmem:[%s313 + $0x20] sm:$0xfe]
          %v3010 = vld [vmem:[%s313 + $0x30] sm:$0xff]
          %v3011 = vld [vmem:[%s313 + $0x38] sm:$0xff]
          %v3012 = vld [vmem:[%s313 + $0x48] sm:$0x1]
          %v3013 = vld [vmem:[%s313 + $0x50] sm:$0x1]
          %v3014 = vstv %s2966
          %v3015 = vmul.f32 %v3014, %v3008
          %v3016 = vmul.f32 %v3014, %v3009
          %v3017 = vmul.f32 %v3014, %v3010
          %v3018 = vmul.f32 %v3014, %v3011
          %v3019 = vmul.f32 %v3014, %v3012
          %v3020 = vmul.f32 %v3014, %v3013
          %v3027 = vrot.slane %v3015, 4
          %v3028 = vrot.slane %v3016, 4
          %v3029 = vrot.slane %v3017, 4
          %v3030 = vsel %vm203, %v3027, %v3029
          %v3031 = vrot.slane %v3018, 4
          %v3032 = vsel %vm203, %v3028, %v3031
          %v3033 = vrot.slane %v3019, 4
          %v3034 = vsel %vm203, %v3029, %v3033
          %v3035 = vrot.slane %v3020, 4
          %v3036 = vsel %vm203, %v3031, %v3035
          %v3043 = vadd.f32 %v3002, %v3027
          %v3044 = vadd.f32 %v3003, %v3028
          %v3045 = vadd.f32 %v3004, %v3030
          %v3046 = vadd.f32 %v3005, %v3032
          %v3047 = vadd.f32 %v3006, %v3034
          %v3048 = vadd.f32 %v3007, %v3036
          %s3049 = sld [smem:[#allocation7 + $0x1d]]
          %s3050 = sld [smem:[#allocation7 + $0x4e]]
          %v3051 = vstv %s3049
          %v3052 = vmul.f32 %v3051, %v2967
          %v3053 = vmul.f32 %v3051, %v2968
          %v3054 = vmul.f32 %v3051, %v2969
          %v3055 = vmul.f32 %v3051, %v2970
          %v3056 = vmul.f32 %v3051, %v2971
          %v3057 = vmul.f32 %v3051, %v2972
          %v3064 = vrot.slane %v3052, 4
          %v3065 = vrot.slane %v3053, 4
          %v3066 = vrot.slane %v3054, 4
          %v3067 = vsel %vm203, %v3064, %v3066
          %v3068 = vrot.slane %v3055, 4
          %v3069 = vsel %vm203, %v3065, %v3068
          %v3070 = vrot.slane %v3056, 4
          %v3071 = vsel %vm203, %v3066, %v3070
          %v3072 = vrot.slane %v3057, 4
          %v3073 = vsel %vm203, %v3068, %v3072
          %3074 = vrot.lane.b32.xlu0 %v3064, 127
          %v3075 = vpop.permute.xlu0 %3074
          %3076 = vrot.lane.b32.xlu0 %v3065, 127
          %v3077 = vpop.permute.xlu0 %3076
          %3078 = vrot.lane.b32.xlu0 %v3067, 127
          %v3079 = vpop.permute.xlu0 %3078
          %3080 = vrot.lane.b32.xlu0 %v3069, 127
          %v3081 = vpop.permute.xlu0 %3080
          %3082 = vrot.lane.b32.xlu0 %v3071, 127
          %v3083 = vpop.permute.xlu0 %3082
          %3084 = vrot.lane.b32.xlu0 %v3073, 127
          %v3085 = vpop.permute.xlu0 %3084
          %v3086 = vsel %vm666, %v3075, %v3077
          %v3087 = vsel %vm666, %v3079, %v3081
          %v3088 = vsel %vm666, %v3083, %v3085
          %v3095 = vadd.f32 %v3043, %v3086
          %v3096 = vadd.f32 %v3044, %v3077
          %v3097 = vadd.f32 %v3045, %v3087
          %v3098 = vadd.f32 %v3046, %v3081
          %v3099 = vadd.f32 %v3047, %v3088
          %v3100 = vadd.f32 %v3048, %v3085
          %v3101 = vstv %s3050
          %v3102 = vmul.f32 %v3101, %v3008
          %v3103 = vmul.f32 %v3101, %v3009
          %v3104 = vmul.f32 %v3101, %v3010
          %v3105 = vmul.f32 %v3101, %v3011
          %v3106 = vmul.f32 %v3101, %v3012
          %v3107 = vmul.f32 %v3101, %v3013
          %v3114 = vrot.slane %v3102, 4
          %v3115 = vrot.slane %v3103, 4
          %v3116 = vrot.slane %v3104, 4
          %v3117 = vsel %vm203, %v3114, %v3116
          %v3118 = vrot.slane %v3105, 4
          %v3119 = vsel %vm203, %v3115, %v3118
          %v3120 = vrot.slane %v3106, 4
          %v3121 = vsel %vm203, %v3116, %v3120
          %v3122 = vrot.slane %v3107, 4
          %v3123 = vsel %vm203, %v3118, %v3122
          %3124 = vrot.lane.b32.xlu0 %v3114, 127
          %v3125 = vpop.permute.xlu0 %3124
          %3126 = vrot.lane.b32.xlu0 %v3115, 127
          %v3127 = vpop.permute.xlu0 %3126
          %3128 = vrot.lane.b32.xlu0 %v3117, 127
          %v3129 = vpop.permute.xlu0 %3128
          %3130 = vrot.lane.b32.xlu0 %v3119, 127
          %v3131 = vpop.permute.xlu0 %3130
          %3132 = vrot.lane.b32.xlu0 %v3121, 127
          %v3133 = vpop.permute.xlu0 %3132
          %3134 = vrot.lane.b32.xlu0 %v3123, 127
          %v3135 = vpop.permute.xlu0 %3134
          %v3136 = vsel %vm666, %v3125, %v3127
          %v3137 = vsel %vm666, %v3129, %v3131
          %v3138 = vsel %vm666, %v3133, %v3135
          %v3145 = vadd.f32 %v3095, %v3136
          %v3146 = vadd.f32 %v3096, %v3127
          %v3147 = vadd.f32 %v3097, %v3137
          %v3148 = vadd.f32 %v3098, %v3131
          %v3149 = vadd.f32 %v3099, %v3138
          %v3150 = vadd.f32 %v3100, %v3135
          %s3151 = sld [smem:[#allocation7 + $0x1e]]
          %s3152 = sld [smem:[#allocation7 + $0x4f]]
          %v3153 = vstv %s3151
          %v3154 = vmul.f32 %v3153, %v2967
          %v3155 = vmul.f32 %v3153, %v2968
          %v3156 = vmul.f32 %v3153, %v2969
          %v3157 = vmul.f32 %v3153, %v2970
          %v3158 = vmul.f32 %v3153, %v2971
          %v3159 = vmul.f32 %v3153, %v2972
          %v3166 = vrot.slane %v3154, 4
          %v3167 = vrot.slane %v3155, 4
          %v3168 = vrot.slane %v3156, 4
          %v3169 = vsel %vm203, %v3166, %v3168
          %v3170 = vrot.slane %v3157, 4
          %v3171 = vsel %vm203, %v3167, %v3170
          %v3172 = vrot.slane %v3158, 4
          %v3173 = vsel %vm203, %v3168, %v3172
          %v3174 = vrot.slane %v3159, 4
          %v3175 = vsel %vm203, %v3170, %v3174
          %3176 = vrot.lane.b32.xlu0 %v3166, 126
          %v3177 = vpop.permute.xlu0 %3176
          %3178 = vrot.lane.b32.xlu0 %v3167, 126
          %v3179 = vpop.permute.xlu0 %3178
          %3180 = vrot.lane.b32.xlu0 %v3169, 126
          %v3181 = vpop.permute.xlu0 %3180
          %3182 = vrot.lane.b32.xlu0 %v3171, 126
          %v3183 = vpop.permute.xlu0 %3182
          %3184 = vrot.lane.b32.xlu0 %v3173, 126
          %v3185 = vpop.permute.xlu0 %3184
          %3186 = vrot.lane.b32.xlu0 %v3175, 126
          %v3187 = vpop.permute.xlu0 %3186
          %v3188 = vsel %vm749, %v3177, %v3179
          %v3189 = vsel %vm749, %v3181, %v3183
          %v3190 = vsel %vm749, %v3185, %v3187
          %v3197 = vadd.f32 %v3145, %v3188
          %v3198 = vadd.f32 %v3146, %v3179
          %v3199 = vadd.f32 %v3147, %v3189
          %v3200 = vadd.f32 %v3148, %v3183
          %v3201 = vadd.f32 %v3149, %v3190
          %v3202 = vadd.f32 %v3150, %v3187
          %v3203 = vstv %s3152
          %v3204 = vmul.f32 %v3203, %v3008
          %v3205 = vmul.f32 %v3203, %v3009
          %v3206 = vmul.f32 %v3203, %v3010
          %v3207 = vmul.f32 %v3203, %v3011
          %v3208 = vmul.f32 %v3203, %v3012
          %v3209 = vmul.f32 %v3203, %v3013
          %v3216 = vrot.slane %v3204, 4
          %v3217 = vrot.slane %v3205, 4
          %v3218 = vrot.slane %v3206, 4
          %v3219 = vsel %vm203, %v3216, %v3218
          %v3220 = vrot.slane %v3207, 4
          %v3221 = vsel %vm203, %v3217, %v3220
          %v3222 = vrot.slane %v3208, 4
          %v3223 = vsel %vm203, %v3218, %v3222
          %v3224 = vrot.slane %v3209, 4
          %v3225 = vsel %vm203, %v3220, %v3224
          %3226 = vrot.lane.b32.xlu0 %v3216, 126
          %v3227 = vpop.permute.xlu0 %3226
          %3228 = vrot.lane.b32.xlu0 %v3217, 126
          %v3229 = vpop.permute.xlu0 %3228
          %3230 = vrot.lane.b32.xlu0 %v3219, 126
          %v3231 = vpop.permute.xlu0 %3230
          %3232 = vrot.lane.b32.xlu0 %v3221, 126
          %v3233 = vpop.permute.xlu0 %3232
          %3234 = vrot.lane.b32.xlu0 %v3223, 126
          %v3235 = vpop.permute.xlu0 %3234
          %3236 = vrot.lane.b32.xlu0 %v3225, 126
          %v3237 = vpop.permute.xlu0 %3236
          %v3238 = vsel %vm749, %v3227, %v3229
          %v3239 = vsel %vm749, %v3231, %v3233
          %v3240 = vsel %vm749, %v3235, %v3237
          %v3247 = vadd.f32 %v3197, %v3238
          %v3248 = vadd.f32 %v3198, %v3229
          %v3249 = vadd.f32 %v3199, %v3239
          %v3250 = vadd.f32 %v3200, %v3233
          %v3251 = vadd.f32 %v3201, %v3240
          %v3252 = vadd.f32 %v3202, %v3237
          %s3253 = sld [smem:[#allocation7 + $0x1f]]
          %s3254 = sld [smem:[#allocation7 + $0x50]]
          %v3255 = vstv %s3253
          %v3256 = vmul.f32 %v3255, %v2968
          %v3257 = vmul.f32 %v3255, %v2970
          %v3258 = vmul.f32 %v3255, %v2972
          %v3262 = vrot.slane %v3256, 4
          %v3263 = vrot.slane %v3257, 4
          %v3264 = vsel %vm203, %v3262, %v3263
          %v3265 = vrot.slane %v3258, 4
          %v3266 = vsel %vm203, %v3263, %v3265
          %3267 = vrot.lane.b32.xlu0 %v3262, 125
          %v3268 = vpop.permute.xlu0 %3267
          %3269 = vrot.lane.b32.xlu0 %v3264, 125
          %v3270 = vpop.permute.xlu0 %3269
          %3271 = vrot.lane.b32.xlu0 %v3266, 125
          %v3272 = vpop.permute.xlu0 %3271
          %v3276 = vadd.f32 %v3247, %v3268
          %v3277 = vadd.f32 %v3248, %v3268
          %v3278 = vadd.f32 %v3249, %v3270
          %v3279 = vadd.f32 %v3250, %v3270
          %v3280 = vadd.f32 %v3251, %v3272
          %v3281 = vadd.f32 %v3252, %v3272
          %v3282 = vstv %s3254
          %v3283 = vmul.f32 %v3282, %v3009
          %v3284 = vmul.f32 %v3282, %v3011
          %v3285 = vmul.f32 %v3282, %v3013
          %v3289 = vrot.slane %v3283, 4
          %v3290 = vrot.slane %v3284, 4
          %v3291 = vsel %vm203, %v3289, %v3290
          %v3292 = vrot.slane %v3285, 4
          %v3293 = vsel %vm203, %v3290, %v3292
          %3294 = vrot.lane.b32.xlu0 %v3289, 125
          %v3295 = vpop.permute.xlu0 %3294
          %3296 = vrot.lane.b32.xlu0 %v3291, 125
          %v3297 = vpop.permute.xlu0 %3296
          %3298 = vrot.lane.b32.xlu0 %v3293, 125
          %v3299 = vpop.permute.xlu0 %3298
          %v3303 = vadd.f32 %v3276, %v3295
          %v3304 = vadd.f32 %v3277, %v3295
          %v3305 = vadd.f32 %v3278, %v3297
          %v3306 = vadd.f32 %v3279, %v3297
          %v3307 = vadd.f32 %v3280, %v3299
          %v3308 = vadd.f32 %v3281, %v3299
          %s3309 = sld [smem:[#allocation7 + $0x20]]
          %s3310 = sld [smem:[#allocation7 + $0x51]]
          %v3311 = vld [vmem:[#allocation6 + $0x20] sm:$0xfe]
          %v3312 = vld [vmem:[#allocation6 + $0x28] sm:$0xfe]
          %v3313 = vld [vmem:[#allocation6 + $0x38] sm:$0xff]
          %v3314 = vld [vmem:[#allocation6 + $0x40] sm:$0xff]
          %v3315 = vld [vmem:[#allocation6 + $0x50] sm:$0x1]
          %v3316 = vld [vmem:[#allocation6 + $0x58] sm:$0x1]
          %v3317 = vstv %s3309
          %v3318 = vmul.f32 %v3317, %v3311
          %v3319 = vmul.f32 %v3317, %v3312
          %v3320 = vmul.f32 %v3317, %v3313
          %v3321 = vmul.f32 %v3317, %v3314
          %v3322 = vmul.f32 %v3317, %v3315
          %v3323 = vmul.f32 %v3317, %v3316
          %v3330 = vrot.slane %v3318, 4
          %v3331 = vrot.slane %v3319, 4
          %v3332 = vrot.slane %v3320, 4
          %v3333 = vsel %vm203, %v3330, %v3332
          %v3334 = vrot.slane %v3321, 4
          %v3335 = vsel %vm203, %v3331, %v3334
          %v3336 = vrot.slane %v3322, 4
          %v3337 = vsel %vm203, %v3332, %v3336
          %v3338 = vrot.slane %v3323, 4
          %v3339 = vsel %vm203, %v3334, %v3338
          %3340 = vrot.lane.b32.xlu0 %v3330, 124
          %v3341 = vpop.permute.xlu0 %3340
          %3342 = vrot.lane.b32.xlu0 %v3331, 124
          %v3343 = vpop.permute.xlu0 %3342
          %3344 = vrot.lane.b32.xlu0 %v3333, 124
          %v3345 = vpop.permute.xlu0 %3344
          %3346 = vrot.lane.b32.xlu0 %v3335, 124
          %v3347 = vpop.permute.xlu0 %3346
          %3348 = vrot.lane.b32.xlu0 %v3337, 124
          %v3349 = vpop.permute.xlu0 %3348
          %3350 = vrot.lane.b32.xlu0 %v3339, 124
          %v3351 = vpop.permute.xlu0 %3350
          %v3352 = vsel %vm884, %v3341, %v3343
          %v3353 = vsel %vm884, %v3345, %v3347
          %v3354 = vsel %vm884, %v3349, %v3351
          %v3361 = vadd.f32 %v3303, %v3341
          %v3362 = vadd.f32 %v3304, %v3352
          %v3363 = vadd.f32 %v3305, %v3345
          %v3364 = vadd.f32 %v3306, %v3353
          %v3365 = vadd.f32 %v3307, %v3349
          %v3366 = vadd.f32 %v3308, %v3354
          %v3367 = vld [vmem:[%s313 + $0x20] sm:$0xfe]
          %v3368 = vld [vmem:[%s313 + $0x28] sm:$0xfe]
          %v3369 = vld [vmem:[%s313 + $0x38] sm:$0xff]
          %v3370 = vld [vmem:[%s313 + $0x40] sm:$0xff]
          %v3371 = vld [vmem:[%s313 + $0x50] sm:$0x1]
          %v3372 = vld [vmem:[%s313 + $0x58] sm:$0x1]
          %v3373 = vstv %s3310
          %v3374 = vmul.f32 %v3373, %v3367
          %v3375 = vmul.f32 %v3373, %v3368
          %v3376 = vmul.f32 %v3373, %v3369
          %v3377 = vmul.f32 %v3373, %v3370
          %v3378 = vmul.f32 %v3373, %v3371
          %v3379 = vmul.f32 %v3373, %v3372
          %v3386 = vrot.slane %v3374, 4
          %v3387 = vrot.slane %v3375, 4
          %v3388 = vrot.slane %v3376, 4
          %v3389 = vsel %vm203, %v3386, %v3388
          %v3390 = vrot.slane %v3377, 4
          %v3391 = vsel %vm203, %v3387, %v3390
          %v3392 = vrot.slane %v3378, 4
          %v3393 = vsel %vm203, %v3388, %v3392
          %v3394 = vrot.slane %v3379, 4
          %v3395 = vsel %vm203, %v3390, %v3394
          %3396 = vrot.lane.b32.xlu0 %v3386, 124
          %v3397 = vpop.permute.xlu0 %3396
          %3398 = vrot.lane.b32.xlu0 %v3387, 124
          %v3399 = vpop.permute.xlu0 %3398
          %3400 = vrot.lane.b32.xlu0 %v3389, 124
          %v3401 = vpop.permute.xlu0 %3400
          %3402 = vrot.lane.b32.xlu0 %v3391, 124
          %v3403 = vpop.permute.xlu0 %3402
          %3404 = vrot.lane.b32.xlu0 %v3393, 124
          %v3405 = vpop.permute.xlu0 %3404
          %3406 = vrot.lane.b32.xlu0 %v3395, 124
          %v3407 = vpop.permute.xlu0 %3406
          %v3408 = vsel %vm884, %v3397, %v3399
          %v3409 = vsel %vm884, %v3401, %v3403
          %v3410 = vsel %vm884, %v3405, %v3407
          %v3417 = vadd.f32 %v3361, %v3397
          %v3418 = vadd.f32 %v3362, %v3408
          %v3419 = vadd.f32 %v3363, %v3401
          %v3420 = vadd.f32 %v3364, %v3409
          %v3421 = vadd.f32 %v3365, %v3405
          %v3422 = vadd.f32 %v3366, %v3410
          %s3423 = sld [smem:[#allocation7 + $0x21]]
          %s3424 = sld [smem:[#allocation7 + $0x52]]
          %v3425 = vstv %s3423
          %v3426 = vmul.f32 %v3425, %v3311
          %v3427 = vmul.f32 %v3425, %v3312
          %v3428 = vmul.f32 %v3425, %v3313
          %v3429 = vmul.f32 %v3425, %v3314
          %v3430 = vmul.f32 %v3425, %v3315
          %v3431 = vmul.f32 %v3425, %v3316
          %v3438 = vrot.slane %v3426, 4
          %v3439 = vrot.slane %v3427, 4
          %v3440 = vrot.slane %v3428, 4
          %v3441 = vsel %vm203, %v3438, %v3440
          %v3442 = vrot.slane %v3429, 4
          %v3443 = vsel %vm203, %v3439, %v3442
          %v3444 = vrot.slane %v3430, 4
          %v3445 = vsel %vm203, %v3440, %v3444
          %v3446 = vrot.slane %v3431, 4
          %v3447 = vsel %vm203, %v3442, %v3446
          %3448 = vrot.lane.b32.xlu0 %v3438, 123
          %v3449 = vpop.permute.xlu0 %3448
          %3450 = vrot.lane.b32.xlu0 %v3439, 123
          %v3451 = vpop.permute.xlu0 %3450
          %3452 = vrot.lane.b32.xlu0 %v3441, 123
          %v3453 = vpop.permute.xlu0 %3452
          %3454 = vrot.lane.b32.xlu0 %v3443, 123
          %v3455 = vpop.permute.xlu0 %3454
          %3456 = vrot.lane.b32.xlu0 %v3445, 123
          %v3457 = vpop.permute.xlu0 %3456
          %3458 = vrot.lane.b32.xlu0 %v3447, 123
          %v3459 = vpop.permute.xlu0 %3458
          %v3460 = vsel %vm973, %v3449, %v3451
          %v3461 = vsel %vm973, %v3453, %v3455
          %v3462 = vsel %vm973, %v3457, %v3459
          %v3469 = vadd.f32 %v3417, %v3449
          %v3470 = vadd.f32 %v3418, %v3460
          %v3471 = vadd.f32 %v3419, %v3453
          %v3472 = vadd.f32 %v3420, %v3461
          %v3473 = vadd.f32 %v3421, %v3457
          %v3474 = vadd.f32 %v3422, %v3462
          %v3475 = vstv %s3424
          %v3476 = vmul.f32 %v3475, %v3367
          %v3477 = vmul.f32 %v3475, %v3368
          %v3478 = vmul.f32 %v3475, %v3369
          %v3479 = vmul.f32 %v3475, %v3370
          %v3480 = vmul.f32 %v3475, %v3371
          %v3481 = vmul.f32 %v3475, %v3372
          %v3488 = vrot.slane %v3476, 4
          %v3489 = vrot.slane %v3477, 4
          %v3490 = vrot.slane %v3478, 4
          %v3491 = vsel %vm203, %v3488, %v3490
          %v3492 = vrot.slane %v3479, 4
          %v3493 = vsel %vm203, %v3489, %v3492
          %v3494 = vrot.slane %v3480, 4
          %v3495 = vsel %vm203, %v3490, %v3494
          %v3496 = vrot.slane %v3481, 4
          %v3497 = vsel %vm203, %v3492, %v3496
          %3498 = vrot.lane.b32.xlu0 %v3488, 123
          %v3499 = vpop.permute.xlu0 %3498
          %3500 = vrot.lane.b32.xlu0 %v3489, 123
          %v3501 = vpop.permute.xlu0 %3500
          %3502 = vrot.lane.b32.xlu0 %v3491, 123
          %v3503 = vpop.permute.xlu0 %3502
          %3504 = vrot.lane.b32.xlu0 %v3493, 123
          %v3505 = vpop.permute.xlu0 %3504
          %3506 = vrot.lane.b32.xlu0 %v3495, 123
          %v3507 = vpop.permute.xlu0 %3506
          %3508 = vrot.lane.b32.xlu0 %v3497, 123
          %v3509 = vpop.permute.xlu0 %3508
          %v3510 = vsel %vm973, %v3499, %v3501
          %v3511 = vsel %vm973, %v3503, %v3505
          %v3512 = vsel %vm973, %v3507, %v3509
          %v3519 = vadd.f32 %v3469, %v3499
          %v3520 = vadd.f32 %v3470, %v3510
          %v3521 = vadd.f32 %v3471, %v3503
          %v3522 = vadd.f32 %v3472, %v3511
          %v3523 = vadd.f32 %v3473, %v3507
          %v3524 = vadd.f32 %v3474, %v3512
          %s3525 = sld [smem:[#allocation7 + $0x22]]
          %s3526 = sld [smem:[#allocation7 + $0x53]]
          %v3527 = vstv %s3525
          %v3528 = vmul.f32 %v3527, %v3311
          %v3529 = vmul.f32 %v3527, %v3312
          %v3530 = vmul.f32 %v3527, %v3313
          %v3531 = vmul.f32 %v3527, %v3314
          %v3532 = vmul.f32 %v3527, %v3315
          %v3533 = vmul.f32 %v3527, %v3316
          %v3540 = vrot.slane %v3528, 4
          %v3541 = vrot.slane %v3529, 4
          %v3542 = vrot.slane %v3530, 4
          %v3543 = vsel %vm203, %v3540, %v3542
          %v3544 = vrot.slane %v3531, 4
          %v3545 = vsel %vm203, %v3541, %v3544
          %v3546 = vrot.slane %v3532, 4
          %v3547 = vsel %vm203, %v3542, %v3546
          %v3548 = vrot.slane %v3533, 4
          %v3549 = vsel %vm203, %v3544, %v3548
          %3550 = vrot.lane.b32.xlu0 %v3540, 122
          %v3551 = vpop.permute.xlu0 %3550
          %3552 = vrot.lane.b32.xlu0 %v3541, 122
          %v3553 = vpop.permute.xlu0 %3552
          %3554 = vrot.lane.b32.xlu0 %v3543, 122
          %v3555 = vpop.permute.xlu0 %3554
          %3556 = vrot.lane.b32.xlu0 %v3545, 122
          %v3557 = vpop.permute.xlu0 %3556
          %3558 = vrot.lane.b32.xlu0 %v3547, 122
          %v3559 = vpop.permute.xlu0 %3558
          %3560 = vrot.lane.b32.xlu0 %v3549, 122
          %v3561 = vpop.permute.xlu0 %3560
          %v3562 = vsel %vm1056, %v3551, %v3553
          %v3563 = vsel %vm1056, %v3555, %v3557
          %v3564 = vsel %vm1056, %v3559, %v3561
          %v3571 = vadd.f32 %v3519, %v3551
          %v3572 = vadd.f32 %v3520, %v3562
          %v3573 = vadd.f32 %v3521, %v3555
          %v3574 = vadd.f32 %v3522, %v3563
          %v3575 = vadd.f32 %v3523, %v3559
          %v3576 = vadd.f32 %v3524, %v3564
          %v3577 = vstv %s3526
          %v3578 = vmul.f32 %v3577, %v3367
          %v3579 = vmul.f32 %v3577, %v3368
          %v3580 = vmul.f32 %v3577, %v3369
          %v3581 = vmul.f32 %v3577, %v3370
          %v3582 = vmul.f32 %v3577, %v3371
          %v3583 = vmul.f32 %v3577, %v3372
          %v3590 = vrot.slane %v3578, 4
          %v3591 = vrot.slane %v3579, 4
          %v3592 = vrot.slane %v3580, 4
          %v3593 = vsel %vm203, %v3590, %v3592
          %v3594 = vrot.slane %v3581, 4
          %v3595 = vsel %vm203, %v3591, %v3594
          %v3596 = vrot.slane %v3582, 4
          %v3597 = vsel %vm203, %v3592, %v3596
          %v3598 = vrot.slane %v3583, 4
          %v3599 = vsel %vm203, %v3594, %v3598
          %3600 = vrot.lane.b32.xlu0 %v3590, 122
          %v3601 = vpop.permute.xlu0 %3600
          %3602 = vrot.lane.b32.xlu0 %v3591, 122
          %v3603 = vpop.permute.xlu0 %3602
          %3604 = vrot.lane.b32.xlu0 %v3593, 122
          %v3605 = vpop.permute.xlu0 %3604
          %3606 = vrot.lane.b32.xlu0 %v3595, 122
          %v3607 = vpop.permute.xlu0 %3606
          %3608 = vrot.lane.b32.xlu0 %v3597, 122
          %v3609 = vpop.permute.xlu0 %3608
          %3610 = vrot.lane.b32.xlu0 %v3599, 122
          %v3611 = vpop.permute.xlu0 %3610
          %v3612 = vsel %vm1056, %v3601, %v3603
          %v3613 = vsel %vm1056, %v3605, %v3607
          %v3614 = vsel %vm1056, %v3609, %v3611
          %v3621 = vadd.f32 %v3571, %v3601
          %v3622 = vadd.f32 %v3572, %v3612
          %v3623 = vadd.f32 %v3573, %v3605
          %v3624 = vadd.f32 %v3574, %v3613
          %v3625 = vadd.f32 %v3575, %v3609
          %v3626 = vadd.f32 %v3576, %v3614
          %s3627 = sld [smem:[#allocation7 + $0x23]]
          %s3628 = sld [smem:[#allocation7 + $0x54]]
          %v3629 = vld [vmem:[#allocation6 + $0x18] sm:$0xfc]
          %v3630 = vld [vmem:[#allocation6 + $0x20] sm:$0xfc]
          %v3631 = vld [vmem:[#allocation6 + $0x48] sm:$0x3]
          %v3632 = vld [vmem:[#allocation6 + $0x50] sm:$0x3]
          %v3633 = vstv %s3627
          %v3634 = vmul.f32 %v3633, %v3629
          %v3635 = vmul.f32 %v3633, %v3630
          %v3636 = vmul.f32 %v3633, %v2969
          %v3637 = vmul.f32 %v3633, %v2970
          %v3638 = vmul.f32 %v3633, %v3631
          %v3639 = vmul.f32 %v3633, %v3632
          %vm3646 = vcmask 1042432
          %v3647 = vrot.slane %v3634, 5
          %v3648 = vrot.slane %v3635, 5
          %v3649 = vrot.slane %v3636, 5
          %v3650 = vsel %vm3646, %v3647, %v3649
          %v3651 = vrot.slane %v3637, 5
          %v3652 = vsel %vm3646, %v3648, %v3651
          %v3653 = vrot.slane %v3638, 5
          %v3654 = vsel %vm3646, %v3649, %v3653
          %v3655 = vrot.slane %v3639, 5
          %v3656 = vsel %vm3646, %v3651, %v3655
          %v3663 = vadd.f32 %v3621, %v3647
          %v3664 = vadd.f32 %v3622, %v3648
          %v3665 = vadd.f32 %v3623, %v3650
          %v3666 = vadd.f32 %v3624, %v3652
          %v3667 = vadd.f32 %v3625, %v3654
          %v3668 = vadd.f32 %v3626, %v3656
          %v3669 = vld [vmem:[%s313 + $0x18] sm:$0xfc]
          %v3670 = vld [vmem:[%s313 + $0x20] sm:$0xfc]
          %v3671 = vld [vmem:[%s313 + $0x48] sm:$0x3]
          %v3672 = vld [vmem:[%s313 + $0x50] sm:$0x3]
          %v3673 = vstv %s3628
          %v3674 = vmul.f32 %v3673, %v3669
          %v3675 = vmul.f32 %v3673, %v3670
          %v3676 = vmul.f32 %v3673, %v3010
          %v3677 = vmul.f32 %v3673, %v3011
          %v3678 = vmul.f32 %v3673, %v3671
          %v3679 = vmul.f32 %v3673, %v3672
          %v3686 = vrot.slane %v3674, 5
          %v3687 = vrot.slane %v3675, 5
          %v3688 = vrot.slane %v3676, 5
          %v3689 = vsel %vm3646, %v3686, %v3688
          %v3690 = vrot.slane %v3677, 5
          %v3691 = vsel %vm3646, %v3687, %v3690
          %v3692 = vrot.slane %v3678, 5
          %v3693 = vsel %vm3646, %v3688, %v3692
          %v3694 = vrot.slane %v3679, 5
          %v3695 = vsel %vm3646, %v3690, %v3694
          %v3702 = vadd.f32 %v3663, %v3686
          %v3703 = vadd.f32 %v3664, %v3687
          %v3704 = vadd.f32 %v3665, %v3689
          %v3705 = vadd.f32 %v3666, %v3691
          %v3706 = vadd.f32 %v3667, %v3693
          %v3707 = vadd.f32 %v3668, %v3695
          %s3708 = sld [smem:[#allocation7 + $0x24]]
          %s3709 = sld [smem:[#allocation7 + $0x55]]
          %v3710 = vstv %s3708
          %v3711 = vmul.f32 %v3710, %v3629
          %v3712 = vmul.f32 %v3710, %v3630
          %v3713 = vmul.f32 %v3710, %v2969
          %v3714 = vmul.f32 %v3710, %v2970
          %v3715 = vmul.f32 %v3710, %v3631
          %v3716 = vmul.f32 %v3710, %v3632
          %v3723 = vrot.slane %v3711, 5
          %v3724 = vrot.slane %v3712, 5
          %v3725 = vrot.slane %v3713, 5
          %v3726 = vsel %vm3646, %v3723, %v3725
          %v3727 = vrot.slane %v3714, 5
          %v3728 = vsel %vm3646, %v3724, %v3727
          %v3729 = vrot.slane %v3715, 5
          %v3730 = vsel %vm3646, %v3725, %v3729
          %v3731 = vrot.slane %v3716, 5
          %v3732 = vsel %vm3646, %v3727, %v3731
          %3733 = vrot.lane.b32.xlu0 %v3723, 127
          %v3734 = vpop.permute.xlu0 %3733
          %3735 = vrot.lane.b32.xlu0 %v3724, 127
          %v3736 = vpop.permute.xlu0 %3735
          %3737 = vrot.lane.b32.xlu0 %v3726, 127
          %v3738 = vpop.permute.xlu0 %3737
          %3739 = vrot.lane.b32.xlu0 %v3728, 127
          %v3740 = vpop.permute.xlu0 %3739
          %3741 = vrot.lane.b32.xlu0 %v3730, 127
          %v3742 = vpop.permute.xlu0 %3741
          %3743 = vrot.lane.b32.xlu0 %v3732, 127
          %v3744 = vpop.permute.xlu0 %3743
          %v3745 = vsel %vm666, %v3734, %v3736
          %v3746 = vsel %vm666, %v3738, %v3740
          %v3747 = vsel %vm666, %v3742, %v3744
          %v3754 = vadd.f32 %v3702, %v3745
          %v3755 = vadd.f32 %v3703, %v3736
          %v3756 = vadd.f32 %v3704, %v3746
          %v3757 = vadd.f32 %v3705, %v3740
          %v3758 = vadd.f32 %v3706, %v3747
          %v3759 = vadd.f32 %v3707, %v3744
          %v3760 = vstv %s3709
          %v3761 = vmul.f32 %v3760, %v3669
          %v3762 = vmul.f32 %v3760, %v3670
          %v3763 = vmul.f32 %v3760, %v3010
          %v3764 = vmul.f32 %v3760, %v3011
          %v3765 = vmul.f32 %v3760, %v3671
          %v3766 = vmul.f32 %v3760, %v3672
          %v3773 = vrot.slane %v3761, 5
          %v3774 = vrot.slane %v3762, 5
          %v3775 = vrot.slane %v3763, 5
          %v3776 = vsel %vm3646, %v3773, %v3775
          %v3777 = vrot.slane %v3764, 5
          %v3778 = vsel %vm3646, %v3774, %v3777
          %v3779 = vrot.slane %v3765, 5
          %v3780 = vsel %vm3646, %v3775, %v3779
          %v3781 = vrot.slane %v3766, 5
          %v3782 = vsel %vm3646, %v3777, %v3781
          %3783 = vrot.lane.b32.xlu0 %v3773, 127
          %v3784 = vpop.permute.xlu0 %3783
          %3785 = vrot.lane.b32.xlu0 %v3774, 127
          %v3786 = vpop.permute.xlu0 %3785
          %3787 = vrot.lane.b32.xlu0 %v3776, 127
          %v3788 = vpop.permute.xlu0 %3787
          %3789 = vrot.lane.b32.xlu0 %v3778, 127
          %v3790 = vpop.permute.xlu0 %3789
          %3791 = vrot.lane.b32.xlu0 %v3780, 127
          %v3792 = vpop.permute.xlu0 %3791
          %3793 = vrot.lane.b32.xlu0 %v3782, 127
          %v3794 = vpop.permute.xlu0 %3793
          %v3795 = vsel %vm666, %v3784, %v3786
          %v3796 = vsel %vm666, %v3788, %v3790
          %v3797 = vsel %vm666, %v3792, %v3794
          %v3804 = vadd.f32 %v3754, %v3795
          %v3805 = vadd.f32 %v3755, %v3786
          %v3806 = vadd.f32 %v3756, %v3796
          %v3807 = vadd.f32 %v3757, %v3790
          %v3808 = vadd.f32 %v3758, %v3797
          %v3809 = vadd.f32 %v3759, %v3794
          %s3810 = sld [smem:[#allocation7 + $0x25]]
          %s3811 = sld [smem:[#allocation7 + $0x56]]
          %v3812 = vstv %s3810
          %v3813 = vmul.f32 %v3812, %v3629
          %v3814 = vmul.f32 %v3812, %v3630
          %v3815 = vmul.f32 %v3812, %v2969
          %v3816 = vmul.f32 %v3812, %v2970
          %v3817 = vmul.f32 %v3812, %v3631
          %v3818 = vmul.f32 %v3812, %v3632
          %v3825 = vrot.slane %v3813, 5
          %v3826 = vrot.slane %v3814, 5
          %v3827 = vrot.slane %v3815, 5
          %v3828 = vsel %vm3646, %v3825, %v3827
          %v3829 = vrot.slane %v3816, 5
          %v3830 = vsel %vm3646, %v3826, %v3829
          %v3831 = vrot.slane %v3817, 5
          %v3832 = vsel %vm3646, %v3827, %v3831
          %v3833 = vrot.slane %v3818, 5
          %v3834 = vsel %vm3646, %v3829, %v3833
          %3835 = vrot.lane.b32.xlu0 %v3825, 126
          %v3836 = vpop.permute.xlu0 %3835
          %3837 = vrot.lane.b32.xlu0 %v3826, 126
          %v3838 = vpop.permute.xlu0 %3837
          %3839 = vrot.lane.b32.xlu0 %v3828, 126
          %v3840 = vpop.permute.xlu0 %3839
          %3841 = vrot.lane.b32.xlu0 %v3830, 126
          %v3842 = vpop.permute.xlu0 %3841
          %3843 = vrot.lane.b32.xlu0 %v3832, 126
          %v3844 = vpop.permute.xlu0 %3843
          %3845 = vrot.lane.b32.xlu0 %v3834, 126
          %v3846 = vpop.permute.xlu0 %3845
          %v3847 = vsel %vm749, %v3836, %v3838
          %v3848 = vsel %vm749, %v3840, %v3842
          %v3849 = vsel %vm749, %v3844, %v3846
          %v3856 = vadd.f32 %v3804, %v3847
          %v3857 = vadd.f32 %v3805, %v3838
          %v3858 = vadd.f32 %v3806, %v3848
          %v3859 = vadd.f32 %v3807, %v3842
          %v3860 = vadd.f32 %v3808, %v3849
          %v3861 = vadd.f32 %v3809, %v3846
          %v3862 = vstv %s3811
          %v3863 = vmul.f32 %v3862, %v3669
          %v3864 = vmul.f32 %v3862, %v3670
          %v3865 = vmul.f32 %v3862, %v3010
          %v3866 = vmul.f32 %v3862, %v3011
          %v3867 = vmul.f32 %v3862, %v3671
          %v3868 = vmul.f32 %v3862, %v3672
          %v3875 = vrot.slane %v3863, 5
          %v3876 = vrot.slane %v3864, 5
          %v3877 = vrot.slane %v3865, 5
          %v3878 = vsel %vm3646, %v3875, %v3877
          %v3879 = vrot.slane %v3866, 5
          %v3880 = vsel %vm3646, %v3876, %v3879
          %v3881 = vrot.slane %v3867, 5
          %v3882 = vsel %vm3646, %v3877, %v3881
          %v3883 = vrot.slane %v3868, 5
          %v3884 = vsel %vm3646, %v3879, %v3883
          %3885 = vrot.lane.b32.xlu0 %v3875, 126
          %v3886 = vpop.permute.xlu0 %3885
          %3887 = vrot.lane.b32.xlu0 %v3876, 126
          %v3888 = vpop.permute.xlu0 %3887
          %3889 = vrot.lane.b32.xlu0 %v3878, 126
          %v3890 = vpop.permute.xlu0 %3889
          %3891 = vrot.lane.b32.xlu0 %v3880, 126
          %v3892 = vpop.permute.xlu0 %3891
          %3893 = vrot.lane.b32.xlu0 %v3882, 126
          %v3894 = vpop.permute.xlu0 %3893
          %3895 = vrot.lane.b32.xlu0 %v3884, 126
          %v3896 = vpop.permute.xlu0 %3895
          %v3897 = vsel %vm749, %v3886, %v3888
          %v3898 = vsel %vm749, %v3890, %v3892
          %v3899 = vsel %vm749, %v3894, %v3896
          %v3906 = vadd.f32 %v3856, %v3897
          %v3907 = vadd.f32 %v3857, %v3888
          %v3908 = vadd.f32 %v3858, %v3898
          %v3909 = vadd.f32 %v3859, %v3892
          %v3910 = vadd.f32 %v3860, %v3899
          %v3911 = vadd.f32 %v3861, %v3896
          %s3912 = sld [smem:[#allocation7 + $0x26]]
          %s3913 = sld [smem:[#allocation7 + $0x57]]
          %v3914 = vstv %s3912
          %v3915 = vmul.f32 %v3914, %v3630
          %v3916 = vmul.f32 %v3914, %v2970
          %v3917 = vmul.f32 %v3914, %v3632
          %v3921 = vrot.slane %v3915, 5
          %v3922 = vrot.slane %v3916, 5
          %v3923 = vsel %vm3646, %v3921, %v3922
          %v3924 = vrot.slane %v3917, 5
          %v3925 = vsel %vm3646, %v3922, %v3924
          %3926 = vrot.lane.b32.xlu0 %v3921, 125
          %v3927 = vpop.permute.xlu0 %3926
          %3928 = vrot.lane.b32.xlu0 %v3923, 125
          %v3929 = vpop.permute.xlu0 %3928
          %3930 = vrot.lane.b32.xlu0 %v3925, 125
          %v3931 = vpop.permute.xlu0 %3930
          %v3935 = vadd.f32 %v3906, %v3927
          %v3936 = vadd.f32 %v3907, %v3927
          %v3937 = vadd.f32 %v3908, %v3929
          %v3938 = vadd.f32 %v3909, %v3929
          %v3939 = vadd.f32 %v3910, %v3931
          %v3940 = vadd.f32 %v3911, %v3931
          %v3941 = vstv %s3913
          %v3942 = vmul.f32 %v3941, %v3670
          %v3943 = vmul.f32 %v3941, %v3011
          %v3944 = vmul.f32 %v3941, %v3672
          %v3948 = vrot.slane %v3942, 5
          %v3949 = vrot.slane %v3943, 5
          %v3950 = vsel %vm3646, %v3948, %v3949
          %v3951 = vrot.slane %v3944, 5
          %v3952 = vsel %vm3646, %v3949, %v3951
          %3953 = vrot.lane.b32.xlu0 %v3948, 125
          %v3954 = vpop.permute.xlu0 %3953
          %3955 = vrot.lane.b32.xlu0 %v3950, 125
          %v3956 = vpop.permute.xlu0 %3955
          %3957 = vrot.lane.b32.xlu0 %v3952, 125
          %v3958 = vpop.permute.xlu0 %3957
          %v3962 = vadd.f32 %v3935, %v3954
          %v3963 = vadd.f32 %v3936, %v3954
          %v3964 = vadd.f32 %v3937, %v3956
          %v3965 = vadd.f32 %v3938, %v3956
          %v3966 = vadd.f32 %v3939, %v3958
          %v3967 = vadd.f32 %v3940, %v3958
          %s3968 = sld [smem:[#allocation7 + $0x27]]
          %s3969 = sld [smem:[#allocation7 + $0x58]]
          %v3970 = vld [vmem:[#allocation6 + $0x20] sm:$0xfc]
          %v3971 = vld [vmem:[#allocation6 + $0x28] sm:$0xfc]
          %v3972 = vld [vmem:[#allocation6 + $0x50] sm:$0x3]
          %v3973 = vld [vmem:[#allocation6 + $0x58] sm:$0x3]
          %v3974 = vstv %s3968
          %v3975 = vmul.f32 %v3974, %v3970
          %v3976 = vmul.f32 %v3974, %v3971
          %v3977 = vmul.f32 %v3974, %v3313
          %v3978 = vmul.f32 %v3974, %v3314
          %v3979 = vmul.f32 %v3974, %v3972
          %v3980 = vmul.f32 %v3974, %v3973
          %v3987 = vrot.slane %v3975, 5
          %v3988 = vrot.slane %v3976, 5
          %v3989 = vrot.slane %v3977, 5
          %v3990 = vsel %vm3646, %v3987, %v3989
          %v3991 = vrot.slane %v3978, 5
          %v3992 = vsel %vm3646, %v3988, %v3991
          %v3993 = vrot.slane %v3979, 5
          %v3994 = vsel %vm3646, %v3989, %v3993
          %v3995 = vrot.slane %v3980, 5
          %v3996 = vsel %vm3646, %v3991, %v3995
          %3997 = vrot.lane.b32.xlu0 %v3987, 124
          %v3998 = vpop.permute.xlu0 %3997
          %3999 = vrot.lane.b32.xlu0 %v3988, 124
          %v4000 = vpop.permute.xlu0 %3999
          %4001 = vrot.lane.b32.xlu0 %v3990, 124
          %v4002 = vpop.permute.xlu0 %4001
          %4003 = vrot.lane.b32.xlu0 %v3992, 124
          %v4004 = vpop.permute.xlu0 %4003
          %4005 = vrot.lane.b32.xlu0 %v3994, 124
          %v4006 = vpop.permute.xlu0 %4005
          %4007 = vrot.lane.b32.xlu0 %v3996, 124
          %v4008 = vpop.permute.xlu0 %4007
          %v4009 = vsel %vm884, %v3998, %v4000
          %v4010 = vsel %vm884, %v4002, %v4004
          %v4011 = vsel %vm884, %v4006, %v4008
          %v4018 = vadd.f32 %v3962, %v3998
          %v4019 = vadd.f32 %v3963, %v4009
          %v4020 = vadd.f32 %v3964, %v4002
          %v4021 = vadd.f32 %v3965, %v4010
          %v4022 = vadd.f32 %v3966, %v4006
          %v4023 = vadd.f32 %v3967, %v4011
          %v4024 = vld [vmem:[%s313 + $0x20] sm:$0xfc]
          %v4025 = vld [vmem:[%s313 + $0x28] sm:$0xfc]
          %v4026 = vld [vmem:[%s313 + $0x50] sm:$0x3]
          %v4027 = vld [vmem:[%s313 + $0x58] sm:$0x3]
          %v4028 = vstv %s3969
          %v4029 = vmul.f32 %v4028, %v4024
          %v4030 = vmul.f32 %v4028, %v4025
          %v4031 = vmul.f32 %v4028, %v3369
          %v4032 = vmul.f32 %v4028, %v3370
          %v4033 = vmul.f32 %v4028, %v4026
          %v4034 = vmul.f32 %v4028, %v4027
          %v4041 = vrot.slane %v4029, 5
          %v4042 = vrot.slane %v4030, 5
          %v4043 = vrot.slane %v4031, 5
          %v4044 = vsel %vm3646, %v4041, %v4043
          %v4045 = vrot.slane %v4032, 5
          %v4046 = vsel %vm3646, %v4042, %v4045
          %v4047 = vrot.slane %v4033, 5
          %v4048 = vsel %vm3646, %v4043, %v4047
          %v4049 = vrot.slane %v4034, 5
          %v4050 = vsel %vm3646, %v4045, %v4049
          %4051 = vrot.lane.b32.xlu0 %v4041, 124
          %v4052 = vpop.permute.xlu0 %4051
          %4053 = vrot.lane.b32.xlu0 %v4042, 124
          %v4054 = vpop.permute.xlu0 %4053
          %4055 = vrot.lane.b32.xlu0 %v4044, 124
          %v4056 = vpop.permute.xlu0 %4055
          %4057 = vrot.lane.b32.xlu0 %v4046, 124
          %v4058 = vpop.permute.xlu0 %4057
          %4059 = vrot.lane.b32.xlu0 %v4048, 124
          %v4060 = vpop.permute.xlu0 %4059
          %4061 = vrot.lane.b32.xlu0 %v4050, 124
          %v4062 = vpop.permute.xlu0 %4061
          %v4063 = vsel %vm884, %v4052, %v4054
          %v4064 = vsel %vm884, %v4056, %v4058
          %v4065 = vsel %vm884, %v4060, %v4062
          %v4072 = vadd.f32 %v4018, %v4052
          %v4073 = vadd.f32 %v4019, %v4063
          %v4074 = vadd.f32 %v4020, %v4056
          %v4075 = vadd.f32 %v4021, %v4064
          %v4076 = vadd.f32 %v4022, %v4060
          %v4077 = vadd.f32 %v4023, %v4065
          %s4078 = sld [smem:[#allocation7 + $0x28]]
          %s4079 = sld [smem:[#allocation7 + $0x59]]
          %v4080 = vstv %s4078
          %v4081 = vmul.f32 %v4080, %v3970
          %v4082 = vmul.f32 %v4080, %v3971
          %v4083 = vmul.f32 %v4080, %v3313
          %v4084 = vmul.f32 %v4080, %v3314
          %v4085 = vmul.f32 %v4080, %v3972
          %v4086 = vmul.f32 %v4080, %v3973
          %v4093 = vrot.slane %v4081, 5
          %v4094 = vrot.slane %v4082, 5
          %v4095 = vrot.slane %v4083, 5
          %v4096 = vsel %vm3646, %v4093, %v4095
          %v4097 = vrot.slane %v4084, 5
          %v4098 = vsel %vm3646, %v4094, %v4097
          %v4099 = vrot.slane %v4085, 5
          %v4100 = vsel %vm3646, %v4095, %v4099
          %v4101 = vrot.slane %v4086, 5
          %v4102 = vsel %vm3646, %v4097, %v4101
          %4103 = vrot.lane.b32.xlu0 %v4093, 123
          %v4104 = vpop.permute.xlu0 %4103
          %4105 = vrot.lane.b32.xlu0 %v4094, 123
          %v4106 = vpop.permute.xlu0 %4105
          %4107 = vrot.lane.b32.xlu0 %v4096, 123
          %v4108 = vpop.permute.xlu0 %4107
          %4109 = vrot.lane.b32.xlu0 %v4098, 123
          %v4110 = vpop.permute.xlu0 %4109
          %4111 = vrot.lane.b32.xlu0 %v4100, 123
          %v4112 = vpop.permute.xlu0 %4111
          %4113 = vrot.lane.b32.xlu0 %v4102, 123
          %v4114 = vpop.permute.xlu0 %4113
          %v4115 = vsel %vm973, %v4104, %v4106
          %v4116 = vsel %vm973, %v4108, %v4110
          %v4117 = vsel %vm973, %v4112, %v4114
          %v4124 = vadd.f32 %v4072, %v4104
          %v4125 = vadd.f32 %v4073, %v4115
          %v4126 = vadd.f32 %v4074, %v4108
          %v4127 = vadd.f32 %v4075, %v4116
          %v4128 = vadd.f32 %v4076, %v4112
          %v4129 = vadd.f32 %v4077, %v4117
          %v4130 = vstv %s4079
          %v4131 = vmul.f32 %v4130, %v4024
          %v4132 = vmul.f32 %v4130, %v4025
          %v4133 = vmul.f32 %v4130, %v3369
          %v4134 = vmul.f32 %v4130, %v3370
          %v4135 = vmul.f32 %v4130, %v4026
          %v4136 = vmul.f32 %v4130, %v4027
          %v4143 = vrot.slane %v4131, 5
          %v4144 = vrot.slane %v4132, 5
          %v4145 = vrot.slane %v4133, 5
          %v4146 = vsel %vm3646, %v4143, %v4145
          %v4147 = vrot.slane %v4134, 5
          %v4148 = vsel %vm3646, %v4144, %v4147
          %v4149 = vrot.slane %v4135, 5
          %v4150 = vsel %vm3646, %v4145, %v4149
          %v4151 = vrot.slane %v4136, 5
          %v4152 = vsel %vm3646, %v4147, %v4151
          %4153 = vrot.lane.b32.xlu0 %v4143, 123
          %v4154 = vpop.permute.xlu0 %4153
          %4155 = vrot.lane.b32.xlu0 %v4144, 123
          %v4156 = vpop.permute.xlu0 %4155
          %4157 = vrot.lane.b32.xlu0 %v4146, 123
          %v4158 = vpop.permute.xlu0 %4157
          %4159 = vrot.lane.b32.xlu0 %v4148, 123
          %v4160 = vpop.permute.xlu0 %4159
          %4161 = vrot.lane.b32.xlu0 %v4150, 123
          %v4162 = vpop.permute.xlu0 %4161
          %4163 = vrot.lane.b32.xlu0 %v4152, 123
          %v4164 = vpop.permute.xlu0 %4163
          %v4165 = vsel %vm973, %v4154, %v4156
          %v4166 = vsel %vm973, %v4158, %v4160
          %v4167 = vsel %vm973, %v4162, %v4164
          %v4174 = vadd.f32 %v4124, %v4154
          %v4175 = vadd.f32 %v4125, %v4165
          %v4176 = vadd.f32 %v4126, %v4158
          %v4177 = vadd.f32 %v4127, %v4166
          %v4178 = vadd.f32 %v4128, %v4162
          %v4179 = vadd.f32 %v4129, %v4167
          %s4180 = sld [smem:[#allocation7 + $0x29]]
          %s4181 = sld [smem:[#allocation7 + $0x5a]]
          %v4182 = vstv %s4180
          %v4183 = vmul.f32 %v4182, %v3970
          %v4184 = vmul.f32 %v4182, %v3971
          %v4185 = vmul.f32 %v4182, %v3313
          %v4186 = vmul.f32 %v4182, %v3314
          %v4187 = vmul.f32 %v4182, %v3972
          %v4188 = vmul.f32 %v4182, %v3973
          %v4195 = vrot.slane %v4183, 5
          %v4196 = vrot.slane %v4184, 5
          %v4197 = vrot.slane %v4185, 5
          %v4198 = vsel %vm3646, %v4195, %v4197
          %v4199 = vrot.slane %v4186, 5
          %v4200 = vsel %vm3646, %v4196, %v4199
          %v4201 = vrot.slane %v4187, 5
          %v4202 = vsel %vm3646, %v4197, %v4201
          %v4203 = vrot.slane %v4188, 5
          %v4204 = vsel %vm3646, %v4199, %v4203
          %4205 = vrot.lane.b32.xlu0 %v4195, 122
          %v4206 = vpop.permute.xlu0 %4205
          %4207 = vrot.lane.b32.xlu0 %v4196, 122
          %v4208 = vpop.permute.xlu0 %4207
          %4209 = vrot.lane.b32.xlu0 %v4198, 122
          %v4210 = vpop.permute.xlu0 %4209
          %4211 = vrot.lane.b32.xlu0 %v4200, 122
          %v4212 = vpop.permute.xlu0 %4211
          %4213 = vrot.lane.b32.xlu0 %v4202, 122
          %v4214 = vpop.permute.xlu0 %4213
          %4215 = vrot.lane.b32.xlu0 %v4204, 122
          %v4216 = vpop.permute.xlu0 %4215
          %v4217 = vsel %vm1056, %v4206, %v4208
          %v4218 = vsel %vm1056, %v4210, %v4212
          %v4219 = vsel %vm1056, %v4214, %v4216
          %v4226 = vadd.f32 %v4174, %v4206
          %v4227 = vadd.f32 %v4175, %v4217
          %v4228 = vadd.f32 %v4176, %v4210
          %v4229 = vadd.f32 %v4177, %v4218
          %v4230 = vadd.f32 %v4178, %v4214
          %v4231 = vadd.f32 %v4179, %v4219
          %v4232 = vstv %s4181
          %v4233 = vmul.f32 %v4232, %v4024
          %v4234 = vmul.f32 %v4232, %v4025
          %v4235 = vmul.f32 %v4232, %v3369
          %v4236 = vmul.f32 %v4232, %v3370
          %v4237 = vmul.f32 %v4232, %v4026
          %v4238 = vmul.f32 %v4232, %v4027
          %v4245 = vrot.slane %v4233, 5
          %v4246 = vrot.slane %v4234, 5
          %v4247 = vrot.slane %v4235, 5
          %v4248 = vsel %vm3646, %v4245, %v4247
          %v4249 = vrot.slane %v4236, 5
          %v4250 = vsel %vm3646, %v4246, %v4249
          %v4251 = vrot.slane %v4237, 5
          %v4252 = vsel %vm3646, %v4247, %v4251
          %v4253 = vrot.slane %v4238, 5
          %v4254 = vsel %vm3646, %v4249, %v4253
          %4255 = vrot.lane.b32.xlu0 %v4245, 122
          %v4256 = vpop.permute.xlu0 %4255
          %4257 = vrot.lane.b32.xlu0 %v4246, 122
          %v4258 = vpop.permute.xlu0 %4257
          %4259 = vrot.lane.b32.xlu0 %v4248, 122
          %v4260 = vpop.permute.xlu0 %4259
          %4261 = vrot.lane.b32.xlu0 %v4250, 122
          %v4262 = vpop.permute.xlu0 %4261
          %4263 = vrot.lane.b32.xlu0 %v4252, 122
          %v4264 = vpop.permute.xlu0 %4263
          %4265 = vrot.lane.b32.xlu0 %v4254, 122
          %v4266 = vpop.permute.xlu0 %4265
          %v4267 = vsel %vm1056, %v4256, %v4258
          %v4268 = vsel %vm1056, %v4260, %v4262
          %v4269 = vsel %vm1056, %v4264, %v4266
          %v4276 = vadd.f32 %v4226, %v4256
          %v4277 = vadd.f32 %v4227, %v4267
          %v4278 = vadd.f32 %v4228, %v4260
          %v4279 = vadd.f32 %v4229, %v4268
          %v4280 = vadd.f32 %v4230, %v4264
          %v4281 = vadd.f32 %v4231, %v4269
          %s4282 = sld [smem:[#allocation7 + $0x2a]]
          %s4283 = sld [smem:[#allocation7 + $0x5b]]
          %v4284 = vld [vmem:[#allocation6 + $0x18] sm:$0xf8]
          %v4285 = vld [vmem:[#allocation6 + $0x20] sm:$0xf8]
          %v4286 = vld [vmem:[#allocation6 + $0x48] sm:$0x7]
          %v4287 = vld [vmem:[#allocation6 + $0x50] sm:$0x7]
          %v4288 = vstv %s4282
          %v4289 = vmul.f32 %v4288, %v4284
          %v4290 = vmul.f32 %v4288, %v4285
          %v4291 = vmul.f32 %v4288, %v2969
          %v4292 = vmul.f32 %v4288, %v2970
          %v4293 = vmul.f32 %v4288, %v4286
          %v4294 = vmul.f32 %v4288, %v4287
          %vm4301 = vcmask 1041408
          %v4302 = vrot.slane %v4289, 6
          %v4303 = vrot.slane %v4290, 6
          %v4304 = vrot.slane %v4291, 6
          %v4305 = vsel %vm4301, %v4302, %v4304
          %v4306 = vrot.slane %v4292, 6
          %v4307 = vsel %vm4301, %v4303, %v4306
          %v4308 = vrot.slane %v4293, 6
          %v4309 = vsel %vm4301, %v4304, %v4308
          %v4310 = vrot.slane %v4294, 6
          %v4311 = vsel %vm4301, %v4306, %v4310
          %v4318 = vadd.f32 %v4276, %v4302
          %v4319 = vadd.f32 %v4277, %v4303
          %v4320 = vadd.f32 %v4278, %v4305
          %v4321 = vadd.f32 %v4279, %v4307
          %v4322 = vadd.f32 %v4280, %v4309
          %v4323 = vadd.f32 %v4281, %v4311
          %v4324 = vld [vmem:[%s313 + $0x18] sm:$0xf8]
          %v4325 = vld [vmem:[%s313 + $0x20] sm:$0xf8]
          %v4326 = vld [vmem:[%s313 + $0x48] sm:$0x7]
          %v4327 = vld [vmem:[%s313 + $0x50] sm:$0x7]
          %v4328 = vstv %s4283
          %v4329 = vmul.f32 %v4328, %v4324
          %v4330 = vmul.f32 %v4328, %v4325
          %v4331 = vmul.f32 %v4328, %v3010
          %v4332 = vmul.f32 %v4328, %v3011
          %v4333 = vmul.f32 %v4328, %v4326
          %v4334 = vmul.f32 %v4328, %v4327
          %v4341 = vrot.slane %v4329, 6
          %v4342 = vrot.slane %v4330, 6
          %v4343 = vrot.slane %v4331, 6
          %v4344 = vsel %vm4301, %v4341, %v4343
          %v4345 = vrot.slane %v4332, 6
          %v4346 = vsel %vm4301, %v4342, %v4345
          %v4347 = vrot.slane %v4333, 6
          %v4348 = vsel %vm4301, %v4343, %v4347
          %v4349 = vrot.slane %v4334, 6
          %v4350 = vsel %vm4301, %v4345, %v4349
          %v4357 = vadd.f32 %v4318, %v4341
          %v4358 = vadd.f32 %v4319, %v4342
          %v4359 = vadd.f32 %v4320, %v4344
          %v4360 = vadd.f32 %v4321, %v4346
          %v4361 = vadd.f32 %v4322, %v4348
          %v4362 = vadd.f32 %v4323, %v4350
          %s4363 = sld [smem:[#allocation7 + $0x2b]]
          %s4364 = sld [smem:[#allocation7 + $0x5c]]
          %v4365 = vstv %s4363
          %v4366 = vmul.f32 %v4365, %v4284
          %v4367 = vmul.f32 %v4365, %v4285
          %v4368 = vmul.f32 %v4365, %v2969
          %v4369 = vmul.f32 %v4365, %v2970
          %v4370 = vmul.f32 %v4365, %v4286
          %v4371 = vmul.f32 %v4365, %v4287
          %v4378 = vrot.slane %v4366, 6
          %v4379 = vrot.slane %v4367, 6
          %v4380 = vrot.slane %v4368, 6
          %v4381 = vsel %vm4301, %v4378, %v4380
          %v4382 = vrot.slane %v4369, 6
          %v4383 = vsel %vm4301, %v4379, %v4382
          %v4384 = vrot.slane %v4370, 6
          %v4385 = vsel %vm4301, %v4380, %v4384
          %v4386 = vrot.slane %v4371, 6
          %v4387 = vsel %vm4301, %v4382, %v4386
          %4388 = vrot.lane.b32.xlu0 %v4378, 127
          %v4389 = vpop.permute.xlu0 %4388
          %4390 = vrot.lane.b32.xlu0 %v4379, 127
          %v4391 = vpop.permute.xlu0 %4390
          %4392 = vrot.lane.b32.xlu0 %v4381, 127
          %v4393 = vpop.permute.xlu0 %4392
          %4394 = vrot.lane.b32.xlu0 %v4383, 127
          %v4395 = vpop.permute.xlu0 %4394
          %4396 = vrot.lane.b32.xlu0 %v4385, 127
          %v4397 = vpop.permute.xlu0 %4396
          %4398 = vrot.lane.b32.xlu0 %v4387, 127
          %v4399 = vpop.permute.xlu0 %4398
          %v4400 = vsel %vm666, %v4389, %v4391
          %v4401 = vsel %vm666, %v4393, %v4395
          %v4402 = vsel %vm666, %v4397, %v4399
          %v4409 = vadd.f32 %v4357, %v4400
          %v4410 = vadd.f32 %v4358, %v4391
          %v4411 = vadd.f32 %v4359, %v4401
          %v4412 = vadd.f32 %v4360, %v4395
          %v4413 = vadd.f32 %v4361, %v4402
          %v4414 = vadd.f32 %v4362, %v4399
          %v4415 = vstv %s4364
          %v4416 = vmul.f32 %v4415, %v4324
          %v4417 = vmul.f32 %v4415, %v4325
          %v4418 = vmul.f32 %v4415, %v3010
          %v4419 = vmul.f32 %v4415, %v3011
          %v4420 = vmul.f32 %v4415, %v4326
          %v4421 = vmul.f32 %v4415, %v4327
          %v4428 = vrot.slane %v4416, 6
          %v4429 = vrot.slane %v4417, 6
          %v4430 = vrot.slane %v4418, 6
          %v4431 = vsel %vm4301, %v4428, %v4430
          %v4432 = vrot.slane %v4419, 6
          %v4433 = vsel %vm4301, %v4429, %v4432
          %v4434 = vrot.slane %v4420, 6
          %v4435 = vsel %vm4301, %v4430, %v4434
          %v4436 = vrot.slane %v4421, 6
          %v4437 = vsel %vm4301, %v4432, %v4436
          %4438 = vrot.lane.b32.xlu0 %v4428, 127
          %v4439 = vpop.permute.xlu0 %4438
          %4440 = vrot.lane.b32.xlu0 %v4429, 127
          %v4441 = vpop.permute.xlu0 %4440
          %4442 = vrot.lane.b32.xlu0 %v4431, 127
          %v4443 = vpop.permute.xlu0 %4442
          %4444 = vrot.lane.b32.xlu0 %v4433, 127
          %v4445 = vpop.permute.xlu0 %4444
          %4446 = vrot.lane.b32.xlu0 %v4435, 127
          %v4447 = vpop.permute.xlu0 %4446
          %4448 = vrot.lane.b32.xlu0 %v4437, 127
          %v4449 = vpop.permute.xlu0 %4448
          %v4450 = vsel %vm666, %v4439, %v4441
          %v4451 = vsel %vm666, %v4443, %v4445
          %v4452 = vsel %vm666, %v4447, %v4449
          %v4459 = vadd.f32 %v4409, %v4450
          %v4460 = vadd.f32 %v4410, %v4441
          %v4461 = vadd.f32 %v4411, %v4451
          %v4462 = vadd.f32 %v4412, %v4445
          %v4463 = vadd.f32 %v4413, %v4452
          %v4464 = vadd.f32 %v4414, %v4449
          %s4465 = sld [smem:[#allocation7 + $0x2c]]
          %s4466 = sld [smem:[#allocation7 + $0x5d]]
          %v4467 = vstv %s4465
          %v4468 = vmul.f32 %v4467, %v4284
          %v4469 = vmul.f32 %v4467, %v4285
          %v4470 = vmul.f32 %v4467, %v2969
          %v4471 = vmul.f32 %v4467, %v2970
          %v4472 = vmul.f32 %v4467, %v4286
          %v4473 = vmul.f32 %v4467, %v4287
          %v4480 = vrot.slane %v4468, 6
          %v4481 = vrot.slane %v4469, 6
          %v4482 = vrot.slane %v4470, 6
          %v4483 = vsel %vm4301, %v4480, %v4482
          %v4484 = vrot.slane %v4471, 6
          %v4485 = vsel %vm4301, %v4481, %v4484
          %v4486 = vrot.slane %v4472, 6
          %v4487 = vsel %vm4301, %v4482, %v4486
          %v4488 = vrot.slane %v4473, 6
          %v4489 = vsel %vm4301, %v4484, %v4488
          %4490 = vrot.lane.b32.xlu0 %v4480, 126
          %v4491 = vpop.permute.xlu0 %4490
          %4492 = vrot.lane.b32.xlu0 %v4481, 126
          %v4493 = vpop.permute.xlu0 %4492
          %4494 = vrot.lane.b32.xlu0 %v4483, 126
          %v4495 = vpop.permute.xlu0 %4494
          %4496 = vrot.lane.b32.xlu0 %v4485, 126
          %v4497 = vpop.permute.xlu0 %4496
          %4498 = vrot.lane.b32.xlu0 %v4487, 126
          %v4499 = vpop.permute.xlu0 %4498
          %4500 = vrot.lane.b32.xlu0 %v4489, 126
          %v4501 = vpop.permute.xlu0 %4500
          %v4502 = vsel %vm749, %v4491, %v4493
          %v4503 = vsel %vm749, %v4495, %v4497
          %v4504 = vsel %vm749, %v4499, %v4501
          %v4511 = vadd.f32 %v4459, %v4502
          %v4512 = vadd.f32 %v4460, %v4493
          %v4513 = vadd.f32 %v4461, %v4503
          %v4514 = vadd.f32 %v4462, %v4497
          %v4515 = vadd.f32 %v4463, %v4504
          %v4516 = vadd.f32 %v4464, %v4501
          %v4517 = vstv %s4466
          %v4518 = vmul.f32 %v4517, %v4324
          %v4519 = vmul.f32 %v4517, %v4325
          %v4520 = vmul.f32 %v4517, %v3010
          %v4521 = vmul.f32 %v4517, %v3011
          %v4522 = vmul.f32 %v4517, %v4326
          %v4523 = vmul.f32 %v4517, %v4327
          %v4530 = vrot.slane %v4518, 6
          %v4531 = vrot.slane %v4519, 6
          %v4532 = vrot.slane %v4520, 6
          %v4533 = vsel %vm4301, %v4530, %v4532
          %v4534 = vrot.slane %v4521, 6
          %v4535 = vsel %vm4301, %v4531, %v4534
          %v4536 = vrot.slane %v4522, 6
          %v4537 = vsel %vm4301, %v4532, %v4536
          %v4538 = vrot.slane %v4523, 6
          %v4539 = vsel %vm4301, %v4534, %v4538
          %4540 = vrot.lane.b32.xlu0 %v4530, 126
          %v4541 = vpop.permute.xlu0 %4540
          %4542 = vrot.lane.b32.xlu0 %v4531, 126
          %v4543 = vpop.permute.xlu0 %4542
          %4544 = vrot.lane.b32.xlu0 %v4533, 126
          %v4545 = vpop.permute.xlu0 %4544
          %4546 = vrot.lane.b32.xlu0 %v4535, 126
          %v4547 = vpop.permute.xlu0 %4546
          %4548 = vrot.lane.b32.xlu0 %v4537, 126
          %v4549 = vpop.permute.xlu0 %4548
          %4550 = vrot.lane.b32.xlu0 %v4539, 126
          %v4551 = vpop.permute.xlu0 %4550
          %v4552 = vsel %vm749, %v4541, %v4543
          %v4553 = vsel %vm749, %v4545, %v4547
          %v4554 = vsel %vm749, %v4549, %v4551
          %v4561 = vadd.f32 %v4511, %v4552
          %v4562 = vadd.f32 %v4512, %v4543
          %v4563 = vadd.f32 %v4513, %v4553
          %v4564 = vadd.f32 %v4514, %v4547
          %v4565 = vadd.f32 %v4515, %v4554
          %v4566 = vadd.f32 %v4516, %v4551
          %s4567 = sld [smem:[#allocation7 + $0x2d]]
          %s4568 = sld [smem:[#allocation7 + $0x5e]]
          %v4569 = vstv %s4567
          %v4570 = vmul.f32 %v4569, %v4285
          %v4571 = vmul.f32 %v4569, %v2970
          %v4572 = vmul.f32 %v4569, %v4287
          %v4576 = vrot.slane %v4570, 6
          %v4577 = vrot.slane %v4571, 6
          %v4578 = vsel %vm4301, %v4576, %v4577
          %v4579 = vrot.slane %v4572, 6
          %v4580 = vsel %vm4301, %v4577, %v4579
          %4581 = vrot.lane.b32.xlu0 %v4576, 125
          %v4582 = vpop.permute.xlu0 %4581
          %4583 = vrot.lane.b32.xlu0 %v4578, 125
          %v4584 = vpop.permute.xlu0 %4583
          %4585 = vrot.lane.b32.xlu0 %v4580, 125
          %v4586 = vpop.permute.xlu0 %4585
          %v4590 = vadd.f32 %v4561, %v4582
          %v4591 = vadd.f32 %v4562, %v4582
          %v4592 = vadd.f32 %v4563, %v4584
          %v4593 = vadd.f32 %v4564, %v4584
          %v4594 = vadd.f32 %v4565, %v4586
          %v4595 = vadd.f32 %v4566, %v4586
          %v4596 = vstv %s4568
          %v4597 = vmul.f32 %v4596, %v4325
          %v4598 = vmul.f32 %v4596, %v3011
          %v4599 = vmul.f32 %v4596, %v4327
          %v4603 = vrot.slane %v4597, 6
          %v4604 = vrot.slane %v4598, 6
          %v4605 = vsel %vm4301, %v4603, %v4604
          %v4606 = vrot.slane %v4599, 6
          %v4607 = vsel %vm4301, %v4604, %v4606
          %4608 = vrot.lane.b32.xlu0 %v4603, 125
          %v4609 = vpop.permute.xlu0 %4608
          %4610 = vrot.lane.b32.xlu0 %v4605, 125
          %v4611 = vpop.permute.xlu0 %4610
          %4612 = vrot.lane.b32.xlu0 %v4607, 125
          %v4613 = vpop.permute.xlu0 %4612
          %v4617 = vadd.f32 %v4590, %v4609
          %v4618 = vadd.f32 %v4591, %v4609
          %v4619 = vadd.f32 %v4592, %v4611
          %v4620 = vadd.f32 %v4593, %v4611
          %v4621 = vadd.f32 %v4594, %v4613
          %v4622 = vadd.f32 %v4595, %v4613
          %s4623 = sld [smem:[#allocation7 + $0x2e]]
          %s4624 = sld [smem:[#allocation7 + $0x5f]]
          %v4625 = vld [vmem:[#allocation6 + $0x20] sm:$0xf8]
          %v4626 = vld [vmem:[#allocation6 + $0x28] sm:$0xf8]
          %v4627 = vld [vmem:[#allocation6 + $0x50] sm:$0x7]
          %v4628 = vld [vmem:[#allocation6 + $0x58] sm:$0x7]
          %v4629 = vstv %s4623
          %v4630 = vmul.f32 %v4629, %v4625
          %v4631 = vmul.f32 %v4629, %v4626
          %v4632 = vmul.f32 %v4629, %v3313
          %v4633 = vmul.f32 %v4629, %v3314
          %v4634 = vmul.f32 %v4629, %v4627
          %v4635 = vmul.f32 %v4629, %v4628
          %v4642 = vrot.slane %v4630, 6
          %v4643 = vrot.slane %v4631, 6
          %v4644 = vrot.slane %v4632, 6
          %v4645 = vsel %vm4301, %v4642, %v4644
          %v4646 = vrot.slane %v4633, 6
          %v4647 = vsel %vm4301, %v4643, %v4646
          %v4648 = vrot.slane %v4634, 6
          %v4649 = vsel %vm4301, %v4644, %v4648
          %v4650 = vrot.slane %v4635, 6
          %v4651 = vsel %vm4301, %v4646, %v4650
          %4652 = vrot.lane.b32.xlu0 %v4642, 124
          %v4653 = vpop.permute.xlu0 %4652
          %4654 = vrot.lane.b32.xlu0 %v4643, 124
          %v4655 = vpop.permute.xlu0 %4654
          %4656 = vrot.lane.b32.xlu0 %v4645, 124
          %v4657 = vpop.permute.xlu0 %4656
          %4658 = vrot.lane.b32.xlu0 %v4647, 124
          %v4659 = vpop.permute.xlu0 %4658
          %4660 = vrot.lane.b32.xlu0 %v4649, 124
          %v4661 = vpop.permute.xlu0 %4660
          %4662 = vrot.lane.b32.xlu0 %v4651, 124
          %v4663 = vpop.permute.xlu0 %4662
          %v4664 = vsel %vm884, %v4653, %v4655
          %v4665 = vsel %vm884, %v4657, %v4659
          %v4666 = vsel %vm884, %v4661, %v4663
          %v4673 = vadd.f32 %v4617, %v4653
          %v4674 = vadd.f32 %v4618, %v4664
          %v4675 = vadd.f32 %v4619, %v4657
          %v4676 = vadd.f32 %v4620, %v4665
          %v4677 = vadd.f32 %v4621, %v4661
          %v4678 = vadd.f32 %v4622, %v4666
          %v4679 = vld [vmem:[%s313 + $0x20] sm:$0xf8]
          %v4680 = vld [vmem:[%s313 + $0x28] sm:$0xf8]
          %v4681 = vld [vmem:[%s313 + $0x50] sm:$0x7]
          %v4682 = vld [vmem:[%s313 + $0x58] sm:$0x7]
          %v4683 = vstv %s4624
          %v4684 = vmul.f32 %v4683, %v4679
          %v4685 = vmul.f32 %v4683, %v4680
          %v4686 = vmul.f32 %v4683, %v3369
          %v4687 = vmul.f32 %v4683, %v3370
          %v4688 = vmul.f32 %v4683, %v4681
          %v4689 = vmul.f32 %v4683, %v4682
          %v4696 = vrot.slane %v4684, 6
          %v4697 = vrot.slane %v4685, 6
          %v4698 = vrot.slane %v4686, 6
          %v4699 = vsel %vm4301, %v4696, %v4698
          %v4700 = vrot.slane %v4687, 6
          %v4701 = vsel %vm4301, %v4697, %v4700
          %v4702 = vrot.slane %v4688, 6
          %v4703 = vsel %vm4301, %v4698, %v4702
          %v4704 = vrot.slane %v4689, 6
          %v4705 = vsel %vm4301, %v4700, %v4704
          %4706 = vrot.lane.b32.xlu0 %v4696, 124
          %v4707 = vpop.permute.xlu0 %4706
          %4708 = vrot.lane.b32.xlu0 %v4697, 124
          %v4709 = vpop.permute.xlu0 %4708
          %4710 = vrot.lane.b32.xlu0 %v4699, 124
          %v4711 = vpop.permute.xlu0 %4710
          %4712 = vrot.lane.b32.xlu0 %v4701, 124
          %v4713 = vpop.permute.xlu0 %4712
          %4714 = vrot.lane.b32.xlu0 %v4703, 124
          %v4715 = vpop.permute.xlu0 %4714
          %4716 = vrot.lane.b32.xlu0 %v4705, 124
          %v4717 = vpop.permute.xlu0 %4716
          %v4718 = vsel %vm884, %v4707, %v4709
          %v4719 = vsel %vm884, %v4711, %v4713
          %v4720 = vsel %vm884, %v4715, %v4717
          %v4727 = vadd.f32 %v4673, %v4707
          %v4728 = vadd.f32 %v4674, %v4718
          %v4729 = vadd.f32 %v4675, %v4711
          %v4730 = vadd.f32 %v4676, %v4719
          %v4731 = vadd.f32 %v4677, %v4715
          %v4732 = vadd.f32 %v4678, %v4720
          %s4733 = sld [smem:[#allocation7 + $0x2f]]
          %s4734 = sld [smem:[#allocation7 + $0x60]]
          %v4735 = vstv %s4733
          %v4736 = vmul.f32 %v4735, %v4625
          %v4737 = vmul.f32 %v4735, %v4626
          %v4738 = vmul.f32 %v4735, %v3313
          %v4739 = vmul.f32 %v4735, %v3314
          %v4740 = vmul.f32 %v4735, %v4627
          %v4741 = vmul.f32 %v4735, %v4628
          %v4748 = vrot.slane %v4736, 6
          %v4749 = vrot.slane %v4737, 6
          %v4750 = vrot.slane %v4738, 6
          %v4751 = vsel %vm4301, %v4748, %v4750
          %v4752 = vrot.slane %v4739, 6
          %v4753 = vsel %vm4301, %v4749, %v4752
          %v4754 = vrot.slane %v4740, 6
          %v4755 = vsel %vm4301, %v4750, %v4754
          %v4756 = vrot.slane %v4741, 6
          %v4757 = vsel %vm4301, %v4752, %v4756
          %4758 = vrot.lane.b32.xlu0 %v4748, 123
          %v4759 = vpop.permute.xlu0 %4758
          %4760 = vrot.lane.b32.xlu0 %v4749, 123
          %v4761 = vpop.permute.xlu0 %4760
          %4762 = vrot.lane.b32.xlu0 %v4751, 123
          %v4763 = vpop.permute.xlu0 %4762
          %4764 = vrot.lane.b32.xlu0 %v4753, 123
          %v4765 = vpop.permute.xlu0 %4764
          %4766 = vrot.lane.b32.xlu0 %v4755, 123
          %v4767 = vpop.permute.xlu0 %4766
          %4768 = vrot.lane.b32.xlu0 %v4757, 123
          %v4769 = vpop.permute.xlu0 %4768
          %v4770 = vsel %vm973, %v4759, %v4761
          %v4771 = vsel %vm973, %v4763, %v4765
          %v4772 = vsel %vm973, %v4767, %v4769
          %v4779 = vadd.f32 %v4727, %v4759
          %v4780 = vadd.f32 %v4728, %v4770
          %v4781 = vadd.f32 %v4729, %v4763
          %v4782 = vadd.f32 %v4730, %v4771
          %v4783 = vadd.f32 %v4731, %v4767
          %v4784 = vadd.f32 %v4732, %v4772
          %v4785 = vstv %s4734
          %v4786 = vmul.f32 %v4785, %v4679
          %v4787 = vmul.f32 %v4785, %v4680
          %v4788 = vmul.f32 %v4785, %v3369
          %v4789 = vmul.f32 %v4785, %v3370
          %v4790 = vmul.f32 %v4785, %v4681
          %v4791 = vmul.f32 %v4785, %v4682
          %v4798 = vrot.slane %v4786, 6
          %v4799 = vrot.slane %v4787, 6
          %v4800 = vrot.slane %v4788, 6
          %v4801 = vsel %vm4301, %v4798, %v4800
          %v4802 = vrot.slane %v4789, 6
          %v4803 = vsel %vm4301, %v4799, %v4802
          %v4804 = vrot.slane %v4790, 6
          %v4805 = vsel %vm4301, %v4800, %v4804
          %v4806 = vrot.slane %v4791, 6
          %v4807 = vsel %vm4301, %v4802, %v4806
          %4808 = vrot.lane.b32.xlu0 %v4798, 123
          %v4809 = vpop.permute.xlu0 %4808
          %4810 = vrot.lane.b32.xlu0 %v4799, 123
          %v4811 = vpop.permute.xlu0 %4810
          %4812 = vrot.lane.b32.xlu0 %v4801, 123
          %v4813 = vpop.permute.xlu0 %4812
          %4814 = vrot.lane.b32.xlu0 %v4803, 123
          %v4815 = vpop.permute.xlu0 %4814
          %4816 = vrot.lane.b32.xlu0 %v4805, 123
          %v4817 = vpop.permute.xlu0 %4816
          %4818 = vrot.lane.b32.xlu0 %v4807, 123
          %v4819 = vpop.permute.xlu0 %4818
          %v4820 = vsel %vm973, %v4809, %v4811
          %v4821 = vsel %vm973, %v4813, %v4815
          %v4822 = vsel %vm973, %v4817, %v4819
          %v4829 = vadd.f32 %v4779, %v4809
          %v4830 = vadd.f32 %v4780, %v4820
          %v4831 = vadd.f32 %v4781, %v4813
          %v4832 = vadd.f32 %v4782, %v4821
          %v4833 = vadd.f32 %v4783, %v4817
          %v4834 = vadd.f32 %v4784, %v4822
          %s4835 = sld [smem:[#allocation7 + $0x30]]
          %s4836 = sld [smem:[#allocation7 + $0x61]]
          %v4837 = vstv %s4835
          %v4838 = vmul.f32 %v4837, %v4625
          %v4839 = vmul.f32 %v4837, %v4626
          %v4840 = vmul.f32 %v4837, %v3313
          %v4841 = vmul.f32 %v4837, %v3314
          %v4842 = vmul.f32 %v4837, %v4627
          %v4843 = vmul.f32 %v4837, %v4628
          %v4850 = vrot.slane %v4838, 6
          %v4851 = vrot.slane %v4839, 6
          %v4852 = vrot.slane %v4840, 6
          %v4853 = vsel %vm4301, %v4850, %v4852
          %v4854 = vrot.slane %v4841, 6
          %v4855 = vsel %vm4301, %v4851, %v4854
          %v4856 = vrot.slane %v4842, 6
          %v4857 = vsel %vm4301, %v4852, %v4856
          %v4858 = vrot.slane %v4843, 6
          %v4859 = vsel %vm4301, %v4854, %v4858
          %4860 = vrot.lane.b32.xlu0 %v4850, 122
          %v4861 = vpop.permute.xlu0 %4860
          %4862 = vrot.lane.b32.xlu0 %v4851, 122
          %v4863 = vpop.permute.xlu0 %4862
          %4864 = vrot.lane.b32.xlu0 %v4853, 122
          %v4865 = vpop.permute.xlu0 %4864
          %4866 = vrot.lane.b32.xlu0 %v4855, 122
          %v4867 = vpop.permute.xlu0 %4866
          %4868 = vrot.lane.b32.xlu0 %v4857, 122
          %v4869 = vpop.permute.xlu0 %4868
          %4870 = vrot.lane.b32.xlu0 %v4859, 122
          %v4871 = vpop.permute.xlu0 %4870
          %v4872 = vsel %vm1056, %v4861, %v4863
          %v4873 = vsel %vm1056, %v4865, %v4867
          %v4874 = vsel %vm1056, %v4869, %v4871
          %v4881 = vadd.f32 %v4829, %v4861
          %v4882 = vadd.f32 %v4830, %v4872
          %v4883 = vadd.f32 %v4831, %v4865
          %v4884 = vadd.f32 %v4832, %v4873
          %v4885 = vadd.f32 %v4833, %v4869
          %v4886 = vadd.f32 %v4834, %v4874
          %v4887 = vstv %s4836
          %v4888 = vmul.f32 %v4887, %v4679
          %v4889 = vmul.f32 %v4887, %v4680
          %v4890 = vmul.f32 %v4887, %v3369
          %v4891 = vmul.f32 %v4887, %v3370
          %v4892 = vmul.f32 %v4887, %v4681
          %v4893 = vmul.f32 %v4887, %v4682
          %v4900 = vrot.slane %v4888, 6
          %v4901 = vrot.slane %v4889, 6
          %v4902 = vrot.slane %v4890, 6
          %v4903 = vsel %vm4301, %v4900, %v4902
          %v4904 = vrot.slane %v4891, 6
          %v4905 = vsel %vm4301, %v4901, %v4904
          %v4906 = vrot.slane %v4892, 6
          %v4907 = vsel %vm4301, %v4902, %v4906
          %v4908 = vrot.slane %v4893, 6
          %v4909 = vsel %vm4301, %v4904, %v4908
          %4910 = vrot.lane.b32.xlu0 %v4900, 122
          %v4911 = vpop.permute.xlu0 %4910
          %4912 = vrot.lane.b32.xlu0 %v4901, 122
          %v4913 = vpop.permute.xlu0 %4912
          %4914 = vrot.lane.b32.xlu0 %v4903, 122
          %v4915 = vpop.permute.xlu0 %4914
          %4916 = vrot.lane.b32.xlu0 %v4905, 122
          %v4917 = vpop.permute.xlu0 %4916
          %4918 = vrot.lane.b32.xlu0 %v4907, 122
          %v4919 = vpop.permute.xlu0 %4918
          %4920 = vrot.lane.b32.xlu0 %v4909, 122
          %v4921 = vpop.permute.xlu0 %4920
          %v4922 = vsel %vm1056, %v4911, %v4913
          %v4923 = vsel %vm1056, %v4915, %v4917
          %v4924 = vsel %vm1056, %v4919, %v4921
          %v4931 = vadd.f32 %v4881, %v4911
          %v4932 = vadd.f32 %v4882, %v4922
          %v4933 = vadd.f32 %v4883, %v4915
          %v4934 = vadd.f32 %v4884, %v4923
          %v4935 = vadd.f32 %v4885, %v4919
          %v4936 = vadd.f32 %v4886, %v4924
          %v4937 = vxor.u32 %v4931, 2147483648
          %v4938 = vxor.u32 %v4932, 2147483648
          %v4939 = vxor.u32 %v4933, 2147483648
          %v4940 = vxor.u32 %v4934, 2147483648
          %v4941 = vxor.u32 %v4935, 2147483648
          %v4942 = vxor.u32 %v4936, 2147483648
          %v4943 = vmul.f32 %v4937, 1.442695
          %v4944 = vpow.pop %v4943
          %v4945 = vmul.f32 %v4938, 1.442695
          %v4946 = vpow.pop %v4945
          %v4947 = vmul.f32 %v4939, 1.442695
          %v4948 = vpow.pop %v4947
          %v4949 = vmul.f32 %v4940, 1.442695
          %v4950 = vpow.pop %v4949
          %v4951 = vmul.f32 %v4941, 1.442695
          %v4952 = vpow.pop %v4951
          %v4953 = vmul.f32 %v4942, 1.442695
          %v4954 = vpow.pop %v4953
          %v4955 = vadd.f32 %v4944, 1.0
          %v4956 = vadd.f32 %v4946, 1.0
          %v4957 = vadd.f32 %v4948, 1.0
          %v4958 = vadd.f32 %v4950, 1.0
          %v4959 = vadd.f32 %v4952, 1.0
          %v4960 = vadd.f32 %v4954, 1.0
          %v4961 = vrcp.pop %v4955
          %v4962 = vmul.f32 1.0, %v4961
          %v4963 = vrcp.pop %v4956
          %v4964 = vmul.f32 1.0, %v4963
          %v4965 = vrcp.pop %v4957
          %v4966 = vmul.f32 1.0, %v4965
          %v4967 = vrcp.pop %v4958
          %v4968 = vmul.f32 1.0, %v4967
          %v4969 = vrcp.pop %v4959
          %v4970 = vmul.f32 1.0, %v4969
          %v4971 = vrcp.pop %v4960
          %v4972 = vmul.f32 1.0, %v4971
          %4979 = vrot.lane.b32.xlu0 %v4962, 3
          %v4980 = vpop.permute.xlu0 %4979
          %4981 = vrot.lane.b32.xlu0 %v4964, 3
          %v4982 = vpop.permute.xlu0 %4981
          %4983 = vrot.lane.b32.xlu0 %v4966, 3
          %v4984 = vpop.permute.xlu0 %4983
          %4985 = vrot.lane.b32.xlu0 %v4968, 3
          %v4986 = vpop.permute.xlu0 %4985
          %4987 = vrot.lane.b32.xlu0 %v4970, 3
          %v4988 = vpop.permute.xlu0 %4987
          %4989 = vrot.lane.b32.xlu0 %v4972, 3
          %v4990 = vpop.permute.xlu0 %4989
          %vm4991 = vcmask 23552
          %v4992 = vsel %vm4991, %v4980, %v4982
          %v4993 = vsel %vm4991, %v4984, %v4986
          %v4994 = vsel %vm4991, %v4988, %v4990
          %4998 = vst [vmem:[%s187 - $0x5] sm:$0xe0] %v4992
          %4999 = vst [vmem:[%s187 + $0x3] sm:$0xff] %v4993
          %5000 = vst [vmem:[%s187 + $0xb] sm:$0x1f] %v4994
        $region44: #{tpu_custom_call.1} parent=27 // pred_fallthru
          _
        %s5001 = sand.u32 %s89, 1
        %s5002 = scalar_lea.sflag [#allocation9], %s5001
        %s5003 = sand.u32 %s89, 1
        %s5004 = smul.addr %s5003, 16
        %s5005 = scalar_lea.vmem [#allocation12], %s5004
        // Predicated region
        $region45: #{tpu_custom_call.1} parent=27 // pred_check
          %p5006 = pneg %p99
        $region46: #{tpu_custom_call.1} parent=27 // pred_check_branch
          %5008 = sbr.rel (%p5006) target = $region48
        $region47: #{tpu_custom_call.1} parent=27 // pred_region
          %s5010 = ssub.s32 256, 256
          %5011 = vsyncadd %s5002, %s5010
          %s5012 = smul.addr %s24, 2
          %s5013 = smul.addr %s5012, 128
          %s5014 = scalar_lea.hbm %s2, %s5013
          %s5015 = sshll.u32 %s5005, 4
          %s5016 = int_to_ptr.vmem [resolvable:$true] %s5015
          %5021 = dma.vmem_to_hbm [thread:$0]  %s5016, 256, %s5014, %s5002, 128, 128, 8
        $region48: #{tpu_custom_call.1} parent=27 // pred_fallthru
          _
      $region28: #{tpu_custom_call.1} parent=5 // pred_fallthru
        _
      %p5022 = scmp.le.s32.totalorder 2, %s15
      // Predicated region
      $region49: #{tpu_custom_call.1} parent=5 // pred_check
        %p5023 = pneg %p5022
      $region50: #{tpu_custom_call.1} parent=5 // pred_check_branch
        %5025 = sbr.rel (%p5023) target = $region52
      $region51: #{tpu_custom_call.1} parent=5 // pred_region
        %s5026 = ssub.s32 %s15, 2
        // Predicated region
        $region53: #{tpu_custom_call.1} parent=51 // pred_check
          %p5027 = pneg %p105
        $region54: #{tpu_custom_call.1} parent=51 // pred_check_branch
          %5029 = sbr.rel (%p5027) target = $region56
        $region55: #{tpu_custom_call.1} parent=51 // pred_region
          %s5030 = sand.u32 %s90, 1
          %s5031 = scalar_lea.sflag [#allocation9], %s5030
          %s5032 = sand.u32 %s90, 1
          %s5033 = smul.addr %s5032, 16
          %s5034 = scalar_lea.vmem [#allocation12], %s5033
          %5035 = dma.done %s5031, 256
        $region56: #{tpu_custom_call.1} parent=51 // pred_fallthru
          _
      $region52: #{tpu_custom_call.1} parent=5 // pred_fallthru
        _
    $region6: #{tpu_custom_call.1} parent=1 // loop_footer
      %s19 = sadd.s32 1, %s15
    $region7: #{tpu_custom_call.1} parent=1 // loop_footer_branch
      %14 = sbr.rel target = $region3
    $region8: #{tpu_custom_call.1} parent=1 // loop_exit
      _
    %5036 = vsyncpa [#allocation8], 1
    %s5037 = scalar_lea.sflag [#allocation8], 1
    %5038 = vsyncpa %s5037, 1
    %5039 = vsyncpa [#allocation9], 1
    %s5040 = scalar_lea.sflag [#allocation9], 1
    %5041 = vsyncpa %s5040, 1
    %5042 = vsyncpa [#allocation10], 1
    %s5043 = scalar_lea.sflag [#allocation10], 1
    %5044 = vsyncpa %s5043, 1

</llo_original>
